<compile_context>
chip_gen: v7x
topology: tpu7x:2x2x1
jax: 0.10.0
libtpu: 0.0.40
codegen_flags: <defaults>
</compile_context>

<pallas_src>
import math
from functools import partial

import numpy as np
import jax
import jax.numpy as jnp
from jax import lax
from jax.experimental import pallas as pl
from jax.experimental.pallas import tpu as pltpu

# ----------------------------- model config ---------------------------------
VOCAB = 256
D_MODEL = 128
N_HEADS = 4
HEAD_DIM = D_MODEL // N_HEADS          # 32
HALF = HEAD_DIM // 2                   # 16
ROT = N_HEADS * HALF                   # 64 (all heads' half-blocks, lane-dense)
D_FF = 256
N_LAYERS = 2
RMS_EPS = 1e-6
ROPE_BASE = 10000.0


# ----------------------------- kernel helpers --------------------------------
def _rms(x, w):
    # x: (R, D) f32, w: (1, D) f32
    var = jnp.mean(x * x, axis=-1, keepdims=True)
    return x * lax.rsqrt(var + RMS_EPS) * w


# --------------------------- fully fused forward -----------------------------
def _forward_kernel(ids_ref, embed_ref, cos_ref, sin_ref,
                    anorm_ref, wqkv_ref, wo_ref,
                    mnorm_ref, wg_ref, wu_ref, wd_ref,
                    fnorm_ref, head_ref, o_ref, *, batch, seq, scale):
    R = batch * seq

    # ---- embedding lookup as one-hot matmul (table is VMEM resident) --------
    iota_v = lax.broadcasted_iota(jnp.int32, (R, VOCAB), 1)
    onehot = jnp.where(iota_v == ids_ref[...], 1.0, 0.0).astype(jnp.bfloat16)
    x = jnp.dot(onehot, embed_ref[...],
                preferred_element_type=jnp.float32)          # (R, D) f32

    cos = cos_ref[...]                                        # (R, ROT) f32
    sin = sin_ref[...]

    # causal mask: built once, shared by all layers / batches / heads
    row = lax.broadcasted_iota(jnp.int32, (seq, seq), 0)
    col = lax.broadcasted_iota(jnp.int32, (seq, seq), 1)
    causal = col <= row

    for l in range(N_LAYERS):        # static loop; residual stream stays in VMEM
        # ---------------- attention block ----------------
        h = _rms(x, anorm_ref[l])                             # (R, D) f32
        qkv = jnp.dot(h.astype(jnp.bfloat16), wqkv_ref[l],
                      preferred_element_type=jnp.float32)     # (R, 3D) f32

        # q/k columns are pre-permuted offline:
        #   [heads' first halves (64) | heads' second halves (64)]
        qf, qs = qkv[:, 0:ROT],           qkv[:, ROT:2 * ROT]
        kf, ks = qkv[:, 2 * ROT:3 * ROT], qkv[:, 3 * ROT:4 * ROT]
        v = qkv[:, 2 * D_MODEL:].astype(jnp.bfloat16)         # (R, D) head-major

        # lane-dense RoPE (64-wide VPU multiplies, no per-head concat)
        qrf = (qf * cos - qs * sin).astype(jnp.bfloat16)
        qrs = (qs * cos + qf * sin).astype(jnp.bfloat16)
        krf = (kf * cos - ks * sin).astype(jnp.bfloat16)
        krs = (ks * cos + kf * sin).astype(jnp.bfloat16)

        batch_outs = []
        for b in range(batch):                 # static; (S,S) math is per-batch
            r0, r1 = b * seq, (b + 1) * seq
            head_outs = []
            for hh in range(N_HEADS):          # static, H = 4
                c0, c1 = hh * HALF, (hh + 1) * HALF
                # q @ k^T from the two permuted half-blocks (no k.T copy,
                # dot product invariant under consistent column permutation)
                s = lax.dot_general(qrf[r0:r1, c0:c1], krf[r0:r1, c0:c1],
                                    (((1,), (1,)), ((), ())),
                                    preferred_element_type=jnp.float32)
                s = s + lax.dot_general(qrs[r0:r1, c0:c1], krs[r0:r1, c0:c1],
                                        (((1,), (1,)), ((), ())),
                                        preferred_element_type=jnp.float32)
                s = jnp.where(causal, s * scale, jnp.float32(-1e30))

                m = jnp.max(s, axis=-1, keepdims=True)
                p = jnp.exp(s - m)                            # f32 softmax
                denom = jnp.sum(p, axis=-1, keepdims=True)
                v_h = v[r0:r1, hh * HEAD_DIM:(hh + 1) * HEAD_DIM]
                o_h = jnp.dot(p.astype(jnp.bfloat16), v_h,
                              preferred_element_type=jnp.float32)
                # NOTE: approx reciprocal (EUP) has ~1e-3 rel error; switch to
                # approx=False if bit-level parity with the HF reference is needed.
                o_h = o_h * pl.reciprocal(denom, approx=True)
                head_outs.append(o_h)
            batch_outs.append(jnp.concatenate(head_outs, axis=-1))   # (S, D)
        attn = jnp.concatenate(batch_outs, axis=0)                   # (R, D)

        x = x + jnp.dot(attn.astype(jnp.bfloat16), wo_ref[l],
                        preferred_element_type=jnp.float32)

        # ---------------- SwiGLU MLP block ----------------
        h2 = _rms(x, mnorm_ref[l]).astype(jnp.bfloat16)
        g = jnp.dot(h2, wg_ref[l], preferred_element_type=jnp.float32)
        u = jnp.dot(h2, wu_ref[l], preferred_element_type=jnp.float32)
        act = (g * jax.nn.sigmoid(g)) * u                     # SiLU(gate) * up
        x = x + jnp.dot(act.astype(jnp.bfloat16), wd_ref[l],
                        preferred_element_type=jnp.float32)

    # ---------------- final RMSNorm + LM head ----------------
    hf = _rms(x, fnorm_ref[...]).astype(jnp.bfloat16)
    # output is lane-dense: VOCAB = 2 * 128
    o_ref[...] = jnp.dot(hf, head_ref[...], preferred_element_type=jnp.float32)


def _full_spec(arr):
    nd = arr.ndim
    return pl.BlockSpec(arr.shape, lambda i, nd=nd: (0,) * nd)


def forward(params, input_ids):
    """Causal-LM forward: input_ids (B, S) int32 -> logits (B, S, VOCAB) f32."""
    B, S = input_ids.shape
    R = B * S
    ids = input_ids.reshape(R, 1).astype(jnp.int32)

    # RoPE tables, pre-tiled to the (B*S, ROT) lane-dense layout
    pos = jnp.arange(S, dtype=jnp.float32)
    inv_freq = 1.0 / (ROPE_BASE ** (jnp.arange(HALF, dtype=jnp.float32) / HALF))
    freqs = pos[:, None] * inv_freq[None, :]                  # (S, HALF)
    cos = jnp.tile(jnp.cos(freqs), (B, N_HEADS))              # (R, ROT)
    sin = jnp.tile(jnp.sin(freqs), (B, N_HEADS))

    inputs = [
        ids, params["embed"], cos, sin,
        params["anorm"], params["wqkv"], params["wo"],
        params["mnorm"], params["wg"], params["wu"], params["wd"],
        params["final_norm"], params["lm_head"],
    ]

    kern = partial(_forward_kernel, batch=B, seq=S,
                   scale=1.0 / math.sqrt(HEAD_DIM))
    logits = pl.pallas_call(
        kern,
        out_shape=jax.ShapeDtypeStruct((R, VOCAB), jnp.float32),
        grid=(1,),
        in_specs=[_full_spec(a) for a in inputs],
        out_specs=pl.BlockSpec((R, VOCAB), lambda i: (0, 0)),
        compiler_params=pltpu.CompilerParams(
            dimension_semantics=("arbitrary",)),
    )(*inputs)
    return logits.reshape(B, S, VOCAB)


# ----------------------------- params & init ---------------------------------
def init_params(key):
    def nrm(k, shape, scale=0.02):
        return (scale * jax.random.normal(k, shape, jnp.float32)
                ).astype(jnp.bfloat16)

    # offline column permutation for q/k:
    #   new layout = [h0_first, h1_first, ..., h3_first, h0_second, ..., h3_second]
    perm = np.concatenate(
        [np.arange(HALF) + h * HEAD_DIM for h in range(N_HEADS)]
        + [np.arange(HALF) + h * HEAD_DIM + HALF for h in range(N_HEADS)])

    keys = jax.random.split(key, 2 + N_LAYERS)
    wqkv, wo, wg, wu, wd = [], [], [], [], []
    for li in range(N_LAYERS):
        lk = jax.random.split(keys[2 + li], 7)
        wq = nrm(lk[0], (D_MODEL, D_MODEL))[:, perm]
        wk = nrm(lk[1], (D_MODEL, D_MODEL))[:, perm]
        wv = nrm(lk[2], (D_MODEL, D_MODEL))          # v stays head-major (Wo unchanged)
        wqkv.append(jnp.concatenate([wq, wk, wv], axis=1))   # (D, 3D) bf16
        wo.append(nrm(lk[3], (D_MODEL, D_MODEL)))
        wg.append(nrm(lk[4], (D_MODEL, D_FF)))
        wu.append(nrm(lk[5], (D_MODEL, D_FF)))
        wd.append(nrm(lk[6], (D_FF, D_MODEL)))

    return {
        "embed": (0.02 * jax.random.normal(keys[0], (VOCAB, D_MODEL), jnp.float32)
                  ).astype(jnp.bfloat16),
        "anorm": jnp.ones((N_LAYERS, 1, D_MODEL), jnp.float32),
        "mnorm": jnp.ones((N_LAYERS, 1, D_MODEL), jnp.float32),
        "wqkv": jnp.stack(wqkv),                       # (L, D, 3D) bf16
        "wo": jnp.stack(wo),                           # (L, D, D)  bf16
        "wg": jnp.stack(wg),                           # (L, D, F)  bf16
        "wu": jnp.stack(wu),                           # (L, D, F)  bf16
        "wd": jnp.stack(wd),                           # (L, F, D)  bf16
        "final_norm": jnp.ones((1, D_MODEL), jnp.float32),
        "lm_head": nrm(keys[1], (D_MODEL, VOCAB)),
    }


# TODO(synk): from_pretrained / generate / quantize / pack / save_quantized are
# model-management & I/O methods with no Pallas equivalent; only forward() is
# kernelized.

if __name__ == "__main__":
    key = jax.random.PRNGKey(0)
    pkey, dkey = jax.random.split(key)
    params = init_params(pkey)

    B, S = 2, 8
    input_ids = jax.random.randint(dkey, (B, S), 0, VOCAB, dtype=jnp.int32)

    logits = jax.jit(forward)(params, input_ids)
    jax.block_until_ready(logits)
    assert logits.shape == (B, S, VOCAB)
    assert bool(jnp.all(jnp.isfinite(logits)))
    print("KERNEL_OK")
</pallas_src>

<mosaic_0001>
module attributes {stable_mosaic.version = 11 : i64} {
  func.func @_forward_kernel(%arg0: i32, %arg1: memref<16x1xi32, #tpu.memory_space<vmem>>, %arg2: memref<256x128xbf16, #tpu.memory_space<vmem>>, %arg3: memref<16x64xf32, #tpu.memory_space<vmem>>, %arg4: memref<16x64xf32, #tpu.memory_space<vmem>>, %arg5: memref<2x1x128xf32, #tpu.memory_space<vmem>>, %arg6: memref<2x128x384xbf16, #tpu.memory_space<vmem>>, %arg7: memref<2x128x128xbf16, #tpu.memory_space<vmem>>, %arg8: memref<2x1x128xf32, #tpu.memory_space<vmem>>, %arg9: memref<2x128x256xbf16, #tpu.memory_space<vmem>>, %arg10: memref<2x128x256xbf16, #tpu.memory_space<vmem>>, %arg11: memref<2x256x128xbf16, #tpu.memory_space<vmem>>, %arg12: memref<1x128xf32, #tpu.memory_space<vmem>>, %arg13: memref<128x256xbf16, #tpu.memory_space<vmem>>, %arg14: memref<16x256xf32, #tpu.memory_space<vmem>>) attributes {dimension_semantics = [#tpu.dimension_semantics<arbitrary>], iteration_bounds = array<i64: 1>, scalar_prefetch = 0 : i64, scratch_operands = 0 : i64, tpu.core_type = #tpu.core_type<tc>, window_params = [{pipeline_mode = #tpu.pipeline_mode<synchronous>, transform_indices = @transform_0, window_bounds = array<i64: 16, 1>}, {pipeline_mode = #tpu.pipeline_mode<synchronous>, transform_indices = @transform_1, window_bounds = array<i64: 256, 128>}, {pipeline_mode = #tpu.pipeline_mode<synchronous>, transform_indices = @transform_2, window_bounds = array<i64: 16, 64>}, {pipeline_mode = #tpu.pipeline_mode<synchronous>, transform_indices = @transform_3, window_bounds = array<i64: 16, 64>}, {pipeline_mode = #tpu.pipeline_mode<synchronous>, transform_indices = @transform_4, window_bounds = array<i64: 2, 1, 128>}, {pipeline_mode = #tpu.pipeline_mode<synchronous>, transform_indices = @transform_5, window_bounds = array<i64: 2, 128, 384>}, {pipeline_mode = #tpu.pipeline_mode<synchronous>, transform_indices = @transform_6, window_bounds = array<i64: 2, 128, 128>}, {pipeline_mode = #tpu.pipeline_mode<synchronous>, transform_indices = @transform_7, window_bounds = array<i64: 2, 1, 128>}, {pipeline_mode = #tpu.pipeline_mode<synchronous>, transform_indices = @transform_8, window_bounds = array<i64: 2, 128, 256>}, {pipeline_mode = #tpu.pipeline_mode<synchronous>, transform_indices = @transform_9, window_bounds = array<i64: 2, 128, 256>}, {pipeline_mode = #tpu.pipeline_mode<synchronous>, transform_indices = @transform_10, window_bounds = array<i64: 2, 256, 128>}, {pipeline_mode = #tpu.pipeline_mode<synchronous>, transform_indices = @transform_11, window_bounds = array<i64: 1, 128>}, {pipeline_mode = #tpu.pipeline_mode<synchronous>, transform_indices = @transform_12, window_bounds = array<i64: 128, 256>}, {pipeline_mode = #tpu.pipeline_mode<synchronous>, transform_indices = @transform_13, window_bounds = array<i64: 16, 256>}]} {
    %0 = tpu.iota {dimensions = array<i32: 1>} : vector<16x256xi32>
    %c0 = arith.constant 0 : index
    %c0_0 = arith.constant 0 : index
    %1 = vector.load %arg1[%c0, %c0_0] : memref<16x1xi32, #tpu.memory_space<vmem>>, vector<16x1xi32>
    %2 = vector.broadcast %1 : vector<16x1xi32> to vector<16x256xi32>
    %3 = arith.cmpi eq, %0, %2 : vector<16x256xi32>
    %cst = arith.constant 1.000000e+00 : f32
    %cst_1 = arith.constant 0.000000e+00 : f32
    %4 = vector.broadcast %cst : f32 to vector<16x256xf32>
    %5 = vector.broadcast %cst_1 : f32 to vector<16x256xf32>
    %6 = arith.select %3, %4, %5 : vector<16x256xi1>, vector<16x256xf32>
    %7 = arith.truncf %6 : vector<16x256xf32> to vector<16x256xbf16>
    %c0_2 = arith.constant 0 : index
    %c0_3 = arith.constant 0 : index
    %8 = vector.load %arg2[%c0_2, %c0_3] : memref<256x128xbf16, #tpu.memory_space<vmem>>, vector<256x128xbf16>
    %cst_4 = arith.constant dense<0.000000e+00> : vector<16x128xf32>
    %9 = tpu.matmul %7, %8, %cst_4 {dimension_numbers = #tpu.dot_dimension_numbers<[1], [0], [0], [1], [0, 0, 1, 1], [], []>} : vector<16x256xbf16>, vector<256x128xbf16>, vector<16x128xf32> -> vector<16x128xf32>
    %c0_5 = arith.constant 0 : index
    %c0_6 = arith.constant 0 : index
    %10 = vector.load %arg3[%c0_5, %c0_6] : memref<16x64xf32, #tpu.memory_space<vmem>>, vector<16x64xf32>
    %c0_7 = arith.constant 0 : index
    %c0_8 = arith.constant 0 : index
    %11 = vector.load %arg4[%c0_7, %c0_8] : memref<16x64xf32, #tpu.memory_space<vmem>>, vector<16x64xf32>
    %12 = tpu.iota {dimensions = array<i32: 0>} : vector<8x8xi32>
    %13 = tpu.iota {dimensions = array<i32: 1>} : vector<8x8xi32>
    %14 = arith.cmpi sle, %13, %12 : vector<8x8xi32>
    %c0_9 = arith.constant 0 : index
    %c0_10 = arith.constant 0 : index
    %c0_11 = arith.constant 0 : index
    %15 = vector.load %arg5[%c0_9, %c0_10, %c0_11] : memref<2x1x128xf32, #tpu.memory_space<vmem>>, vector<1x1x128xf32>
    %16 = vector.shape_cast %15 : vector<1x1x128xf32> to vector<1x128xf32>
    %17 = arith.mulf %9, %9 : vector<16x128xf32>
    %cst_12 = arith.constant dense<0.000000e+00> : vector<16xf32>
    %18 = vector.multi_reduction <add>, %17, %cst_12 [1] : vector<16x128xf32> to vector<16xf32>
    %19 = vector.shape_cast %18 : vector<16xf32> to vector<16x1xf32>
    %cst_13 = arith.constant 1.280000e+02 : f32
    %20 = vector.broadcast %cst_13 : f32 to vector<16x1xf32>
    %21 = arith.divf %19, %20 : vector<16x1xf32>
    %cst_14 = arith.constant 9.99999997E-7 : f32
    %22 = vector.broadcast %cst_14 : f32 to vector<16x1xf32>
    %23 = arith.addf %21, %22 : vector<16x1xf32>
    %24 = math.rsqrt %23 : vector<16x1xf32>
    %25 = vector.broadcast %24 : vector<16x1xf32> to vector<16x128xf32>
    %26 = arith.mulf %9, %25 : vector<16x128xf32>
    %27 = vector.broadcast %16 : vector<1x128xf32> to vector<16x128xf32>
    %28 = arith.mulf %26, %27 : vector<16x128xf32>
    %29 = arith.truncf %28 : vector<16x128xf32> to vector<16x128xbf16>
    %c0_15 = arith.constant 0 : index
    %c0_16 = arith.constant 0 : index
    %c0_17 = arith.constant 0 : index
    %30 = vector.load %arg6[%c0_15, %c0_16, %c0_17] : memref<2x128x384xbf16, #tpu.memory_space<vmem>>, vector<1x128x384xbf16>
    %31 = vector.shape_cast %30 : vector<1x128x384xbf16> to vector<128x384xbf16>
    %cst_18 = arith.constant dense<0.000000e+00> : vector<16x384xf32>
    %32 = tpu.matmul %29, %31, %cst_18 {dimension_numbers = #tpu.dot_dimension_numbers<[1], [0], [0], [1], [0, 0, 1, 1], [], []>} : vector<16x128xbf16>, vector<128x384xbf16>, vector<16x384xf32> -> vector<16x384xf32>
    %33 = vector.extract_strided_slice %32 {offsets = [0, 0], sizes = [16, 64], strides = [1, 1]} : vector<16x384xf32> to vector<16x64xf32>
    %34 = vector.extract_strided_slice %32 {offsets = [0, 64], sizes = [16, 64], strides = [1, 1]} : vector<16x384xf32> to vector<16x64xf32>
    %35 = vector.extract_strided_slice %32 {offsets = [0, 128], sizes = [16, 64], strides = [1, 1]} : vector<16x384xf32> to vector<16x64xf32>
    %36 = vector.extract_strided_slice %32 {offsets = [0, 192], sizes = [16, 64], strides = [1, 1]} : vector<16x384xf32> to vector<16x64xf32>
    %37 = vector.extract_strided_slice %32 {offsets = [0, 256], sizes = [16, 128], strides = [1, 1]} : vector<16x384xf32> to vector<16x128xf32>
    %38 = arith.truncf %37 : vector<16x128xf32> to vector<16x128xbf16>
    %39 = arith.mulf %33, %10 : vector<16x64xf32>
    %40 = arith.mulf %34, %11 : vector<16x64xf32>
    %41 = arith.subf %39, %40 : vector<16x64xf32>
    %42 = arith.truncf %41 : vector<16x64xf32> to vector<16x64xbf16>
    %43 = arith.mulf %34, %10 : vector<16x64xf32>
    %44 = arith.mulf %33, %11 : vector<16x64xf32>
    %45 = arith.addf %43, %44 : vector<16x64xf32>
    %46 = arith.truncf %45 : vector<16x64xf32> to vector<16x64xbf16>
    %47 = arith.mulf %35, %10 : vector<16x64xf32>
    %48 = arith.mulf %36, %11 : vector<16x64xf32>
    %49 = arith.subf %47, %48 : vector<16x64xf32>
    %50 = arith.truncf %49 : vector<16x64xf32> to vector<16x64xbf16>
    %51 = arith.mulf %36, %10 : vector<16x64xf32>
    %52 = arith.mulf %35, %11 : vector<16x64xf32>
    %53 = arith.addf %51, %52 : vector<16x64xf32>
    %54 = arith.truncf %53 : vector<16x64xf32> to vector<16x64xbf16>
    %55 = vector.extract_strided_slice %42 {offsets = [0, 0], sizes = [8, 16], strides = [1, 1]} : vector<16x64xbf16> to vector<8x16xbf16>
    %56 = vector.extract_strided_slice %50 {offsets = [0, 0], sizes = [8, 16], strides = [1, 1]} : vector<16x64xbf16> to vector<8x16xbf16>
    %cst_19 = arith.constant dense<0.000000e+00> : vector<8x8xf32>
    %57 = tpu.matmul %55, %56, %cst_19 {dimension_numbers = #tpu.dot_dimension_numbers<[1], [1], [0], [0], [0, 0, 1, 0], [], []>} : vector<8x16xbf16>, vector<8x16xbf16>, vector<8x8xf32> -> vector<8x8xf32>
    %58 = vector.extract_strided_slice %46 {offsets = [0, 0], sizes = [8, 16], strides = [1, 1]} : vector<16x64xbf16> to vector<8x16xbf16>
    %59 = vector.extract_strided_slice %54 {offsets = [0, 0], sizes = [8, 16], strides = [1, 1]} : vector<16x64xbf16> to vector<8x16xbf16>
    %cst_20 = arith.constant dense<0.000000e+00> : vector<8x8xf32>
    %60 = tpu.matmul %58, %59, %cst_20 {dimension_numbers = #tpu.dot_dimension_numbers<[1], [1], [0], [0], [0, 0, 1, 0], [], []>} : vector<8x16xbf16>, vector<8x16xbf16>, vector<8x8xf32> -> vector<8x8xf32>
    %61 = arith.addf %57, %60 : vector<8x8xf32>
    %cst_21 = arith.constant 0.176776692 : f32
    %62 = vector.broadcast %cst_21 : f32 to vector<8x8xf32>
    %63 = arith.mulf %61, %62 : vector<8x8xf32>
    %cst_22 = arith.constant -1.000000e+30 : f32
    %64 = vector.broadcast %cst_22 : f32 to vector<8x8xf32>
    %65 = arith.select %14, %63, %64 : vector<8x8xi1>, vector<8x8xf32>
    %cst_23 = arith.constant dense<0xFF800000> : vector<8xf32>
    %66 = vector.multi_reduction <maximumf>, %65, %cst_23 [1] : vector<8x8xf32> to vector<8xf32>
    %67 = vector.shape_cast %66 : vector<8xf32> to vector<8x1xf32>
    %68 = vector.broadcast %67 : vector<8x1xf32> to vector<8x8xf32>
    %69 = arith.subf %65, %68 : vector<8x8xf32>
    %70 = math.exp %69 : vector<8x8xf32>
    %cst_24 = arith.constant dense<0.000000e+00> : vector<8xf32>
    %71 = vector.multi_reduction <add>, %70, %cst_24 [1] : vector<8x8xf32> to vector<8xf32>
    %72 = vector.shape_cast %71 : vector<8xf32> to vector<8x1xf32>
    %73 = vector.extract_strided_slice %38 {offsets = [0, 0], sizes = [8, 32], strides = [1, 1]} : vector<16x128xbf16> to vector<8x32xbf16>
    %74 = arith.truncf %70 : vector<8x8xf32> to vector<8x8xbf16>
    %cst_25 = arith.constant dense<0.000000e+00> : vector<8x32xf32>
    %75 = tpu.matmul %74, %73, %cst_25 {dimension_numbers = #tpu.dot_dimension_numbers<[1], [0], [0], [1], [0, 0, 1, 1], [], []>} : vector<8x8xbf16>, vector<8x32xbf16>, vector<8x32xf32> -> vector<8x32xf32>
    %76 = tpu.reciprocal %72 {approx = true} : vector<8x1xf32> -> vector<8x1xf32>
    %77 = vector.broadcast %76 : vector<8x1xf32> to vector<8x32xf32>
    %78 = arith.mulf %75, %77 : vector<8x32xf32>
    %79 = vector.extract_strided_slice %42 {offsets = [0, 16], sizes = [8, 16], strides = [1, 1]} : vector<16x64xbf16> to vector<8x16xbf16>
    %80 = vector.extract_strided_slice %50 {offsets = [0, 16], sizes = [8, 16], strides = [1, 1]} : vector<16x64xbf16> to vector<8x16xbf16>
    %cst_26 = arith.constant dense<0.000000e+00> : vector<8x8xf32>
    %81 = tpu.matmul %79, %80, %cst_26 {dimension_numbers = #tpu.dot_dimension_numbers<[1], [1], [0], [0], [0, 0, 1, 0], [], []>} : vector<8x16xbf16>, vector<8x16xbf16>, vector<8x8xf32> -> vector<8x8xf32>
    %82 = vector.extract_strided_slice %46 {offsets = [0, 16], sizes = [8, 16], strides = [1, 1]} : vector<16x64xbf16> to vector<8x16xbf16>
    %83 = vector.extract_strided_slice %54 {offsets = [0, 16], sizes = [8, 16], strides = [1, 1]} : vector<16x64xbf16> to vector<8x16xbf16>
    %cst_27 = arith.constant dense<0.000000e+00> : vector<8x8xf32>
    %84 = tpu.matmul %82, %83, %cst_27 {dimension_numbers = #tpu.dot_dimension_numbers<[1], [1], [0], [0], [0, 0, 1, 0], [], []>} : vector<8x16xbf16>, vector<8x16xbf16>, vector<8x8xf32> -> vector<8x8xf32>
    %85 = arith.addf %81, %84 : vector<8x8xf32>
    %cst_28 = arith.constant 0.176776692 : f32
    %86 = vector.broadcast %cst_28 : f32 to vector<8x8xf32>
    %87 = arith.mulf %85, %86 : vector<8x8xf32>
    %cst_29 = arith.constant -1.000000e+30 : f32
    %88 = vector.broadcast %cst_29 : f32 to vector<8x8xf32>
    %89 = arith.select %14, %87, %88 : vector<8x8xi1>, vector<8x8xf32>
    %cst_30 = arith.constant dense<0xFF800000> : vector<8xf32>
    %90 = vector.multi_reduction <maximumf>, %89, %cst_30 [1] : vector<8x8xf32> to vector<8xf32>
    %91 = vector.shape_cast %90 : vector<8xf32> to vector<8x1xf32>
    %92 = vector.broadcast %91 : vector<8x1xf32> to vector<8x8xf32>
    %93 = arith.subf %89, %92 : vector<8x8xf32>
    %94 = math.exp %93 : vector<8x8xf32>
    %cst_31 = arith.constant dense<0.000000e+00> : vector<8xf32>
    %95 = vector.multi_reduction <add>, %94, %cst_31 [1] : vector<8x8xf32> to vector<8xf32>
    %96 = vector.shape_cast %95 : vector<8xf32> to vector<8x1xf32>
    %97 = vector.extract_strided_slice %38 {offsets = [0, 32], sizes = [8, 32], strides = [1, 1]} : vector<16x128xbf16> to vector<8x32xbf16>
    %98 = arith.truncf %94 : vector<8x8xf32> to vector<8x8xbf16>
    %cst_32 = arith.constant dense<0.000000e+00> : vector<8x32xf32>
    %99 = tpu.matmul %98, %97, %cst_32 {dimension_numbers = #tpu.dot_dimension_numbers<[1], [0], [0], [1], [0, 0, 1, 1], [], []>} : vector<8x8xbf16>, vector<8x32xbf16>, vector<8x32xf32> -> vector<8x32xf32>
    %100 = tpu.reciprocal %96 {approx = true} : vector<8x1xf32> -> vector<8x1xf32>
    %101 = vector.broadcast %100 : vector<8x1xf32> to vector<8x32xf32>
    %102 = arith.mulf %99, %101 : vector<8x32xf32>
    %103 = vector.extract_strided_slice %42 {offsets = [0, 32], sizes = [8, 16], strides = [1, 1]} : vector<16x64xbf16> to vector<8x16xbf16>
    %104 = vector.extract_strided_slice %50 {offsets = [0, 32], sizes = [8, 16], strides = [1, 1]} : vector<16x64xbf16> to vector<8x16xbf16>
    %cst_33 = arith.constant dense<0.000000e+00> : vector<8x8xf32>
    %105 = tpu.matmul %103, %104, %cst_33 {dimension_numbers = #tpu.dot_dimension_numbers<[1], [1], [0], [0], [0, 0, 1, 0], [], []>} : vector<8x16xbf16>, vector<8x16xbf16>, vector<8x8xf32> -> vector<8x8xf32>
    %106 = vector.extract_strided_slice %46 {offsets = [0, 32], sizes = [8, 16], strides = [1, 1]} : vector<16x64xbf16> to vector<8x16xbf16>
    %107 = vector.extract_strided_slice %54 {offsets = [0, 32], sizes = [8, 16], strides = [1, 1]} : vector<16x64xbf16> to vector<8x16xbf16>
    %cst_34 = arith.constant dense<0.000000e+00> : vector<8x8xf32>
    %108 = tpu.matmul %106, %107, %cst_34 {dimension_numbers = #tpu.dot_dimension_numbers<[1], [1], [0], [0], [0, 0, 1, 0], [], []>} : vector<8x16xbf16>, vector<8x16xbf16>, vector<8x8xf32> -> vector<8x8xf32>
    %109 = arith.addf %105, %108 : vector<8x8xf32>
    %cst_35 = arith.constant 0.176776692 : f32
    %110 = vector.broadcast %cst_35 : f32 to vector<8x8xf32>
    %111 = arith.mulf %109, %110 : vector<8x8xf32>
    %cst_36 = arith.constant -1.000000e+30 : f32
    %112 = vector.broadcast %cst_36 : f32 to vector<8x8xf32>
    %113 = arith.select %14, %111, %112 : vector<8x8xi1>, vector<8x8xf32>
    %cst_37 = arith.constant dense<0xFF800000> : vector<8xf32>
    %114 = vector.multi_reduction <maximumf>, %113, %cst_37 [1] : vector<8x8xf32> to vector<8xf32>
    %115 = vector.shape_cast %114 : vector<8xf32> to vector<8x1xf32>
    %116 = vector.broadcast %115 : vector<8x1xf32> to vector<8x8xf32>
    %117 = arith.subf %113, %116 : vector<8x8xf32>
    %118 = math.exp %117 : vector<8x8xf32>
    %cst_38 = arith.constant dense<0.000000e+00> : vector<8xf32>
    %119 = vector.multi_reduction <add>, %118, %cst_38 [1] : vector<8x8xf32> to vector<8xf32>
    %120 = vector.shape_cast %119 : vector<8xf32> to vector<8x1xf32>
    %121 = vector.extract_strided_slice %38 {offsets = [0, 64], sizes = [8, 32], strides = [1, 1]} : vector<16x128xbf16> to vector<8x32xbf16>
    %122 = arith.truncf %118 : vector<8x8xf32> to vector<8x8xbf16>
    %cst_39 = arith.constant dense<0.000000e+00> : vector<8x32xf32>
    %123 = tpu.matmul %122, %121, %cst_39 {dimension_numbers = #tpu.dot_dimension_numbers<[1], [0], [0], [1], [0, 0, 1, 1], [], []>} : vector<8x8xbf16>, vector<8x32xbf16>, vector<8x32xf32> -> vector<8x32xf32>
    %124 = tpu.reciprocal %120 {approx = true} : vector<8x1xf32> -> vector<8x1xf32>
    %125 = vector.broadcast %124 : vector<8x1xf32> to vector<8x32xf32>
    %126 = arith.mulf %123, %125 : vector<8x32xf32>
    %127 = vector.extract_strided_slice %42 {offsets = [0, 48], sizes = [8, 16], strides = [1, 1]} : vector<16x64xbf16> to vector<8x16xbf16>
    %128 = vector.extract_strided_slice %50 {offsets = [0, 48], sizes = [8, 16], strides = [1, 1]} : vector<16x64xbf16> to vector<8x16xbf16>
    %cst_40 = arith.constant dense<0.000000e+00> : vector<8x8xf32>
    %129 = tpu.matmul %127, %128, %cst_40 {dimension_numbers = #tpu.dot_dimension_numbers<[1], [1], [0], [0], [0, 0, 1, 0], [], []>} : vector<8x16xbf16>, vector<8x16xbf16>, vector<8x8xf32> -> vector<8x8xf32>
    %130 = vector.extract_strided_slice %46 {offsets = [0, 48], sizes = [8, 16], strides = [1, 1]} : vector<16x64xbf16> to vector<8x16xbf16>
    %131 = vector.extract_strided_slice %54 {offsets = [0, 48], sizes = [8, 16], strides = [1, 1]} : vector<16x64xbf16> to vector<8x16xbf16>
    %cst_41 = arith.constant dense<0.000000e+00> : vector<8x8xf32>
    %132 = tpu.matmul %130, %131, %cst_41 {dimension_numbers = #tpu.dot_dimension_numbers<[1], [1], [0], [0], [0, 0, 1, 0], [], []>} : vector<8x16xbf16>, vector<8x16xbf16>, vector<8x8xf32> -> vector<8x8xf32>
    %133 = arith.addf %129, %132 : vector<8x8xf32>
    %cst_42 = arith.constant 0.176776692 : f32
    %134 = vector.broadcast %cst_42 : f32 to vector<8x8xf32>
    %135 = arith.mulf %133, %134 : vector<8x8xf32>
    %cst_43 = arith.constant -1.000000e+30 : f32
    %136 = vector.broadcast %cst_43 : f32 to vector<8x8xf32>
    %137 = arith.select %14, %135, %136 : vector<8x8xi1>, vector<8x8xf32>
    %cst_44 = arith.constant dense<0xFF800000> : vector<8xf32>
    %138 = vector.multi_reduction <maximumf>, %137, %cst_44 [1] : vector<8x8xf32> to vector<8xf32>
    %139 = vector.shape_cast %138 : vector<8xf32> to vector<8x1xf32>
    %140 = vector.broadcast %139 : vector<8x1xf32> to vector<8x8xf32>
    %141 = arith.subf %137, %140 : vector<8x8xf32>
    %142 = math.exp %141 : vector<8x8xf32>
    %cst_45 = arith.constant dense<0.000000e+00> : vector<8xf32>
    %143 = vector.multi_reduction <add>, %142, %cst_45 [1] : vector<8x8xf32> to vector<8xf32>
    %144 = vector.shape_cast %143 : vector<8xf32> to vector<8x1xf32>
    %145 = vector.extract_strided_slice %38 {offsets = [0, 96], sizes = [8, 32], strides = [1, 1]} : vector<16x128xbf16> to vector<8x32xbf16>
    %146 = arith.truncf %142 : vector<8x8xf32> to vector<8x8xbf16>
    %cst_46 = arith.constant dense<0.000000e+00> : vector<8x32xf32>
    %147 = tpu.matmul %146, %145, %cst_46 {dimension_numbers = #tpu.dot_dimension_numbers<[1], [0], [0], [1], [0, 0, 1, 1], [], []>} : vector<8x8xbf16>, vector<8x32xbf16>, vector<8x32xf32> -> vector<8x32xf32>
    %148 = tpu.reciprocal %144 {approx = true} : vector<8x1xf32> -> vector<8x1xf32>
    %149 = vector.broadcast %148 : vector<8x1xf32> to vector<8x32xf32>
    %150 = arith.mulf %147, %149 : vector<8x32xf32>
    %151 = tpu.concatenate %78, %102, %126, %150 in 1 : vector<8x32xf32>, vector<8x32xf32>, vector<8x32xf32>, vector<8x32xf32> -> vector<8x128xf32>
    %152 = vector.extract_strided_slice %42 {offsets = [8, 0], sizes = [8, 16], strides = [1, 1]} : vector<16x64xbf16> to vector<8x16xbf16>
    %153 = vector.extract_strided_slice %50 {offsets = [8, 0], sizes = [8, 16], strides = [1, 1]} : vector<16x64xbf16> to vector<8x16xbf16>
    %cst_47 = arith.constant dense<0.000000e+00> : vector<8x8xf32>
    %154 = tpu.matmul %152, %153, %cst_47 {dimension_numbers = #tpu.dot_dimension_numbers<[1], [1], [0], [0], [0, 0, 1, 0], [], []>} : vector<8x16xbf16>, vector<8x16xbf16>, vector<8x8xf32> -> vector<8x8xf32>
    %155 = vector.extract_strided_slice %46 {offsets = [8, 0], sizes = [8, 16], strides = [1, 1]} : vector<16x64xbf16> to vector<8x16xbf16>
    %156 = vector.extract_strided_slice %54 {offsets = [8, 0], sizes = [8, 16], strides = [1, 1]} : vector<16x64xbf16> to vector<8x16xbf16>
    %cst_48 = arith.constant dense<0.000000e+00> : vector<8x8xf32>
    %157 = tpu.matmul %155, %156, %cst_48 {dimension_numbers = #tpu.dot_dimension_numbers<[1], [1], [0], [0], [0, 0, 1, 0], [], []>} : vector<8x16xbf16>, vector<8x16xbf16>, vector<8x8xf32> -> vector<8x8xf32>
    %158 = arith.addf %154, %157 : vector<8x8xf32>
    %cst_49 = arith.constant 0.176776692 : f32
    %159 = vector.broadcast %cst_49 : f32 to vector<8x8xf32>
    %160 = arith.mulf %158, %159 : vector<8x8xf32>
    %cst_50 = arith.constant -1.000000e+30 : f32
    %161 = vector.broadcast %cst_50 : f32 to vector<8x8xf32>
    %162 = arith.select %14, %160, %161 : vector<8x8xi1>, vector<8x8xf32>
    %cst_51 = arith.constant dense<0xFF800000> : vector<8xf32>
    %163 = vector.multi_reduction <maximumf>, %162, %cst_51 [1] : vector<8x8xf32> to vector<8xf32>
    %164 = vector.shape_cast %163 : vector<8xf32> to vector<8x1xf32>
    %165 = vector.broadcast %164 : vector<8x1xf32> to vector<8x8xf32>
    %166 = arith.subf %162, %165 : vector<8x8xf32>
    %167 = math.exp %166 : vector<8x8xf32>
    %cst_52 = arith.constant dense<0.000000e+00> : vector<8xf32>
    %168 = vector.multi_reduction <add>, %167, %cst_52 [1] : vector<8x8xf32> to vector<8xf32>
    %169 = vector.shape_cast %168 : vector<8xf32> to vector<8x1xf32>
    %170 = vector.extract_strided_slice %38 {offsets = [8, 0], sizes = [8, 32], strides = [1, 1]} : vector<16x128xbf16> to vector<8x32xbf16>
    %171 = arith.truncf %167 : vector<8x8xf32> to vector<8x8xbf16>
    %cst_53 = arith.constant dense<0.000000e+00> : vector<8x32xf32>
    %172 = tpu.matmul %171, %170, %cst_53 {dimension_numbers = #tpu.dot_dimension_numbers<[1], [0], [0], [1], [0, 0, 1, 1], [], []>} : vector<8x8xbf16>, vector<8x32xbf16>, vector<8x32xf32> -> vector<8x32xf32>
    %173 = tpu.reciprocal %169 {approx = true} : vector<8x1xf32> -> vector<8x1xf32>
    %174 = vector.broadcast %173 : vector<8x1xf32> to vector<8x32xf32>
    %175 = arith.mulf %172, %174 : vector<8x32xf32>
    %176 = vector.extract_strided_slice %42 {offsets = [8, 16], sizes = [8, 16], strides = [1, 1]} : vector<16x64xbf16> to vector<8x16xbf16>
    %177 = vector.extract_strided_slice %50 {offsets = [8, 16], sizes = [8, 16], strides = [1, 1]} : vector<16x64xbf16> to vector<8x16xbf16>
    %cst_54 = arith.constant dense<0.000000e+00> : vector<8x8xf32>
    %178 = tpu.matmul %176, %177, %cst_54 {dimension_numbers = #tpu.dot_dimension_numbers<[1], [1], [0], [0], [0, 0, 1, 0], [], []>} : vector<8x16xbf16>, vector<8x16xbf16>, vector<8x8xf32> -> vector<8x8xf32>
    %179 = vector.extract_strided_slice %46 {offsets = [8, 16], sizes = [8, 16], strides = [1, 1]} : vector<16x64xbf16> to vector<8x16xbf16>
    %180 = vector.extract_strided_slice %54 {offsets = [8, 16], sizes = [8, 16], strides = [1, 1]} : vector<16x64xbf16> to vector<8x16xbf16>
    %cst_55 = arith.constant dense<0.000000e+00> : vector<8x8xf32>
    %181 = tpu.matmul %179, %180, %cst_55 {dimension_numbers = #tpu.dot_dimension_numbers<[1], [1], [0], [0], [0, 0, 1, 0], [], []>} : vector<8x16xbf16>, vector<8x16xbf16>, vector<8x8xf32> -> vector<8x8xf32>
    %182 = arith.addf %178, %181 : vector<8x8xf32>
    %cst_56 = arith.constant 0.176776692 : f32
    %183 = vector.broadcast %cst_56 : f32 to vector<8x8xf32>
    %184 = arith.mulf %182, %183 : vector<8x8xf32>
    %cst_57 = arith.constant -1.000000e+30 : f32
    %185 = vector.broadcast %cst_57 : f32 to vector<8x8xf32>
    %186 = arith.select %14, %184, %185 : vector<8x8xi1>, vector<8x8xf32>
    %cst_58 = arith.constant dense<0xFF800000> : vector<8xf32>
    %187 = vector.multi_reduction <maximumf>, %186, %cst_58 [1] : vector<8x8xf32> to vector<8xf32>
    %188 = vector.shape_cast %187 : vector<8xf32> to vector<8x1xf32>
    %189 = vector.broadcast %188 : vector<8x1xf32> to vector<8x8xf32>
    %190 = arith.subf %186, %189 : vector<8x8xf32>
    %191 = math.exp %190 : vector<8x8xf32>
    %cst_59 = arith.constant dense<0.000000e+00> : vector<8xf32>
    %192 = vector.multi_reduction <add>, %191, %cst_59 [1] : vector<8x8xf32> to vector<8xf32>
    %193 = vector.shape_cast %192 : vector<8xf32> to vector<8x1xf32>
    %194 = vector.extract_strided_slice %38 {offsets = [8, 32], sizes = [8, 32], strides = [1, 1]} : vector<16x128xbf16> to vector<8x32xbf16>
    %195 = arith.truncf %191 : vector<8x8xf32> to vector<8x8xbf16>
    %cst_60 = arith.constant dense<0.000000e+00> : vector<8x32xf32>
    %196 = tpu.matmul %195, %194, %cst_60 {dimension_numbers = #tpu.dot_dimension_numbers<[1], [0], [0], [1], [0, 0, 1, 1], [], []>} : vector<8x8xbf16>, vector<8x32xbf16>, vector<8x32xf32> -> vector<8x32xf32>
    %197 = tpu.reciprocal %193 {approx = true} : vector<8x1xf32> -> vector<8x1xf32>
    %198 = vector.broadcast %197 : vector<8x1xf32> to vector<8x32xf32>
    %199 = arith.mulf %196, %198 : vector<8x32xf32>
    %200 = vector.extract_strided_slice %42 {offsets = [8, 32], sizes = [8, 16], strides = [1, 1]} : vector<16x64xbf16> to vector<8x16xbf16>
    %201 = vector.extract_strided_slice %50 {offsets = [8, 32], sizes = [8, 16], strides = [1, 1]} : vector<16x64xbf16> to vector<8x16xbf16>
    %cst_61 = arith.constant dense<0.000000e+00> : vector<8x8xf32>
    %202 = tpu.matmul %200, %201, %cst_61 {dimension_numbers = #tpu.dot_dimension_numbers<[1], [1], [0], [0], [0, 0, 1, 0], [], []>} : vector<8x16xbf16>, vector<8x16xbf16>, vector<8x8xf32> -> vector<8x8xf32>
    %203 = vector.extract_strided_slice %46 {offsets = [8, 32], sizes = [8, 16], strides = [1, 1]} : vector<16x64xbf16> to vector<8x16xbf16>
    %204 = vector.extract_strided_slice %54 {offsets = [8, 32], sizes = [8, 16], strides = [1, 1]} : vector<16x64xbf16> to vector<8x16xbf16>
    %cst_62 = arith.constant dense<0.000000e+00> : vector<8x8xf32>
    %205 = tpu.matmul %203, %204, %cst_62 {dimension_numbers = #tpu.dot_dimension_numbers<[1], [1], [0], [0], [0, 0, 1, 0], [], []>} : vector<8x16xbf16>, vector<8x16xbf16>, vector<8x8xf32> -> vector<8x8xf32>
    %206 = arith.addf %202, %205 : vector<8x8xf32>
    %cst_63 = arith.constant 0.176776692 : f32
    %207 = vector.broadcast %cst_63 : f32 to vector<8x8xf32>
    %208 = arith.mulf %206, %207 : vector<8x8xf32>
    %cst_64 = arith.constant -1.000000e+30 : f32
    %209 = vector.broadcast %cst_64 : f32 to vector<8x8xf32>
    %210 = arith.select %14, %208, %209 : vector<8x8xi1>, vector<8x8xf32>
    %cst_65 = arith.constant dense<0xFF800000> : vector<8xf32>
    %211 = vector.multi_reduction <maximumf>, %210, %cst_65 [1] : vector<8x8xf32> to vector<8xf32>
    %212 = vector.shape_cast %211 : vector<8xf32> to vector<8x1xf32>
    %213 = vector.broadcast %212 : vector<8x1xf32> to vector<8x8xf32>
    %214 = arith.subf %210, %213 : vector<8x8xf32>
    %215 = math.exp %214 : vector<8x8xf32>
    %cst_66 = arith.constant dense<0.000000e+00> : vector<8xf32>
    %216 = vector.multi_reduction <add>, %215, %cst_66 [1] : vector<8x8xf32> to vector<8xf32>
    %217 = vector.shape_cast %216 : vector<8xf32> to vector<8x1xf32>
    %218 = vector.extract_strided_slice %38 {offsets = [8, 64], sizes = [8, 32], strides = [1, 1]} : vector<16x128xbf16> to vector<8x32xbf16>
    %219 = arith.truncf %215 : vector<8x8xf32> to vector<8x8xbf16>
    %cst_67 = arith.constant dense<0.000000e+00> : vector<8x32xf32>
    %220 = tpu.matmul %219, %218, %cst_67 {dimension_numbers = #tpu.dot_dimension_numbers<[1], [0], [0], [1], [0, 0, 1, 1], [], []>} : vector<8x8xbf16>, vector<8x32xbf16>, vector<8x32xf32> -> vector<8x32xf32>
    %221 = tpu.reciprocal %217 {approx = true} : vector<8x1xf32> -> vector<8x1xf32>
    %222 = vector.broadcast %221 : vector<8x1xf32> to vector<8x32xf32>
    %223 = arith.mulf %220, %222 : vector<8x32xf32>
    %224 = vector.extract_strided_slice %42 {offsets = [8, 48], sizes = [8, 16], strides = [1, 1]} : vector<16x64xbf16> to vector<8x16xbf16>
    %225 = vector.extract_strided_slice %50 {offsets = [8, 48], sizes = [8, 16], strides = [1, 1]} : vector<16x64xbf16> to vector<8x16xbf16>
    %cst_68 = arith.constant dense<0.000000e+00> : vector<8x8xf32>
    %226 = tpu.matmul %224, %225, %cst_68 {dimension_numbers = #tpu.dot_dimension_numbers<[1], [1], [0], [0], [0, 0, 1, 0], [], []>} : vector<8x16xbf16>, vector<8x16xbf16>, vector<8x8xf32> -> vector<8x8xf32>
    %227 = vector.extract_strided_slice %46 {offsets = [8, 48], sizes = [8, 16], strides = [1, 1]} : vector<16x64xbf16> to vector<8x16xbf16>
    %228 = vector.extract_strided_slice %54 {offsets = [8, 48], sizes = [8, 16], strides = [1, 1]} : vector<16x64xbf16> to vector<8x16xbf16>
    %cst_69 = arith.constant dense<0.000000e+00> : vector<8x8xf32>
    %229 = tpu.matmul %227, %228, %cst_69 {dimension_numbers = #tpu.dot_dimension_numbers<[1], [1], [0], [0], [0, 0, 1, 0], [], []>} : vector<8x16xbf16>, vector<8x16xbf16>, vector<8x8xf32> -> vector<8x8xf32>
    %230 = arith.addf %226, %229 : vector<8x8xf32>
    %cst_70 = arith.constant 0.176776692 : f32
    %231 = vector.broadcast %cst_70 : f32 to vector<8x8xf32>
    %232 = arith.mulf %230, %231 : vector<8x8xf32>
    %cst_71 = arith.constant -1.000000e+30 : f32
    %233 = vector.broadcast %cst_71 : f32 to vector<8x8xf32>
    %234 = arith.select %14, %232, %233 : vector<8x8xi1>, vector<8x8xf32>
    %cst_72 = arith.constant dense<0xFF800000> : vector<8xf32>
    %235 = vector.multi_reduction <maximumf>, %234, %cst_72 [1] : vector<8x8xf32> to vector<8xf32>
    %236 = vector.shape_cast %235 : vector<8xf32> to vector<8x1xf32>
    %237 = vector.broadcast %236 : vector<8x1xf32> to vector<8x8xf32>
    %238 = arith.subf %234, %237 : vector<8x8xf32>
    %239 = math.exp %238 : vector<8x8xf32>
    %cst_73 = arith.constant dense<0.000000e+00> : vector<8xf32>
    %240 = vector.multi_reduction <add>, %239, %cst_73 [1] : vector<8x8xf32> to vector<8xf32>
    %241 = vector.shape_cast %240 : vector<8xf32> to vector<8x1xf32>
    %242 = vector.extract_strided_slice %38 {offsets = [8, 96], sizes = [8, 32], strides = [1, 1]} : vector<16x128xbf16> to vector<8x32xbf16>
    %243 = arith.truncf %239 : vector<8x8xf32> to vector<8x8xbf16>
    %cst_74 = arith.constant dense<0.000000e+00> : vector<8x32xf32>
    %244 = tpu.matmul %243, %242, %cst_74 {dimension_numbers = #tpu.dot_dimension_numbers<[1], [0], [0], [1], [0, 0, 1, 1], [], []>} : vector<8x8xbf16>, vector<8x32xbf16>, vector<8x32xf32> -> vector<8x32xf32>
    %245 = tpu.reciprocal %241 {approx = true} : vector<8x1xf32> -> vector<8x1xf32>
    %246 = vector.broadcast %245 : vector<8x1xf32> to vector<8x32xf32>
    %247 = arith.mulf %244, %246 : vector<8x32xf32>
    %248 = tpu.concatenate %175, %199, %223, %247 in 1 : vector<8x32xf32>, vector<8x32xf32>, vector<8x32xf32>, vector<8x32xf32> -> vector<8x128xf32>
    %249 = tpu.concatenate %151, %248 in 0 : vector<8x128xf32>, vector<8x128xf32> -> vector<16x128xf32>
    %250 = arith.truncf %249 : vector<16x128xf32> to vector<16x128xbf16>
    %c0_75 = arith.constant 0 : index
    %c0_76 = arith.constant 0 : index
    %c0_77 = arith.constant 0 : index
    %251 = vector.load %arg7[%c0_75, %c0_76, %c0_77] : memref<2x128x128xbf16, #tpu.memory_space<vmem>>, vector<1x128x128xbf16>
    %252 = vector.shape_cast %251 : vector<1x128x128xbf16> to vector<128x128xbf16>
    %cst_78 = arith.constant dense<0.000000e+00> : vector<16x128xf32>
    %253 = tpu.matmul %250, %252, %cst_78 {dimension_numbers = #tpu.dot_dimension_numbers<[1], [0], [0], [1], [0, 0, 1, 1], [], []>} : vector<16x128xbf16>, vector<128x128xbf16>, vector<16x128xf32> -> vector<16x128xf32>
    %254 = arith.addf %9, %253 : vector<16x128xf32>
    %c0_79 = arith.constant 0 : index
    %c0_80 = arith.constant 0 : index
    %c0_81 = arith.constant 0 : index
    %255 = vector.load %arg8[%c0_79, %c0_80, %c0_81] : memref<2x1x128xf32, #tpu.memory_space<vmem>>, vector<1x1x128xf32>
    %256 = vector.shape_cast %255 : vector<1x1x128xf32> to vector<1x128xf32>
    %257 = arith.mulf %254, %254 : vector<16x128xf32>
    %cst_82 = arith.constant dense<0.000000e+00> : vector<16xf32>
    %258 = vector.multi_reduction <add>, %257, %cst_82 [1] : vector<16x128xf32> to vector<16xf32>
    %259 = vector.shape_cast %258 : vector<16xf32> to vector<16x1xf32>
    %cst_83 = arith.constant 1.280000e+02 : f32
    %260 = vector.broadcast %cst_83 : f32 to vector<16x1xf32>
    %261 = arith.divf %259, %260 : vector<16x1xf32>
    %cst_84 = arith.constant 9.99999997E-7 : f32
    %262 = vector.broadcast %cst_84 : f32 to vector<16x1xf32>
    %263 = arith.addf %261, %262 : vector<16x1xf32>
    %264 = math.rsqrt %263 : vector<16x1xf32>
    %265 = vector.broadcast %264 : vector<16x1xf32> to vector<16x128xf32>
    %266 = arith.mulf %254, %265 : vector<16x128xf32>
    %267 = vector.broadcast %256 : vector<1x128xf32> to vector<16x128xf32>
    %268 = arith.mulf %266, %267 : vector<16x128xf32>
    %269 = arith.truncf %268 : vector<16x128xf32> to vector<16x128xbf16>
    %c0_85 = arith.constant 0 : index
    %c0_86 = arith.constant 0 : index
    %c0_87 = arith.constant 0 : index
    %270 = vector.load %arg9[%c0_85, %c0_86, %c0_87] : memref<2x128x256xbf16, #tpu.memory_space<vmem>>, vector<1x128x256xbf16>
    %271 = vector.shape_cast %270 : vector<1x128x256xbf16> to vector<128x256xbf16>
    %cst_88 = arith.constant dense<0.000000e+00> : vector<16x256xf32>
    %272 = tpu.matmul %269, %271, %cst_88 {dimension_numbers = #tpu.dot_dimension_numbers<[1], [0], [0], [1], [0, 0, 1, 1], [], []>} : vector<16x128xbf16>, vector<128x256xbf16>, vector<16x256xf32> -> vector<16x256xf32>
    %c0_89 = arith.constant 0 : index
    %c0_90 = arith.constant 0 : index
    %c0_91 = arith.constant 0 : index
    %273 = vector.load %arg10[%c0_89, %c0_90, %c0_91] : memref<2x128x256xbf16, #tpu.memory_space<vmem>>, vector<1x128x256xbf16>
    %274 = vector.shape_cast %273 : vector<1x128x256xbf16> to vector<128x256xbf16>
    %cst_92 = arith.constant dense<0.000000e+00> : vector<16x256xf32>
    %275 = tpu.matmul %269, %274, %cst_92 {dimension_numbers = #tpu.dot_dimension_numbers<[1], [0], [0], [1], [0, 0, 1, 1], [], []>} : vector<16x128xbf16>, vector<128x256xbf16>, vector<16x256xf32> -> vector<16x256xf32>
    %276 = arith.negf %272 : vector<16x256xf32>
    %277 = math.exp %276 : vector<16x256xf32>
    %cst_93 = arith.constant 1.000000e+00 : f32
    %278 = vector.broadcast %cst_93 : f32 to vector<16x256xf32>
    %279 = arith.addf %278, %277 : vector<16x256xf32>
    %280 = arith.divf %278, %279 : vector<16x256xf32>
    %281 = arith.mulf %272, %280 : vector<16x256xf32>
    %282 = arith.mulf %281, %275 : vector<16x256xf32>
    %283 = arith.truncf %282 : vector<16x256xf32> to vector<16x256xbf16>
    %c0_94 = arith.constant 0 : index
    %c0_95 = arith.constant 0 : index
    %c0_96 = arith.constant 0 : index
    %284 = vector.load %arg11[%c0_94, %c0_95, %c0_96] : memref<2x256x128xbf16, #tpu.memory_space<vmem>>, vector<1x256x128xbf16>
    %285 = vector.shape_cast %284 : vector<1x256x128xbf16> to vector<256x128xbf16>
    %cst_97 = arith.constant dense<0.000000e+00> : vector<16x128xf32>
    %286 = tpu.matmul %283, %285, %cst_97 {dimension_numbers = #tpu.dot_dimension_numbers<[1], [0], [0], [1], [0, 0, 1, 1], [], []>} : vector<16x256xbf16>, vector<256x128xbf16>, vector<16x128xf32> -> vector<16x128xf32>
    %287 = arith.addf %254, %286 : vector<16x128xf32>
    %c1 = arith.constant 1 : index
    %c0_98 = arith.constant 0 : index
    %c0_99 = arith.constant 0 : index
    %288 = vector.load %arg5[%c1, %c0_98, %c0_99] : memref<2x1x128xf32, #tpu.memory_space<vmem>>, vector<1x1x128xf32>
    %289 = vector.shape_cast %288 : vector<1x1x128xf32> to vector<1x128xf32>
    %290 = arith.mulf %287, %287 : vector<16x128xf32>
    %cst_100 = arith.constant dense<0.000000e+00> : vector<16xf32>
    %291 = vector.multi_reduction <add>, %290, %cst_100 [1] : vector<16x128xf32> to vector<16xf32>
    %292 = vector.shape_cast %291 : vector<16xf32> to vector<16x1xf32>
    %cst_101 = arith.constant 1.280000e+02 : f32
    %293 = vector.broadcast %cst_101 : f32 to vector<16x1xf32>
    %294 = arith.divf %292, %293 : vector<16x1xf32>
    %cst_102 = arith.constant 9.99999997E-7 : f32
    %295 = vector.broadcast %cst_102 : f32 to vector<16x1xf32>
    %296 = arith.addf %294, %295 : vector<16x1xf32>
    %297 = math.rsqrt %296 : vector<16x1xf32>
    %298 = vector.broadcast %297 : vector<16x1xf32> to vector<16x128xf32>
    %299 = arith.mulf %287, %298 : vector<16x128xf32>
    %300 = vector.broadcast %289 : vector<1x128xf32> to vector<16x128xf32>
    %301 = arith.mulf %299, %300 : vector<16x128xf32>
    %302 = arith.truncf %301 : vector<16x128xf32> to vector<16x128xbf16>
    %c1_103 = arith.constant 1 : index
    %c0_104 = arith.constant 0 : index
    %c0_105 = arith.constant 0 : index
    %303 = vector.load %arg6[%c1_103, %c0_104, %c0_105] : memref<2x128x384xbf16, #tpu.memory_space<vmem>>, vector<1x128x384xbf16>
    %304 = vector.shape_cast %303 : vector<1x128x384xbf16> to vector<128x384xbf16>
    %cst_106 = arith.constant dense<0.000000e+00> : vector<16x384xf32>
    %305 = tpu.matmul %302, %304, %cst_106 {dimension_numbers = #tpu.dot_dimension_numbers<[1], [0], [0], [1], [0, 0, 1, 1], [], []>} : vector<16x128xbf16>, vector<128x384xbf16>, vector<16x384xf32> -> vector<16x384xf32>
    %306 = vector.extract_strided_slice %305 {offsets = [0, 0], sizes = [16, 64], strides = [1, 1]} : vector<16x384xf32> to vector<16x64xf32>
    %307 = vector.extract_strided_slice %305 {offsets = [0, 64], sizes = [16, 64], strides = [1, 1]} : vector<16x384xf32> to vector<16x64xf32>
    %308 = vector.extract_strided_slice %305 {offsets = [0, 128], sizes = [16, 64], strides = [1, 1]} : vector<16x384xf32> to vector<16x64xf32>
    %309 = vector.extract_strided_slice %305 {offsets = [0, 192], sizes = [16, 64], strides = [1, 1]} : vector<16x384xf32> to vector<16x64xf32>
    %310 = vector.extract_strided_slice %305 {offsets = [0, 256], sizes = [16, 128], strides = [1, 1]} : vector<16x384xf32> to vector<16x128xf32>
    %311 = arith.truncf %310 : vector<16x128xf32> to vector<16x128xbf16>
    %312 = arith.mulf %306, %10 : vector<16x64xf32>
    %313 = arith.mulf %307, %11 : vector<16x64xf32>
    %314 = arith.subf %312, %313 : vector<16x64xf32>
    %315 = arith.truncf %314 : vector<16x64xf32> to vector<16x64xbf16>
    %316 = arith.mulf %307, %10 : vector<16x64xf32>
    %317 = arith.mulf %306, %11 : vector<16x64xf32>
    %318 = arith.addf %316, %317 : vector<16x64xf32>
    %319 = arith.truncf %318 : vector<16x64xf32> to vector<16x64xbf16>
    %320 = arith.mulf %308, %10 : vector<16x64xf32>
    %321 = arith.mulf %309, %11 : vector<16x64xf32>
    %322 = arith.subf %320, %321 : vector<16x64xf32>
    %323 = arith.truncf %322 : vector<16x64xf32> to vector<16x64xbf16>
    %324 = arith.mulf %309, %10 : vector<16x64xf32>
    %325 = arith.mulf %308, %11 : vector<16x64xf32>
    %326 = arith.addf %324, %325 : vector<16x64xf32>
    %327 = arith.truncf %326 : vector<16x64xf32> to vector<16x64xbf16>
    %328 = vector.extract_strided_slice %315 {offsets = [0, 0], sizes = [8, 16], strides = [1, 1]} : vector<16x64xbf16> to vector<8x16xbf16>
    %329 = vector.extract_strided_slice %323 {offsets = [0, 0], sizes = [8, 16], strides = [1, 1]} : vector<16x64xbf16> to vector<8x16xbf16>
    %cst_107 = arith.constant dense<0.000000e+00> : vector<8x8xf32>
    %330 = tpu.matmul %328, %329, %cst_107 {dimension_numbers = #tpu.dot_dimension_numbers<[1], [1], [0], [0], [0, 0, 1, 0], [], []>} : vector<8x16xbf16>, vector<8x16xbf16>, vector<8x8xf32> -> vector<8x8xf32>
    %331 = vector.extract_strided_slice %319 {offsets = [0, 0], sizes = [8, 16], strides = [1, 1]} : vector<16x64xbf16> to vector<8x16xbf16>
    %332 = vector.extract_strided_slice %327 {offsets = [0, 0], sizes = [8, 16], strides = [1, 1]} : vector<16x64xbf16> to vector<8x16xbf16>
    %cst_108 = arith.constant dense<0.000000e+00> : vector<8x8xf32>
    %333 = tpu.matmul %331, %332, %cst_108 {dimension_numbers = #tpu.dot_dimension_numbers<[1], [1], [0], [0], [0, 0, 1, 0], [], []>} : vector<8x16xbf16>, vector<8x16xbf16>, vector<8x8xf32> -> vector<8x8xf32>
    %334 = arith.addf %330, %333 : vector<8x8xf32>
    %cst_109 = arith.constant 0.176776692 : f32
    %335 = vector.broadcast %cst_109 : f32 to vector<8x8xf32>
    %336 = arith.mulf %334, %335 : vector<8x8xf32>
    %cst_110 = arith.constant -1.000000e+30 : f32
    %337 = vector.broadcast %cst_110 : f32 to vector<8x8xf32>
    %338 = arith.select %14, %336, %337 : vector<8x8xi1>, vector<8x8xf32>
    %cst_111 = arith.constant dense<0xFF800000> : vector<8xf32>
    %339 = vector.multi_reduction <maximumf>, %338, %cst_111 [1] : vector<8x8xf32> to vector<8xf32>
    %340 = vector.shape_cast %339 : vector<8xf32> to vector<8x1xf32>
    %341 = vector.broadcast %340 : vector<8x1xf32> to vector<8x8xf32>
    %342 = arith.subf %338, %341 : vector<8x8xf32>
    %343 = math.exp %342 : vector<8x8xf32>
    %cst_112 = arith.constant dense<0.000000e+00> : vector<8xf32>
    %344 = vector.multi_reduction <add>, %343, %cst_112 [1] : vector<8x8xf32> to vector<8xf32>
    %345 = vector.shape_cast %344 : vector<8xf32> to vector<8x1xf32>
    %346 = vector.extract_strided_slice %311 {offsets = [0, 0], sizes = [8, 32], strides = [1, 1]} : vector<16x128xbf16> to vector<8x32xbf16>
    %347 = arith.truncf %343 : vector<8x8xf32> to vector<8x8xbf16>
    %cst_113 = arith.constant dense<0.000000e+00> : vector<8x32xf32>
    %348 = tpu.matmul %347, %346, %cst_113 {dimension_numbers = #tpu.dot_dimension_numbers<[1], [0], [0], [1], [0, 0, 1, 1], [], []>} : vector<8x8xbf16>, vector<8x32xbf16>, vector<8x32xf32> -> vector<8x32xf32>
    %349 = tpu.reciprocal %345 {approx = true} : vector<8x1xf32> -> vector<8x1xf32>
    %350 = vector.broadcast %349 : vector<8x1xf32> to vector<8x32xf32>
    %351 = arith.mulf %348, %350 : vector<8x32xf32>
    %352 = vector.extract_strided_slice %315 {offsets = [0, 16], sizes = [8, 16], strides = [1, 1]} : vector<16x64xbf16> to vector<8x16xbf16>
    %353 = vector.extract_strided_slice %323 {offsets = [0, 16], sizes = [8, 16], strides = [1, 1]} : vector<16x64xbf16> to vector<8x16xbf16>
    %cst_114 = arith.constant dense<0.000000e+00> : vector<8x8xf32>
    %354 = tpu.matmul %352, %353, %cst_114 {dimension_numbers = #tpu.dot_dimension_numbers<[1], [1], [0], [0], [0, 0, 1, 0], [], []>} : vector<8x16xbf16>, vector<8x16xbf16>, vector<8x8xf32> -> vector<8x8xf32>
    %355 = vector.extract_strided_slice %319 {offsets = [0, 16], sizes = [8, 16], strides = [1, 1]} : vector<16x64xbf16> to vector<8x16xbf16>
    %356 = vector.extract_strided_slice %327 {offsets = [0, 16], sizes = [8, 16], strides = [1, 1]} : vector<16x64xbf16> to vector<8x16xbf16>
    %cst_115 = arith.constant dense<0.000000e+00> : vector<8x8xf32>
    %357 = tpu.matmul %355, %356, %cst_115 {dimension_numbers = #tpu.dot_dimension_numbers<[1], [1], [0], [0], [0, 0, 1, 0], [], []>} : vector<8x16xbf16>, vector<8x16xbf16>, vector<8x8xf32> -> vector<8x8xf32>
    %358 = arith.addf %354, %357 : vector<8x8xf32>
    %cst_116 = arith.constant 0.176776692 : f32
    %359 = vector.broadcast %cst_116 : f32 to vector<8x8xf32>
    %360 = arith.mulf %358, %359 : vector<8x8xf32>
    %cst_117 = arith.constant -1.000000e+30 : f32
    %361 = vector.broadcast %cst_117 : f32 to vector<8x8xf32>
    %362 = arith.select %14, %360, %361 : vector<8x8xi1>, vector<8x8xf32>
    %cst_118 = arith.constant dense<0xFF800000> : vector<8xf32>
    %363 = vector.multi_reduction <maximumf>, %362, %cst_118 [1] : vector<8x8xf32> to vector<8xf32>
    %364 = vector.shape_cast %363 : vector<8xf32> to vector<8x1xf32>
    %365 = vector.broadcast %364 : vector<8x1xf32> to vector<8x8xf32>
    %366 = arith.subf %362, %365 : vector<8x8xf32>
    %367 = math.exp %366 : vector<8x8xf32>
    %cst_119 = arith.constant dense<0.000000e+00> : vector<8xf32>
    %368 = vector.multi_reduction <add>, %367, %cst_119 [1] : vector<8x8xf32> to vector<8xf32>
    %369 = vector.shape_cast %368 : vector<8xf32> to vector<8x1xf32>
    %370 = vector.extract_strided_slice %311 {offsets = [0, 32], sizes = [8, 32], strides = [1, 1]} : vector<16x128xbf16> to vector<8x32xbf16>
    %371 = arith.truncf %367 : vector<8x8xf32> to vector<8x8xbf16>
    %cst_120 = arith.constant dense<0.000000e+00> : vector<8x32xf32>
    %372 = tpu.matmul %371, %370, %cst_120 {dimension_numbers = #tpu.dot_dimension_numbers<[1], [0], [0], [1], [0, 0, 1, 1], [], []>} : vector<8x8xbf16>, vector<8x32xbf16>, vector<8x32xf32> -> vector<8x32xf32>
    %373 = tpu.reciprocal %369 {approx = true} : vector<8x1xf32> -> vector<8x1xf32>
    %374 = vector.broadcast %373 : vector<8x1xf32> to vector<8x32xf32>
    %375 = arith.mulf %372, %374 : vector<8x32xf32>
    %376 = vector.extract_strided_slice %315 {offsets = [0, 32], sizes = [8, 16], strides = [1, 1]} : vector<16x64xbf16> to vector<8x16xbf16>
    %377 = vector.extract_strided_slice %323 {offsets = [0, 32], sizes = [8, 16], strides = [1, 1]} : vector<16x64xbf16> to vector<8x16xbf16>
    %cst_121 = arith.constant dense<0.000000e+00> : vector<8x8xf32>
    %378 = tpu.matmul %376, %377, %cst_121 {dimension_numbers = #tpu.dot_dimension_numbers<[1], [1], [0], [0], [0, 0, 1, 0], [], []>} : vector<8x16xbf16>, vector<8x16xbf16>, vector<8x8xf32> -> vector<8x8xf32>
    %379 = vector.extract_strided_slice %319 {offsets = [0, 32], sizes = [8, 16], strides = [1, 1]} : vector<16x64xbf16> to vector<8x16xbf16>
    %380 = vector.extract_strided_slice %327 {offsets = [0, 32], sizes = [8, 16], strides = [1, 1]} : vector<16x64xbf16> to vector<8x16xbf16>
    %cst_122 = arith.constant dense<0.000000e+00> : vector<8x8xf32>
    %381 = tpu.matmul %379, %380, %cst_122 {dimension_numbers = #tpu.dot_dimension_numbers<[1], [1], [0], [0], [0, 0, 1, 0], [], []>} : vector<8x16xbf16>, vector<8x16xbf16>, vector<8x8xf32> -> vector<8x8xf32>
    %382 = arith.addf %378, %381 : vector<8x8xf32>
    %cst_123 = arith.constant 0.176776692 : f32
    %383 = vector.broadcast %cst_123 : f32 to vector<8x8xf32>
    %384 = arith.mulf %382, %383 : vector<8x8xf32>
    %cst_124 = arith.constant -1.000000e+30 : f32
    %385 = vector.broadcast %cst_124 : f32 to vector<8x8xf32>
    %386 = arith.select %14, %384, %385 : vector<8x8xi1>, vector<8x8xf32>
    %cst_125 = arith.constant dense<0xFF800000> : vector<8xf32>
    %387 = vector.multi_reduction <maximumf>, %386, %cst_125 [1] : vector<8x8xf32> to vector<8xf32>
    %388 = vector.shape_cast %387 : vector<8xf32> to vector<8x1xf32>
    %389 = vector.broadcast %388 : vector<8x1xf32> to vector<8x8xf32>
    %390 = arith.subf %386, %389 : vector<8x8xf32>
    %391 = math.exp %390 : vector<8x8xf32>
    %cst_126 = arith.constant dense<0.000000e+00> : vector<8xf32>
    %392 = vector.multi_reduction <add>, %391, %cst_126 [1] : vector<8x8xf32> to vector<8xf32>
    %393 = vector.shape_cast %392 : vector<8xf32> to vector<8x1xf32>
    %394 = vector.extract_strided_slice %311 {offsets = [0, 64], sizes = [8, 32], strides = [1, 1]} : vector<16x128xbf16> to vector<8x32xbf16>
    %395 = arith.truncf %391 : vector<8x8xf32> to vector<8x8xbf16>
    %cst_127 = arith.constant dense<0.000000e+00> : vector<8x32xf32>
    %396 = tpu.matmul %395, %394, %cst_127 {dimension_numbers = #tpu.dot_dimension_numbers<[1], [0], [0], [1], [0, 0, 1, 1], [], []>} : vector<8x8xbf16>, vector<8x32xbf16>, vector<8x32xf32> -> vector<8x32xf32>
    %397 = tpu.reciprocal %393 {approx = true} : vector<8x1xf32> -> vector<8x1xf32>
    %398 = vector.broadcast %397 : vector<8x1xf32> to vector<8x32xf32>
    %399 = arith.mulf %396, %398 : vector<8x32xf32>
    %400 = vector.extract_strided_slice %315 {offsets = [0, 48], sizes = [8, 16], strides = [1, 1]} : vector<16x64xbf16> to vector<8x16xbf16>
    %401 = vector.extract_strided_slice %323 {offsets = [0, 48], sizes = [8, 16], strides = [1, 1]} : vector<16x64xbf16> to vector<8x16xbf16>
    %cst_128 = arith.constant dense<0.000000e+00> : vector<8x8xf32>
    %402 = tpu.matmul %400, %401, %cst_128 {dimension_numbers = #tpu.dot_dimension_numbers<[1], [1], [0], [0], [0, 0, 1, 0], [], []>} : vector<8x16xbf16>, vector<8x16xbf16>, vector<8x8xf32> -> vector<8x8xf32>
    %403 = vector.extract_strided_slice %319 {offsets = [0, 48], sizes = [8, 16], strides = [1, 1]} : vector<16x64xbf16> to vector<8x16xbf16>
    %404 = vector.extract_strided_slice %327 {offsets = [0, 48], sizes = [8, 16], strides = [1, 1]} : vector<16x64xbf16> to vector<8x16xbf16>
    %cst_129 = arith.constant dense<0.000000e+00> : vector<8x8xf32>
    %405 = tpu.matmul %403, %404, %cst_129 {dimension_numbers = #tpu.dot_dimension_numbers<[1], [1], [0], [0], [0, 0, 1, 0], [], []>} : vector<8x16xbf16>, vector<8x16xbf16>, vector<8x8xf32> -> vector<8x8xf32>
    %406 = arith.addf %402, %405 : vector<8x8xf32>
    %cst_130 = arith.constant 0.176776692 : f32
    %407 = vector.broadcast %cst_130 : f32 to vector<8x8xf32>
    %408 = arith.mulf %406, %407 : vector<8x8xf32>
    %cst_131 = arith.constant -1.000000e+30 : f32
    %409 = vector.broadcast %cst_131 : f32 to vector<8x8xf32>
    %410 = arith.select %14, %408, %409 : vector<8x8xi1>, vector<8x8xf32>
    %cst_132 = arith.constant dense<0xFF800000> : vector<8xf32>
    %411 = vector.multi_reduction <maximumf>, %410, %cst_132 [1] : vector<8x8xf32> to vector<8xf32>
    %412 = vector.shape_cast %411 : vector<8xf32> to vector<8x1xf32>
    %413 = vector.broadcast %412 : vector<8x1xf32> to vector<8x8xf32>
    %414 = arith.subf %410, %413 : vector<8x8xf32>
    %415 = math.exp %414 : vector<8x8xf32>
    %cst_133 = arith.constant dense<0.000000e+00> : vector<8xf32>
    %416 = vector.multi_reduction <add>, %415, %cst_133 [1] : vector<8x8xf32> to vector<8xf32>
    %417 = vector.shape_cast %416 : vector<8xf32> to vector<8x1xf32>
    %418 = vector.extract_strided_slice %311 {offsets = [0, 96], sizes = [8, 32], strides = [1, 1]} : vector<16x128xbf16> to vector<8x32xbf16>
    %419 = arith.truncf %415 : vector<8x8xf32> to vector<8x8xbf16>
    %cst_134 = arith.constant dense<0.000000e+00> : vector<8x32xf32>
    %420 = tpu.matmul %419, %418, %cst_134 {dimension_numbers = #tpu.dot_dimension_numbers<[1], [0], [0], [1], [0, 0, 1, 1], [], []>} : vector<8x8xbf16>, vector<8x32xbf16>, vector<8x32xf32> -> vector<8x32xf32>
    %421 = tpu.reciprocal %417 {approx = true} : vector<8x1xf32> -> vector<8x1xf32>
    %422 = vector.broadcast %421 : vector<8x1xf32> to vector<8x32xf32>
    %423 = arith.mulf %420, %422 : vector<8x32xf32>
    %424 = tpu.concatenate %351, %375, %399, %423 in 1 : vector<8x32xf32>, vector<8x32xf32>, vector<8x32xf32>, vector<8x32xf32> -> vector<8x128xf32>
    %425 = vector.extract_strided_slice %315 {offsets = [8, 0], sizes = [8, 16], strides = [1, 1]} : vector<16x64xbf16> to vector<8x16xbf16>
    %426 = vector.extract_strided_slice %323 {offsets = [8, 0], sizes = [8, 16], strides = [1, 1]} : vector<16x64xbf16> to vector<8x16xbf16>
    %cst_135 = arith.constant dense<0.000000e+00> : vector<8x8xf32>
    %427 = tpu.matmul %425, %426, %cst_135 {dimension_numbers = #tpu.dot_dimension_numbers<[1], [1], [0], [0], [0, 0, 1, 0], [], []>} : vector<8x16xbf16>, vector<8x16xbf16>, vector<8x8xf32> -> vector<8x8xf32>
    %428 = vector.extract_strided_slice %319 {offsets = [8, 0], sizes = [8, 16], strides = [1, 1]} : vector<16x64xbf16> to vector<8x16xbf16>
    %429 = vector.extract_strided_slice %327 {offsets = [8, 0], sizes = [8, 16], strides = [1, 1]} : vector<16x64xbf16> to vector<8x16xbf16>
    %cst_136 = arith.constant dense<0.000000e+00> : vector<8x8xf32>
    %430 = tpu.matmul %428, %429, %cst_136 {dimension_numbers = #tpu.dot_dimension_numbers<[1], [1], [0], [0], [0, 0, 1, 0], [], []>} : vector<8x16xbf16>, vector<8x16xbf16>, vector<8x8xf32> -> vector<8x8xf32>
    %431 = arith.addf %427, %430 : vector<8x8xf32>
    %cst_137 = arith.constant 0.176776692 : f32
    %432 = vector.broadcast %cst_137 : f32 to vector<8x8xf32>
    %433 = arith.mulf %431, %432 : vector<8x8xf32>
    %cst_138 = arith.constant -1.000000e+30 : f32
    %434 = vector.broadcast %cst_138 : f32 to vector<8x8xf32>
    %435 = arith.select %14, %433, %434 : vector<8x8xi1>, vector<8x8xf32>
    %cst_139 = arith.constant dense<0xFF800000> : vector<8xf32>
    %436 = vector.multi_reduction <maximumf>, %435, %cst_139 [1] : vector<8x8xf32> to vector<8xf32>
    %437 = vector.shape_cast %436 : vector<8xf32> to vector<8x1xf32>
    %438 = vector.broadcast %437 : vector<8x1xf32> to vector<8x8xf32>
    %439 = arith.subf %435, %438 : vector<8x8xf32>
    %440 = math.exp %439 : vector<8x8xf32>
    %cst_140 = arith.constant dense<0.000000e+00> : vector<8xf32>
    %441 = vector.multi_reduction <add>, %440, %cst_140 [1] : vector<8x8xf32> to vector<8xf32>
    %442 = vector.shape_cast %441 : vector<8xf32> to vector<8x1xf32>
    %443 = vector.extract_strided_slice %311 {offsets = [8, 0], sizes = [8, 32], strides = [1, 1]} : vector<16x128xbf16> to vector<8x32xbf16>
    %444 = arith.truncf %440 : vector<8x8xf32> to vector<8x8xbf16>
    %cst_141 = arith.constant dense<0.000000e+00> : vector<8x32xf32>
    %445 = tpu.matmul %444, %443, %cst_141 {dimension_numbers = #tpu.dot_dimension_numbers<[1], [0], [0], [1], [0, 0, 1, 1], [], []>} : vector<8x8xbf16>, vector<8x32xbf16>, vector<8x32xf32> -> vector<8x32xf32>
    %446 = tpu.reciprocal %442 {approx = true} : vector<8x1xf32> -> vector<8x1xf32>
    %447 = vector.broadcast %446 : vector<8x1xf32> to vector<8x32xf32>
    %448 = arith.mulf %445, %447 : vector<8x32xf32>
    %449 = vector.extract_strided_slice %315 {offsets = [8, 16], sizes = [8, 16], strides = [1, 1]} : vector<16x64xbf16> to vector<8x16xbf16>
    %450 = vector.extract_strided_slice %323 {offsets = [8, 16], sizes = [8, 16], strides = [1, 1]} : vector<16x64xbf16> to vector<8x16xbf16>
    %cst_142 = arith.constant dense<0.000000e+00> : vector<8x8xf32>
    %451 = tpu.matmul %449, %450, %cst_142 {dimension_numbers = #tpu.dot_dimension_numbers<[1], [1], [0], [0], [0, 0, 1, 0], [], []>} : vector<8x16xbf16>, vector<8x16xbf16>, vector<8x8xf32> -> vector<8x8xf32>
    %452 = vector.extract_strided_slice %319 {offsets = [8, 16], sizes = [8, 16], strides = [1, 1]} : vector<16x64xbf16> to vector<8x16xbf16>
    %453 = vector.extract_strided_slice %327 {offsets = [8, 16], sizes = [8, 16], strides = [1, 1]} : vector<16x64xbf16> to vector<8x16xbf16>
    %cst_143 = arith.constant dense<0.000000e+00> : vector<8x8xf32>
    %454 = tpu.matmul %452, %453, %cst_143 {dimension_numbers = #tpu.dot_dimension_numbers<[1], [1], [0], [0], [0, 0, 1, 0], [], []>} : vector<8x16xbf16>, vector<8x16xbf16>, vector<8x8xf32> -> vector<8x8xf32>
    %455 = arith.addf %451, %454 : vector<8x8xf32>
    %cst_144 = arith.constant 0.176776692 : f32
    %456 = vector.broadcast %cst_144 : f32 to vector<8x8xf32>
    %457 = arith.mulf %455, %456 : vector<8x8xf32>
    %cst_145 = arith.constant -1.000000e+30 : f32
    %458 = vector.broadcast %cst_145 : f32 to vector<8x8xf32>
    %459 = arith.select %14, %457, %458 : vector<8x8xi1>, vector<8x8xf32>
    %cst_146 = arith.constant dense<0xFF800000> : vector<8xf32>
    %460 = vector.multi_reduction <maximumf>, %459, %cst_146 [1] : vector<8x8xf32> to vector<8xf32>
    %461 = vector.shape_cast %460 : vector<8xf32> to vector<8x1xf32>
    %462 = vector.broadcast %461 : vector<8x1xf32> to vector<8x8xf32>
    %463 = arith.subf %459, %462 : vector<8x8xf32>
    %464 = math.exp %463 : vector<8x8xf32>
    %cst_147 = arith.constant dense<0.000000e+00> : vector<8xf32>
    %465 = vector.multi_reduction <add>, %464, %cst_147 [1] : vector<8x8xf32> to vector<8xf32>
    %466 = vector.shape_cast %465 : vector<8xf32> to vector<8x1xf32>
    %467 = vector.extract_strided_slice %311 {offsets = [8, 32], sizes = [8, 32], strides = [1, 1]} : vector<16x128xbf16> to vector<8x32xbf16>
    %468 = arith.truncf %464 : vector<8x8xf32> to vector<8x8xbf16>
    %cst_148 = arith.constant dense<0.000000e+00> : vector<8x32xf32>
    %469 = tpu.matmul %468, %467, %cst_148 {dimension_numbers = #tpu.dot_dimension_numbers<[1], [0], [0], [1], [0, 0, 1, 1], [], []>} : vector<8x8xbf16>, vector<8x32xbf16>, vector<8x32xf32> -> vector<8x32xf32>
    %470 = tpu.reciprocal %466 {approx = true} : vector<8x1xf32> -> vector<8x1xf32>
    %471 = vector.broadcast %470 : vector<8x1xf32> to vector<8x32xf32>
    %472 = arith.mulf %469, %471 : vector<8x32xf32>
    %473 = vector.extract_strided_slice %315 {offsets = [8, 32], sizes = [8, 16], strides = [1, 1]} : vector<16x64xbf16> to vector<8x16xbf16>
    %474 = vector.extract_strided_slice %323 {offsets = [8, 32], sizes = [8, 16], strides = [1, 1]} : vector<16x64xbf16> to vector<8x16xbf16>
    %cst_149 = arith.constant dense<0.000000e+00> : vector<8x8xf32>
    %475 = tpu.matmul %473, %474, %cst_149 {dimension_numbers = #tpu.dot_dimension_numbers<[1], [1], [0], [0], [0, 0, 1, 0], [], []>} : vector<8x16xbf16>, vector<8x16xbf16>, vector<8x8xf32> -> vector<8x8xf32>
    %476 = vector.extract_strided_slice %319 {offsets = [8, 32], sizes = [8, 16], strides = [1, 1]} : vector<16x64xbf16> to vector<8x16xbf16>
    %477 = vector.extract_strided_slice %327 {offsets = [8, 32], sizes = [8, 16], strides = [1, 1]} : vector<16x64xbf16> to vector<8x16xbf16>
    %cst_150 = arith.constant dense<0.000000e+00> : vector<8x8xf32>
    %478 = tpu.matmul %476, %477, %cst_150 {dimension_numbers = #tpu.dot_dimension_numbers<[1], [1], [0], [0], [0, 0, 1, 0], [], []>} : vector<8x16xbf16>, vector<8x16xbf16>, vector<8x8xf32> -> vector<8x8xf32>
    %479 = arith.addf %475, %478 : vector<8x8xf32>
    %cst_151 = arith.constant 0.176776692 : f32
    %480 = vector.broadcast %cst_151 : f32 to vector<8x8xf32>
    %481 = arith.mulf %479, %480 : vector<8x8xf32>
    %cst_152 = arith.constant -1.000000e+30 : f32
    %482 = vector.broadcast %cst_152 : f32 to vector<8x8xf32>
    %483 = arith.select %14, %481, %482 : vector<8x8xi1>, vector<8x8xf32>
    %cst_153 = arith.constant dense<0xFF800000> : vector<8xf32>
    %484 = vector.multi_reduction <maximumf>, %483, %cst_153 [1] : vector<8x8xf32> to vector<8xf32>
    %485 = vector.shape_cast %484 : vector<8xf32> to vector<8x1xf32>
    %486 = vector.broadcast %485 : vector<8x1xf32> to vector<8x8xf32>
    %487 = arith.subf %483, %486 : vector<8x8xf32>
    %488 = math.exp %487 : vector<8x8xf32>
    %cst_154 = arith.constant dense<0.000000e+00> : vector<8xf32>
    %489 = vector.multi_reduction <add>, %488, %cst_154 [1] : vector<8x8xf32> to vector<8xf32>
    %490 = vector.shape_cast %489 : vector<8xf32> to vector<8x1xf32>
    %491 = vector.extract_strided_slice %311 {offsets = [8, 64], sizes = [8, 32], strides = [1, 1]} : vector<16x128xbf16> to vector<8x32xbf16>
    %492 = arith.truncf %488 : vector<8x8xf32> to vector<8x8xbf16>
    %cst_155 = arith.constant dense<0.000000e+00> : vector<8x32xf32>
    %493 = tpu.matmul %492, %491, %cst_155 {dimension_numbers = #tpu.dot_dimension_numbers<[1], [0], [0], [1], [0, 0, 1, 1], [], []>} : vector<8x8xbf16>, vector<8x32xbf16>, vector<8x32xf32> -> vector<8x32xf32>
    %494 = tpu.reciprocal %490 {approx = true} : vector<8x1xf32> -> vector<8x1xf32>
    %495 = vector.broadcast %494 : vector<8x1xf32> to vector<8x32xf32>
    %496 = arith.mulf %493, %495 : vector<8x32xf32>
    %497 = vector.extract_strided_slice %315 {offsets = [8, 48], sizes = [8, 16], strides = [1, 1]} : vector<16x64xbf16> to vector<8x16xbf16>
    %498 = vector.extract_strided_slice %323 {offsets = [8, 48], sizes = [8, 16], strides = [1, 1]} : vector<16x64xbf16> to vector<8x16xbf16>
    %cst_156 = arith.constant dense<0.000000e+00> : vector<8x8xf32>
    %499 = tpu.matmul %497, %498, %cst_156 {dimension_numbers = #tpu.dot_dimension_numbers<[1], [1], [0], [0], [0, 0, 1, 0], [], []>} : vector<8x16xbf16>, vector<8x16xbf16>, vector<8x8xf32> -> vector<8x8xf32>
    %500 = vector.extract_strided_slice %319 {offsets = [8, 48], sizes = [8, 16], strides = [1, 1]} : vector<16x64xbf16> to vector<8x16xbf16>
    %501 = vector.extract_strided_slice %327 {offsets = [8, 48], sizes = [8, 16], strides = [1, 1]} : vector<16x64xbf16> to vector<8x16xbf16>
    %cst_157 = arith.constant dense<0.000000e+00> : vector<8x8xf32>
    %502 = tpu.matmul %500, %501, %cst_157 {dimension_numbers = #tpu.dot_dimension_numbers<[1], [1], [0], [0], [0, 0, 1, 0], [], []>} : vector<8x16xbf16>, vector<8x16xbf16>, vector<8x8xf32> -> vector<8x8xf32>
    %503 = arith.addf %499, %502 : vector<8x8xf32>
    %cst_158 = arith.constant 0.176776692 : f32
    %504 = vector.broadcast %cst_158 : f32 to vector<8x8xf32>
    %505 = arith.mulf %503, %504 : vector<8x8xf32>
    %cst_159 = arith.constant -1.000000e+30 : f32
    %506 = vector.broadcast %cst_159 : f32 to vector<8x8xf32>
    %507 = arith.select %14, %505, %506 : vector<8x8xi1>, vector<8x8xf32>
    %cst_160 = arith.constant dense<0xFF800000> : vector<8xf32>
    %508 = vector.multi_reduction <maximumf>, %507, %cst_160 [1] : vector<8x8xf32> to vector<8xf32>
    %509 = vector.shape_cast %508 : vector<8xf32> to vector<8x1xf32>
    %510 = vector.broadcast %509 : vector<8x1xf32> to vector<8x8xf32>
    %511 = arith.subf %507, %510 : vector<8x8xf32>
    %512 = math.exp %511 : vector<8x8xf32>
    %cst_161 = arith.constant dense<0.000000e+00> : vector<8xf32>
    %513 = vector.multi_reduction <add>, %512, %cst_161 [1] : vector<8x8xf32> to vector<8xf32>
    %514 = vector.shape_cast %513 : vector<8xf32> to vector<8x1xf32>
    %515 = vector.extract_strided_slice %311 {offsets = [8, 96], sizes = [8, 32], strides = [1, 1]} : vector<16x128xbf16> to vector<8x32xbf16>
    %516 = arith.truncf %512 : vector<8x8xf32> to vector<8x8xbf16>
    %cst_162 = arith.constant dense<0.000000e+00> : vector<8x32xf32>
    %517 = tpu.matmul %516, %515, %cst_162 {dimension_numbers = #tpu.dot_dimension_numbers<[1], [0], [0], [1], [0, 0, 1, 1], [], []>} : vector<8x8xbf16>, vector<8x32xbf16>, vector<8x32xf32> -> vector<8x32xf32>
    %518 = tpu.reciprocal %514 {approx = true} : vector<8x1xf32> -> vector<8x1xf32>
    %519 = vector.broadcast %518 : vector<8x1xf32> to vector<8x32xf32>
    %520 = arith.mulf %517, %519 : vector<8x32xf32>
    %521 = tpu.concatenate %448, %472, %496, %520 in 1 : vector<8x32xf32>, vector<8x32xf32>, vector<8x32xf32>, vector<8x32xf32> -> vector<8x128xf32>
    %522 = tpu.concatenate %424, %521 in 0 : vector<8x128xf32>, vector<8x128xf32> -> vector<16x128xf32>
    %523 = arith.truncf %522 : vector<16x128xf32> to vector<16x128xbf16>
    %c1_163 = arith.constant 1 : index
    %c0_164 = arith.constant 0 : index
    %c0_165 = arith.constant 0 : index
    %524 = vector.load %arg7[%c1_163, %c0_164, %c0_165] : memref<2x128x128xbf16, #tpu.memory_space<vmem>>, vector<1x128x128xbf16>
    %525 = vector.shape_cast %524 : vector<1x128x128xbf16> to vector<128x128xbf16>
    %cst_166 = arith.constant dense<0.000000e+00> : vector<16x128xf32>
    %526 = tpu.matmul %523, %525, %cst_166 {dimension_numbers = #tpu.dot_dimension_numbers<[1], [0], [0], [1], [0, 0, 1, 1], [], []>} : vector<16x128xbf16>, vector<128x128xbf16>, vector<16x128xf32> -> vector<16x128xf32>
    %527 = arith.addf %287, %526 : vector<16x128xf32>
    %c1_167 = arith.constant 1 : index
    %c0_168 = arith.constant 0 : index
    %c0_169 = arith.constant 0 : index
    %528 = vector.load %arg8[%c1_167, %c0_168, %c0_169] : memref<2x1x128xf32, #tpu.memory_space<vmem>>, vector<1x1x128xf32>
    %529 = vector.shape_cast %528 : vector<1x1x128xf32> to vector<1x128xf32>
    %530 = arith.mulf %527, %527 : vector<16x128xf32>
    %cst_170 = arith.constant dense<0.000000e+00> : vector<16xf32>
    %531 = vector.multi_reduction <add>, %530, %cst_170 [1] : vector<16x128xf32> to vector<16xf32>
    %532 = vector.shape_cast %531 : vector<16xf32> to vector<16x1xf32>
    %cst_171 = arith.constant 1.280000e+02 : f32
    %533 = vector.broadcast %cst_171 : f32 to vector<16x1xf32>
    %534 = arith.divf %532, %533 : vector<16x1xf32>
    %cst_172 = arith.constant 9.99999997E-7 : f32
    %535 = vector.broadcast %cst_172 : f32 to vector<16x1xf32>
    %536 = arith.addf %534, %535 : vector<16x1xf32>
    %537 = math.rsqrt %536 : vector<16x1xf32>
    %538 = vector.broadcast %537 : vector<16x1xf32> to vector<16x128xf32>
    %539 = arith.mulf %527, %538 : vector<16x128xf32>
    %540 = vector.broadcast %529 : vector<1x128xf32> to vector<16x128xf32>
    %541 = arith.mulf %539, %540 : vector<16x128xf32>
    %542 = arith.truncf %541 : vector<16x128xf32> to vector<16x128xbf16>
    %c1_173 = arith.constant 1 : index
    %c0_174 = arith.constant 0 : index
    %c0_175 = arith.constant 0 : index
    %543 = vector.load %arg9[%c1_173, %c0_174, %c0_175] : memref<2x128x256xbf16, #tpu.memory_space<vmem>>, vector<1x128x256xbf16>
    %544 = vector.shape_cast %543 : vector<1x128x256xbf16> to vector<128x256xbf16>
    %cst_176 = arith.constant dense<0.000000e+00> : vector<16x256xf32>
    %545 = tpu.matmul %542, %544, %cst_176 {dimension_numbers = #tpu.dot_dimension_numbers<[1], [0], [0], [1], [0, 0, 1, 1], [], []>} : vector<16x128xbf16>, vector<128x256xbf16>, vector<16x256xf32> -> vector<16x256xf32>
    %c1_177 = arith.constant 1 : index
    %c0_178 = arith.constant 0 : index
    %c0_179 = arith.constant 0 : index
    %546 = vector.load %arg10[%c1_177, %c0_178, %c0_179] : memref<2x128x256xbf16, #tpu.memory_space<vmem>>, vector<1x128x256xbf16>
    %547 = vector.shape_cast %546 : vector<1x128x256xbf16> to vector<128x256xbf16>
    %cst_180 = arith.constant dense<0.000000e+00> : vector<16x256xf32>
    %548 = tpu.matmul %542, %547, %cst_180 {dimension_numbers = #tpu.dot_dimension_numbers<[1], [0], [0], [1], [0, 0, 1, 1], [], []>} : vector<16x128xbf16>, vector<128x256xbf16>, vector<16x256xf32> -> vector<16x256xf32>
    %549 = arith.negf %545 : vector<16x256xf32>
    %550 = math.exp %549 : vector<16x256xf32>
    %cst_181 = arith.constant 1.000000e+00 : f32
    %551 = vector.broadcast %cst_181 : f32 to vector<16x256xf32>
    %552 = arith.addf %551, %550 : vector<16x256xf32>
    %553 = arith.divf %551, %552 : vector<16x256xf32>
    %554 = arith.mulf %545, %553 : vector<16x256xf32>
    %555 = arith.mulf %554, %548 : vector<16x256xf32>
    %556 = arith.truncf %555 : vector<16x256xf32> to vector<16x256xbf16>
    %c1_182 = arith.constant 1 : index
    %c0_183 = arith.constant 0 : index
    %c0_184 = arith.constant 0 : index
    %557 = vector.load %arg11[%c1_182, %c0_183, %c0_184] : memref<2x256x128xbf16, #tpu.memory_space<vmem>>, vector<1x256x128xbf16>
    %558 = vector.shape_cast %557 : vector<1x256x128xbf16> to vector<256x128xbf16>
    %cst_185 = arith.constant dense<0.000000e+00> : vector<16x128xf32>
    %559 = tpu.matmul %556, %558, %cst_185 {dimension_numbers = #tpu.dot_dimension_numbers<[1], [0], [0], [1], [0, 0, 1, 1], [], []>} : vector<16x256xbf16>, vector<256x128xbf16>, vector<16x128xf32> -> vector<16x128xf32>
    %560 = arith.addf %527, %559 : vector<16x128xf32>
    %c0_186 = arith.constant 0 : index
    %c0_187 = arith.constant 0 : index
    %561 = vector.load %arg12[%c0_186, %c0_187] : memref<1x128xf32, #tpu.memory_space<vmem>>, vector<1x128xf32>
    %562 = arith.mulf %560, %560 : vector<16x128xf32>
    %cst_188 = arith.constant dense<0.000000e+00> : vector<16xf32>
    %563 = vector.multi_reduction <add>, %562, %cst_188 [1] : vector<16x128xf32> to vector<16xf32>
    %564 = vector.shape_cast %563 : vector<16xf32> to vector<16x1xf32>
    %cst_189 = arith.constant 1.280000e+02 : f32
    %565 = vector.broadcast %cst_189 : f32 to vector<16x1xf32>
    %566 = arith.divf %564, %565 : vector<16x1xf32>
    %cst_190 = arith.constant 9.99999997E-7 : f32
    %567 = vector.broadcast %cst_190 : f32 to vector<16x1xf32>
    %568 = arith.addf %566, %567 : vector<16x1xf32>
    %569 = math.rsqrt %568 : vector<16x1xf32>
    %570 = vector.broadcast %569 : vector<16x1xf32> to vector<16x128xf32>
    %571 = arith.mulf %560, %570 : vector<16x128xf32>
    %572 = vector.broadcast %561 : vector<1x128xf32> to vector<16x128xf32>
    %573 = arith.mulf %571, %572 : vector<16x128xf32>
    %574 = arith.truncf %573 : vector<16x128xf32> to vector<16x128xbf16>
    %c0_191 = arith.constant 0 : index
    %c0_192 = arith.constant 0 : index
    %575 = vector.load %arg13[%c0_191, %c0_192] : memref<128x256xbf16, #tpu.memory_space<vmem>>, vector<128x256xbf16>
    %cst_193 = arith.constant dense<0.000000e+00> : vector<16x256xf32>
    %576 = tpu.matmul %574, %575, %cst_193 {dimension_numbers = #tpu.dot_dimension_numbers<[1], [0], [0], [1], [0, 0, 1, 1], [], []>} : vector<16x128xbf16>, vector<128x256xbf16>, vector<16x256xf32> -> vector<16x256xf32>
    %c0_194 = arith.constant 0 : index
    %c0_195 = arith.constant 0 : index
    %577 = vector.load %arg14[%c0_194, %c0_195] : memref<16x256xf32, #tpu.memory_space<vmem>>, vector<16x256xf32>
    tpu.vector_store %arg14[%c0_194, %c0_195], %576 {strides = array<i32>} : memref<16x256xf32, #tpu.memory_space<vmem>>, vector<16x256xf32>,
    return
  }
  func.func @transform_0(%arg0: i32) -> (i32, i32) {
    %c0_i32 = arith.constant 0 : i32
    %c0_i32_0 = arith.constant 0 : i32
    %c0_i32_1 = arith.constant 0 : i32
    return %c0_i32, %c0_i32_0 : i32, i32
  }
  func.func @transform_1(%arg0: i32) -> (i32, i32) {
    %c0_i32 = arith.constant 0 : i32
    %c0_i32_0 = arith.constant 0 : i32
    %c0_i32_1 = arith.constant 0 : i32
    return %c0_i32, %c0_i32_0 : i32, i32
  }
  func.func @transform_2(%arg0: i32) -> (i32, i32) {
    %c0_i32 = arith.constant 0 : i32
    %c0_i32_0 = arith.constant 0 : i32
    %c0_i32_1 = arith.constant 0 : i32
    return %c0_i32, %c0_i32_0 : i32, i32
  }
  func.func @transform_3(%arg0: i32) -> (i32, i32) {
    %c0_i32 = arith.constant 0 : i32
    %c0_i32_0 = arith.constant 0 : i32
    %c0_i32_1 = arith.constant 0 : i32
    return %c0_i32, %c0_i32_0 : i32, i32
  }
  func.func @transform_4(%arg0: i32) -> (i32, i32, i32) {
    %c0_i32 = arith.constant 0 : i32
    %c0_i32_0 = arith.constant 0 : i32
    %c0_i32_1 = arith.constant 0 : i32
    %c0_i32_2 = arith.constant 0 : i32
    return %c0_i32, %c0_i32_0, %c0_i32_1 : i32, i32, i32
  }
  func.func @transform_5(%arg0: i32) -> (i32, i32, i32) {
    %c0_i32 = arith.constant 0 : i32
    %c0_i32_0 = arith.constant 0 : i32
    %c0_i32_1 = arith.constant 0 : i32
    %c0_i32_2 = arith.constant 0 : i32
    return %c0_i32, %c0_i32_0, %c0_i32_1 : i32, i32, i32
  }
  func.func @transform_6(%arg0: i32) -> (i32, i32, i32) {
    %c0_i32 = arith.constant 0 : i32
    %c0_i32_0 = arith.constant 0 : i32
    %c0_i32_1 = arith.constant 0 : i32
    %c0_i32_2 = arith.constant 0 : i32
    return %c0_i32, %c0_i32_0, %c0_i32_1 : i32, i32, i32
  }
  func.func @transform_7(%arg0: i32) -> (i32, i32, i32) {
    %c0_i32 = arith.constant 0 : i32
    %c0_i32_0 = arith.constant 0 : i32
    %c0_i32_1 = arith.constant 0 : i32
    %c0_i32_2 = arith.constant 0 : i32
    return %c0_i32, %c0_i32_0, %c0_i32_1 : i32, i32, i32
  }
  func.func @transform_8(%arg0: i32) -> (i32, i32, i32) {
    %c0_i32 = arith.constant 0 : i32
    %c0_i32_0 = arith.constant 0 : i32
    %c0_i32_1 = arith.constant 0 : i32
    %c0_i32_2 = arith.constant 0 : i32
    return %c0_i32, %c0_i32_0, %c0_i32_1 : i32, i32, i32
  }
  func.func @transform_9(%arg0: i32) -> (i32, i32, i32) {
    %c0_i32 = arith.constant 0 : i32
    %c0_i32_0 = arith.constant 0 : i32
    %c0_i32_1 = arith.constant 0 : i32
    %c0_i32_2 = arith.constant 0 : i32
    return %c0_i32, %c0_i32_0, %c0_i32_1 : i32, i32, i32
  }
  func.func @transform_10(%arg0: i32) -> (i32, i32, i32) {
    %c0_i32 = arith.constant 0 : i32
    %c0_i32_0 = arith.constant 0 : i32
    %c0_i32_1 = arith.constant 0 : i32
    %c0_i32_2 = arith.constant 0 : i32
    return %c0_i32, %c0_i32_0, %c0_i32_1 : i32, i32, i32
  }
  func.func @transform_11(%arg0: i32) -> (i32, i32) {
    %c0_i32 = arith.constant 0 : i32
    %c0_i32_0 = arith.constant 0 : i32
    %c0_i32_1 = arith.constant 0 : i32
    return %c0_i32, %c0_i32_0 : i32, i32
  }
  func.func @transform_12(%arg0: i32) -> (i32, i32) {
    %c0_i32 = arith.constant 0 : i32
    %c0_i32_0 = arith.constant 0 : i32
    %c0_i32_1 = arith.constant 0 : i32
    return %c0_i32, %c0_i32_0 : i32, i32
  }
  func.func @transform_13(%arg0: i32) -> (i32, i32) {
    %c0_i32 = arith.constant 0 : i32
    %c0_i32_0 = arith.constant 0 : i32
    %c0_i32_1 = arith.constant 0 : i32
    return %c0_i32, %c0_i32_0 : i32, i32
  }
}

</mosaic_0001>

<llo_original>
// kernel: tile.13
$region0: #{tile.13}
  #allocation0 [shape = 's32[1]{0}', space=sflag, size = 0x4, scoped, tag = 'scoped memory for tile.13']
  %s0 = inlined_call_operand.vmem [shape: f32[8,16], index: 0, kind: input, shape index: {}]
  %s1 = inlined_call_operand.vmem [shape: f32[2,8,4,16], index: 1, kind: output, shape index: {}]
  // Predicated region
  $region2: #{tile.13} parent=0 // pred_check
    _
  $region3: #{tile.13} parent=0 // pred_check_branch
    %3 = sbr.rel (0) target = $region5
  $region4: #{tile.13} parent=0 // pred_region
    _
  $region5: #{tile.13} parent=0 // pred_fallthru
    _
  %v4 = vld [vmem:[%s0] ss:$0 sm:$0xff]
  %5 = vst [vmem:[%s1] sm:$0xf] %v4
  %s6 = scalar_lea.vmem %s1, 32
  %7 = vst [vmem:[%s6] sm:$0xf] %v4
  %s8 = scalar_lea.vmem %s0, 1
  %v9 = vld [vmem:[%s8] ss:$0 sm:$0xff]
  %s10 = scalar_lea.vmem %s1, 4
  %11 = vst [vmem:[%s10] sm:$0xf] %v9
  %s12 = scalar_lea.vmem %s1, 36
  %13 = vst [vmem:[%s12] sm:$0xf] %v9
  %s14 = scalar_lea.vmem %s0, 2
  %v15 = vld [vmem:[%s14] ss:$0 sm:$0xff]
  %s16 = scalar_lea.vmem %s1, 8
  %17 = vst [vmem:[%s16] sm:$0xf] %v15
  %s18 = scalar_lea.vmem %s1, 40
  %19 = vst [vmem:[%s18] sm:$0xf] %v15
  %s20 = scalar_lea.vmem %s0, 3
  %v21 = vld [vmem:[%s20] ss:$0 sm:$0xff]
  %s22 = scalar_lea.vmem %s1, 12
  %23 = vst [vmem:[%s22] sm:$0xf] %v21
  %s24 = scalar_lea.vmem %s1, 44
  %25 = vst [vmem:[%s24] sm:$0xf] %v21
  %s26 = scalar_lea.vmem %s0, 4
  %v27 = vld [vmem:[%s26] ss:$0 sm:$0xff]
  %s28 = scalar_lea.vmem %s1, 16
  %29 = vst [vmem:[%s28] sm:$0xf] %v27
  %s30 = scalar_lea.vmem %s1, 48
  %31 = vst [vmem:[%s30] sm:$0xf] %v27
  %s32 = scalar_lea.vmem %s0, 5
  %v33 = vld [vmem:[%s32] ss:$0 sm:$0xff]
  %s34 = scalar_lea.vmem %s1, 20
  %35 = vst [vmem:[%s34] sm:$0xf] %v33
  %s36 = scalar_lea.vmem %s1, 52
  %37 = vst [vmem:[%s36] sm:$0xf] %v33
  %s38 = scalar_lea.vmem %s0, 6
  %v39 = vld [vmem:[%s38] ss:$0 sm:$0xff]
  %s40 = scalar_lea.vmem %s1, 24
  %41 = vst [vmem:[%s40] sm:$0xf] %v39
  %s42 = scalar_lea.vmem %s1, 56
  %43 = vst [vmem:[%s42] sm:$0xf] %v39
  %s44 = scalar_lea.vmem %s0, 7
  %v45 = vld [vmem:[%s44] ss:$0 sm:$0xff]
  %s46 = scalar_lea.vmem %s1, 28
  %47 = vst [vmem:[%s46] sm:$0xf] %v45
  %s48 = scalar_lea.vmem %s1, 60
  %49 = vst [vmem:[%s48] sm:$0xf] %v45

// kernel: tile.14
$region0: #{tile.14}
  %s0 = inlined_call_operand.vmem [shape: f32[2,8,4,16], index: 0, kind: input, shape index: {}]
  %s1 = inlined_call_operand.vmem [shape: f32[16,64], index: 1, kind: output, shape index: {}]
  $region1: #{tile.14} parent=0
    #allocation0 [shape = 'u8[65536]{0}', space=vmem, size = 0x10000, scoped, tag = 'scoped mem for input reshape']
    %s3 = sshllo.u32 0, 4
    %s4 = smul.addr 4, 15
    %s5 = scalar_lea.vmem %s0, %s4
    %v6 = vld [vmem:[%s5] sm:%s3]
    %s7 = scalar_lea.vmem [#allocation0], 120
    %8 = vst [vmem:[%s7] sm:%s3] %v6
    %s9 = smul.addr 4, 14
    %s10 = scalar_lea.vmem %s0, %s9
    %v11 = vld [vmem:[%s10] sm:%s3]
    %s12 = scalar_lea.vmem [#allocation0], 112
    %13 = vst [vmem:[%s12] sm:%s3] %v11
    %s14 = smul.addr 4, 13
    %s15 = scalar_lea.vmem %s0, %s14
    %v16 = vld [vmem:[%s15] sm:%s3]
    %s17 = scalar_lea.vmem [#allocation0], 104
    %18 = vst [vmem:[%s17] sm:%s3] %v16
    %s19 = smul.addr 4, 12
    %s20 = scalar_lea.vmem %s0, %s19
    %v21 = vld [vmem:[%s20] sm:%s3]
    %s22 = scalar_lea.vmem [#allocation0], 96
    %23 = vst [vmem:[%s22] sm:%s3] %v21
    %s24 = smul.addr 4, 11
    %s25 = scalar_lea.vmem %s0, %s24
    %v26 = vld [vmem:[%s25] sm:%s3]
    %s27 = scalar_lea.vmem [#allocation0], 88
    %28 = vst [vmem:[%s27] sm:%s3] %v26
    %s29 = smul.addr 4, 10
    %s30 = scalar_lea.vmem %s0, %s29
    %v31 = vld [vmem:[%s30] sm:%s3]
    %s32 = scalar_lea.vmem [#allocation0], 80
    %33 = vst [vmem:[%s32] sm:%s3] %v31
    %s34 = smul.addr 4, 9
    %s35 = scalar_lea.vmem %s0, %s34
    %v36 = vld [vmem:[%s35] sm:%s3]
    %s37 = scalar_lea.vmem [#allocation0], 72
    %38 = vst [vmem:[%s37] sm:%s3] %v36
    %s39 = smul.addr 4, 8
    %s40 = scalar_lea.vmem %s0, %s39
    %v41 = vld [vmem:[%s40] sm:%s3]
    %s42 = scalar_lea.vmem [#allocation0], 64
    %43 = vst [vmem:[%s42] sm:%s3] %v41
    %s44 = smul.addr 4, 7
    %s45 = scalar_lea.vmem %s0, %s44
    %v46 = vld [vmem:[%s45] sm:%s3]
    %s47 = scalar_lea.vmem [#allocation0], 56
    %48 = vst [vmem:[%s47] sm:%s3] %v46
    %s49 = smul.addr 4, 6
    %s50 = scalar_lea.vmem %s0, %s49
    %v51 = vld [vmem:[%s50] sm:%s3]
    %s52 = scalar_lea.vmem [#allocation0], 48
    %53 = vst [vmem:[%s52] sm:%s3] %v51
    %s54 = smul.addr 4, 5
    %s55 = scalar_lea.vmem %s0, %s54
    %v56 = vld [vmem:[%s55] sm:%s3]
    %s57 = scalar_lea.vmem [#allocation0], 40
    %58 = vst [vmem:[%s57] sm:%s3] %v56
    %s59 = smul.addr 4, 4
    %s60 = scalar_lea.vmem %s0, %s59
    %v61 = vld [vmem:[%s60] sm:%s3]
    %s62 = scalar_lea.vmem [#allocation0], 32
    %63 = vst [vmem:[%s62] sm:%s3] %v61
    %s64 = smul.addr 4, 3
    %s65 = scalar_lea.vmem %s0, %s64
    %v66 = vld [vmem:[%s65] sm:%s3]
    %s67 = scalar_lea.vmem [#allocation0], 24
    %68 = vst [vmem:[%s67] sm:%s3] %v66
    %s69 = smul.addr 4, 2
    %s70 = scalar_lea.vmem %s0, %s69
    %v71 = vld [vmem:[%s70] sm:%s3]
    %s72 = scalar_lea.vmem [#allocation0], 16
    %73 = vst [vmem:[%s72] sm:%s3] %v71
    %s74 = scalar_lea.vmem %s0, 4
    %v75 = vld [vmem:[%s74] sm:%s3]
    %s76 = scalar_lea.vmem [#allocation0], 8
    %77 = vst [vmem:[%s76] sm:%s3] %v75
    %v78 = vld [vmem:[%s0] sm:%s3]
    %79 = vst [vmem:[#allocation0] sm:%s3] %v78
    %v80 = vld [vmem:[#allocation0] ss:$8 sm:$0xf]
    %v81 = vld [vmem:[#allocation0] ss:$8 sm:$0xf0]
    %vm82 = vcmask 1047556
    %v83 = vsel %vm82, %v81, %v80
    %vm84 = vcmask 130048
    %85 = vst.msk [vmem:[%s1] sm:$0xff] %vm84, %v83
    %s86 = scalar_lea.vmem [#allocation0], 64
    %v87 = vld [vmem:[%s86] ss:$8 sm:$0xf]
    %s88 = scalar_lea.vmem [#allocation0], 64
    %v89 = vld [vmem:[%s88] ss:$8 sm:$0xf0]
    %vm90 = vcmask 1047556
    %v91 = vsel %vm90, %v89, %v87
    %vm92 = vcmask 130048
    %s93 = scalar_lea.vmem %s1, 8
    %94 = vst.msk [vmem:[%s93] sm:$0xff] %vm92, %v91
    %s95 = scalar_lea.vmem [#allocation0], 3
    %v96 = vld [vmem:[%s95] ss:$8 sm:$0xf]
    %s97 = scalar_lea.vmem [#allocation0], 3
    %v98 = vld [vmem:[%s97] ss:$8 sm:$0xf0]
    %vm99 = vcmask 1047556
    %v100 = vsel %vm99, %v98, %v96
    %101 = vrot.lane.b32.xlu0 %v100, 48
    %v102 = vpop.permute.xlu0 %101
    %vm103 = vcmask 523648
    %104 = vst.msk [vmem:[%s1] sm:$0xff] %vm103, %v102
    %s105 = scalar_lea.vmem [#allocation0], 67
    %v106 = vld [vmem:[%s105] ss:$8 sm:$0xf]
    %s107 = scalar_lea.vmem [#allocation0], 67
    %v108 = vld [vmem:[%s107] ss:$8 sm:$0xf0]
    %vm109 = vcmask 1047556
    %v110 = vsel %vm109, %v108, %v106
    %111 = vrot.lane.b32.xlu0 %v110, 48
    %v112 = vpop.permute.xlu0 %111
    %vm113 = vcmask 523648
    %s114 = scalar_lea.vmem %s1, 8
    %115 = vst.msk [vmem:[%s114] sm:$0xff] %vm113, %v112
    %s116 = scalar_lea.vmem [#allocation0], 2
    %v117 = vld [vmem:[%s116] ss:$8 sm:$0xf]
    %s118 = scalar_lea.vmem [#allocation0], 2
    %v119 = vld [vmem:[%s118] ss:$8 sm:$0xf0]
    %vm120 = vcmask 1047556
    %v121 = vsel %vm120, %v119, %v117
    %122 = vrot.lane.b32.xlu0 %v121, 32
    %v123 = vpop.permute.xlu0 %122
    %vm124 = vcmask 392448
    %125 = vst.msk [vmem:[%s1] sm:$0xff] %vm124, %v123
    %s126 = scalar_lea.vmem [#allocation0], 66
    %v127 = vld [vmem:[%s126] ss:$8 sm:$0xf]
    %s128 = scalar_lea.vmem [#allocation0], 66
    %v129 = vld [vmem:[%s128] ss:$8 sm:$0xf0]
    %vm130 = vcmask 1047556
    %v131 = vsel %vm130, %v129, %v127
    %132 = vrot.lane.b32.xlu0 %v131, 32
    %v133 = vpop.permute.xlu0 %132
    %vm134 = vcmask 392448
    %s135 = scalar_lea.vmem %s1, 8
    %136 = vst.msk [vmem:[%s135] sm:$0xff] %vm134, %v133
    %s137 = scalar_lea.vmem [#allocation0], 1
    %v138 = vld [vmem:[%s137] ss:$8 sm:$0xf]
    %s139 = scalar_lea.vmem [#allocation0], 1
    %v140 = vld [vmem:[%s139] ss:$8 sm:$0xf0]
    %vm141 = vcmask 1047556
    %v142 = vsel %vm141, %v140, %v138
    %143 = vrot.lane.b32.xlu0 %v142, 16
    %v144 = vpop.permute.xlu0 %143
    %vm145 = vcmask 261248
    %146 = vst.msk [vmem:[%s1] sm:$0xff] %vm145, %v144
    %s147 = scalar_lea.vmem [#allocation0], 65
    %v148 = vld [vmem:[%s147] ss:$8 sm:$0xf]
    %s149 = scalar_lea.vmem [#allocation0], 65
    %v150 = vld [vmem:[%s149] ss:$8 sm:$0xf0]
    %vm151 = vcmask 1047556
    %v152 = vsel %vm151, %v150, %v148
    %153 = vrot.lane.b32.xlu0 %v152, 16
    %v154 = vpop.permute.xlu0 %153
    %vm155 = vcmask 261248
    %s156 = scalar_lea.vmem %s1, 8
    %157 = vst.msk [vmem:[%s156] sm:$0xff] %vm155, %v154

// kernel: forward.1
$region0: #{forward.1}
  #allocation0 [shape = 'u32[]', space=smem, size = 0x4, offset = 0x4, fixed_abs, tag = 'smem constant byte address 0x4 - core index']
  #allocation1 [shape = 'u32[144,128]{1,0:T(1,128)}', space=vmem, size = 0x12000, scoped, tag = 'internal scratch']
  %s0 = inlined_call_operand.vmem [shape: s32[16,1], index: 0, kind: input, shape index: {}]
  %s1 = inlined_call_operand.hbm [shape: bf16[256,128], index: 1, kind: input, shape index: {}]
  %s2 = inlined_call_operand.vmem [shape: f32[16,64], index: 2, kind: input, shape index: {}]
  %s3 = inlined_call_operand.vmem [shape: f32[16,64], index: 3, kind: input, shape index: {}]
  %s4 = inlined_call_operand.vmem [shape: f32[2,1,128], index: 4, kind: input, shape index: {}]
  %s5 = inlined_call_operand.hbm [shape: bf16[2,128,384], index: 5, kind: input, shape index: {}]
  %s6 = inlined_call_operand.hbm [shape: bf16[2,128,128], index: 6, kind: input, shape index: {}]
  %s7 = inlined_call_operand.vmem [shape: f32[2,1,128], index: 7, kind: input, shape index: {}]
  %s8 = inlined_call_operand.vmem [shape: bf16[2,128,256], index: 8, kind: input, shape index: {}]
  %s9 = inlined_call_operand.hbm [shape: bf16[2,128,256], index: 9, kind: input, shape index: {}]
  %s10 = inlined_call_operand.hbm [shape: bf16[2,256,128], index: 10, kind: input, shape index: {}]
  %s11 = inlined_call_operand.vmem [shape: f32[1,128], index: 11, kind: input, shape index: {}]
  %s12 = inlined_call_operand.hbm [shape: bf16[128,256], index: 12, kind: input, shape index: {}]
  %s13 = inlined_call_operand.hbm [shape: f32[16,256], index: 13, kind: output, shape index: {}]
  %s14 = sld [smem:[#allocation0]]
  $region86: #{forward.1} parent=0
    _
  %s16 = ssub.s32 1, %s14
  %s17 = scalar_select 0, %s16, %s14
  $region1: #{forward.1} parent=0
    #allocation2 [shape = 'u8[65536]{0}', space=vmem, size = 0x10000, scoped, tag = 'input window, operand 1, single buffered']
    #allocation3 [shape = 's32[1]{0}', space=sflag, size = 0x4, scoped, tag = 'scoped memory for forward.1']
    #allocation4 [shape = 's32[1]{0}', space=sflag, size = 0x4, scoped, tag = 'scoped memory for forward.1']
    #allocation5 [shape = 'u8[196608]{0}', space=vmem, size = 0x30000, scoped, tag = 'input window, operand 5, single buffered']
    #allocation6 [shape = 's32[1]{0}', space=sflag, size = 0x4, scoped, tag = 'scoped memory for forward.1']
    #allocation7 [shape = 'u8[65536]{0}', space=vmem, size = 0x10000, scoped, tag = 'input window, operand 6, single buffered']
    #allocation8 [shape = 'u8[131072]{0}', space=vmem, size = 0x20000, scoped, tag = 'input window, operand 9, single buffered']
    #allocation9 [shape = 's32[1]{0}', space=sflag, size = 0x4, scoped, tag = 'scoped memory for forward.1']
    #allocation10 [shape = 'u8[131072]{0}', space=vmem, size = 0x20000, scoped, tag = 'input window, operand 10, single buffered']
    #allocation11 [shape = 'u8[65536]{0}', space=vmem, size = 0x10000, scoped, tag = 'input window, operand 12, single buffered']
    #allocation12 [shape = 's32[1]{0}', space=sflag, size = 0x4, scoped, tag = 'scoped memory for forward.1']
    #allocation13 [shape = 'u8[16384]{0}', space=vmem, size = 0x4000, scoped, tag = 'output window, operand 0, single buffered']
    %18 = vsyncpa [#allocation3], 0
    %19 = vsyncpa [#allocation6], 0
    %20 = vsyncpa [#allocation9], 0
    %21 = vsyncpa [#allocation12], 0
    %22 = vsyncpa [#allocation4], 0
    // Predicated region
    $region2: #{forward.1} parent=1 // pred_check
      _
    $region3: #{forward.1} parent=1 // pred_check_branch
      %24 = sbr.rel (0) target = $region5
    $region4: #{forward.1} parent=1 // pred_region
      _
    $region5: #{forward.1} parent=1 // pred_fallthru
      _
    // Predicated region
    $region6: #{forward.1} parent=1 // pred_check
      _
    $region7: #{forward.1} parent=1 // pred_check_branch
      %26 = sbr.rel (0) target = $region9
    $region8: #{forward.1} parent=1 // pred_region
      %s28 = ssub.s32 2048, 2048
      %29 = vsyncadd [#allocation3], %s28
      %s30 = sshll.u32 [#allocation2], 4
      %s31 = int_to_ptr.vmem [resolvable:$true] %s30
      %36 = dma.hbm_to_vmem [thread:$0]  %s1, 2048, %s31, [#allocation3], 64, 64, 4
    $region9: #{forward.1} parent=1 // pred_fallthru
      _
    // Predicated region
    $region10: #{forward.1} parent=1 // pred_check
      _
    $region11: #{forward.1} parent=1 // pred_check_branch
      %38 = sbr.rel (0) target = $region13
    $region12: #{forward.1} parent=1 // pred_region
      _
    $region13: #{forward.1} parent=1 // pred_fallthru
      _
    // Predicated region
    $region14: #{forward.1} parent=1 // pred_check
      _
    $region15: #{forward.1} parent=1 // pred_check_branch
      %40 = sbr.rel (0) target = $region17
    $region16: #{forward.1} parent=1 // pred_region
      _
    $region17: #{forward.1} parent=1 // pred_fallthru
      _
    // Predicated region
    $region18: #{forward.1} parent=1 // pred_check
      _
    $region19: #{forward.1} parent=1 // pred_check_branch
      %42 = sbr.rel (0) target = $region21
    $region20: #{forward.1} parent=1 // pred_region
      _
    $region21: #{forward.1} parent=1 // pred_fallthru
      _
    // Predicated region
    $region22: #{forward.1} parent=1 // pred_check
      _
    $region23: #{forward.1} parent=1 // pred_check_branch
      %44 = sbr.rel (0) target = $region25
    $region24: #{forward.1} parent=1 // pred_region
      %s46 = ssub.s32 6144, 6144
      %47 = vsyncadd [#allocation6], %s46
      %s48 = sshll.u32 [#allocation5], 4
      %s49 = int_to_ptr.vmem [resolvable:$true] %s48
      %54 = dma.hbm_to_vmem [thread:$0]  %s5, 6144, %s49, [#allocation6], 192, 192, 12
    $region25: #{forward.1} parent=1 // pred_fallthru
      _
    // Predicated region
    $region26: #{forward.1} parent=1 // pred_check
      _
    $region27: #{forward.1} parent=1 // pred_check_branch
      %56 = sbr.rel (0) target = $region29
    $region28: #{forward.1} parent=1 // pred_region
      %s58 = ssub.s32 2048, 2048
      %59 = vsyncadd [#allocation6], %s58
      %s60 = sshll.u32 [#allocation7], 4
      %s61 = int_to_ptr.vmem [resolvable:$true] %s60
      %66 = dma.hbm_to_vmem [thread:$0]  %s6, 2048, %s61, [#allocation6], 64, 64, 4
    $region29: #{forward.1} parent=1 // pred_fallthru
      _
    // Predicated region
    $region30: #{forward.1} parent=1 // pred_check
      _
    $region31: #{forward.1} parent=1 // pred_check_branch
      %68 = sbr.rel (0) target = $region33
    $region32: #{forward.1} parent=1 // pred_region
      _
    $region33: #{forward.1} parent=1 // pred_fallthru
      _
    // Predicated region
    $region34: #{forward.1} parent=1 // pred_check
      _
    $region35: #{forward.1} parent=1 // pred_check_branch
      %70 = sbr.rel (0) target = $region37
    $region36: #{forward.1} parent=1 // pred_region
      _
    $region37: #{forward.1} parent=1 // pred_fallthru
      _
    // Predicated region
    $region38: #{forward.1} parent=1 // pred_check
      _
    $region39: #{forward.1} parent=1 // pred_check_branch
      %72 = sbr.rel (0) target = $region41
    $region40: #{forward.1} parent=1 // pred_region
      %s74 = ssub.s32 4096, 4096
      %75 = vsyncadd [#allocation9], %s74
      %s76 = sshll.u32 [#allocation8], 4
      %s77 = int_to_ptr.vmem [resolvable:$true] %s76
      %82 = dma.hbm_to_vmem [thread:$0]  %s9, 4096, %s77, [#allocation9], 128, 128, 8
    $region41: #{forward.1} parent=1 // pred_fallthru
      _
    // Predicated region
    $region42: #{forward.1} parent=1 // pred_check
      _
    $region43: #{forward.1} parent=1 // pred_check_branch
      %84 = sbr.rel (0) target = $region45
    $region44: #{forward.1} parent=1 // pred_region
      %s86 = ssub.s32 4096, 4096
      %87 = vsyncadd [#allocation9], %s86
      %s88 = sshll.u32 [#allocation10], 4
      %s89 = int_to_ptr.vmem [resolvable:$true] %s88
      %94 = dma.hbm_to_vmem [thread:$0]  %s10, 4096, %s89, [#allocation9], 64, 64, 4
    $region45: #{forward.1} parent=1 // pred_fallthru
      _
    // Predicated region
    $region46: #{forward.1} parent=1 // pred_check
      _
    $region47: #{forward.1} parent=1 // pred_check_branch
      %96 = sbr.rel (0) target = $region49
    $region48: #{forward.1} parent=1 // pred_region
      _
    $region49: #{forward.1} parent=1 // pred_fallthru
      _
    // Predicated region
    $region50: #{forward.1} parent=1 // pred_check
      _
    $region51: #{forward.1} parent=1 // pred_check_branch
      %98 = sbr.rel (0) target = $region53
    $region52: #{forward.1} parent=1 // pred_region
      %s100 = ssub.s32 2048, 2048
      %101 = vsyncadd [#allocation12], %s100
      %s102 = sshll.u32 [#allocation11], 4
      %s103 = int_to_ptr.vmem [resolvable:$true] %s102
      %108 = dma.hbm_to_vmem [thread:$0]  %s12, 2048, %s103, [#allocation12], 128, 128, 8
    $region53: #{forward.1} parent=1 // pred_fallthru
      _
    // Predicated region
    $region54: #{forward.1} parent=1 // pred_check
      _
    $region55: #{forward.1} parent=1 // pred_check_branch
      %110 = sbr.rel (0) target = $region57
    $region56: #{forward.1} parent=1 // pred_region
      %111 = dma.done [#allocation3], 2048
    $region57: #{forward.1} parent=1 // pred_fallthru
      _
    // Predicated region
    $region58: #{forward.1} parent=1 // pred_check
      _
    $region59: #{forward.1} parent=1 // pred_check_branch
      %113 = sbr.rel (0) target = $region61
    $region60: #{forward.1} parent=1 // pred_region
      %114 = dma.done [#allocation6], 6144
    $region61: #{forward.1} parent=1 // pred_fallthru
      _
    // Predicated region
    $region62: #{forward.1} parent=1 // pred_check
      _
    $region63: #{forward.1} parent=1 // pred_check_branch
      %116 = sbr.rel (0) target = $region65
    $region64: #{forward.1} parent=1 // pred_region
      %117 = dma.done [#allocation6], 2048
    $region65: #{forward.1} parent=1 // pred_fallthru
      _
    // Predicated region
    $region66: #{forward.1} parent=1 // pred_check
      _
    $region67: #{forward.1} parent=1 // pred_check_branch
      %119 = sbr.rel (0) target = $region69
    $region68: #{forward.1} parent=1 // pred_region
      %120 = dma.done [#allocation9], 4096
    $region69: #{forward.1} parent=1 // pred_fallthru
      _
    // Predicated region
    $region70: #{forward.1} parent=1 // pred_check
      _
    $region71: #{forward.1} parent=1 // pred_check_branch
      %122 = sbr.rel (0) target = $region73
    $region72: #{forward.1} parent=1 // pred_region
      %123 = dma.done [#allocation9], 4096
    $region73: #{forward.1} parent=1 // pred_fallthru
      _
    // Predicated region
    $region74: #{forward.1} parent=1 // pred_check
      _
    $region75: #{forward.1} parent=1 // pred_check_branch
      %125 = sbr.rel (0) target = $region77
    $region76: #{forward.1} parent=1 // pred_region
      %126 = dma.done [#allocation12], 2048
    $region77: #{forward.1} parent=1 // pred_fallthru
      _
    %v128 = vlaneseq
    %v129 = vand.u32 %v128, 127
    %v130 = vadd.s32 %v129, 128
    %v131 = vld [vmem:[%s0] sm:$0xff]
    %v132 = vld [vmem:[%s0 + $0x8] sm:$0xff]
    %133 = vset.pattern.permute.xlu0 0
    %134 = vperm.xlu0 %133, %v131
    %v135 = vpop.permute.xlu0 %134
    %136 = vset.pattern.permute.xlu0 0
    %137 = vperm.xlu0 %136, %v132
    %v138 = vpop.permute.xlu0 %137
    %vm139 = vcmp.eq.s32.totalorder %v129, %v135
    %vm140 = vcmp.eq.s32.totalorder %v130, %v135
    %vm141 = vcmp.eq.s32.totalorder %v129, %v138
    %vm142 = vcmp.eq.s32.totalorder %v130, %v138
    %v143 = vsel %vm139, 1.0, 0.0
    %v144 = vsel %vm140, 1.0, 0.0
    %v145 = vsel %vm141, 1.0, 0.0
    %v146 = vsel %vm142, 1.0, 0.0
    %v147 = vpack.c.bf16 %v145, %v143
    %v148 = vpack.c.bf16 %v146, %v144
    %v149 = vld [vmem:[#allocation2] sm:$0xf]
    %v150 = vld [vmem:[#allocation2 + $0x4] sm:$0xf]
    %v151 = vld [vmem:[#allocation2 + $0x8] sm:$0xf]
    %v152 = vld [vmem:[#allocation2 + $0xc] sm:$0xf]
    %v153 = vld [vmem:[#allocation2 + $0x10] sm:$0xf]
    %v154 = vld [vmem:[#allocation2 + $0x14] sm:$0xf]
    %v155 = vld [vmem:[#allocation2 + $0x18] sm:$0xf]
    %v156 = vld [vmem:[#allocation2 + $0x1c] sm:$0xf]
    %v157 = vld [vmem:[#allocation2 + $0x20] sm:$0xf]
    %v158 = vld [vmem:[#allocation2 + $0x24] sm:$0xf]
    %v159 = vld [vmem:[#allocation2 + $0x28] sm:$0xf]
    %v160 = vld [vmem:[#allocation2 + $0x2c] sm:$0xf]
    %v161 = vld [vmem:[#allocation2 + $0x30] sm:$0xf]
    %v162 = vld [vmem:[#allocation2 + $0x34] sm:$0xf]
    %v163 = vld [vmem:[#allocation2 + $0x38] sm:$0xf]
    %v164 = vld [vmem:[#allocation2 + $0x3c] sm:$0xf]
    %v165 = vld [vmem:[#allocation2 + $0x40] sm:$0xf]
    %v166 = vld [vmem:[#allocation2 + $0x44] sm:$0xf]
    %v167 = vld [vmem:[#allocation2 + $0x48] sm:$0xf]
    %v168 = vld [vmem:[#allocation2 + $0x4c] sm:$0xf]
    %v169 = vld [vmem:[#allocation2 + $0x50] sm:$0xf]
    %v170 = vld [vmem:[#allocation2 + $0x54] sm:$0xf]
    %v171 = vld [vmem:[#allocation2 + $0x58] sm:$0xf]
    %v172 = vld [vmem:[#allocation2 + $0x5c] sm:$0xf]
    %v173 = vld [vmem:[#allocation2 + $0x60] sm:$0xf]
    %v174 = vld [vmem:[#allocation2 + $0x64] sm:$0xf]
    %v175 = vld [vmem:[#allocation2 + $0x68] sm:$0xf]
    %v176 = vld [vmem:[#allocation2 + $0x6c] sm:$0xf]
    %v177 = vld [vmem:[#allocation2 + $0x70] sm:$0xf]
    %v178 = vld [vmem:[#allocation2 + $0x74] sm:$0xf]
    %v179 = vld [vmem:[#allocation2 + $0x78] sm:$0xf]
    %v180 = vld [vmem:[#allocation2 + $0x7c] sm:$0xf]
    %v213 = vunpack.c.l.b16 %v149
    %v214 = vunpack.c.l.b16 %v150
    %v215 = vunpack.c.l.b16 %v151
    %v216 = vunpack.c.l.b16 %v152
    %v217 = vunpack.c.l.b16 %v153
    %v218 = vunpack.c.l.b16 %v154
    %v219 = vunpack.c.l.b16 %v155
    %v220 = vunpack.c.l.b16 %v156
    %v221 = vunpack.c.l.b16 %v157
    %v222 = vunpack.c.l.b16 %v158
    %v223 = vunpack.c.l.b16 %v159
    %v224 = vunpack.c.l.b16 %v160
    %v225 = vunpack.c.l.b16 %v161
    %v226 = vunpack.c.l.b16 %v162
    %v227 = vunpack.c.l.b16 %v163
    %v228 = vunpack.c.l.b16 %v164
    %v229 = vunpack.c.l.b16 %v165
    %v230 = vunpack.c.l.b16 %v166
    %v231 = vunpack.c.l.b16 %v167
    %v232 = vunpack.c.l.b16 %v168
    %v233 = vunpack.c.l.b16 %v169
    %v234 = vunpack.c.l.b16 %v170
    %v235 = vunpack.c.l.b16 %v171
    %v236 = vunpack.c.l.b16 %v172
    %v237 = vunpack.c.l.b16 %v173
    %v238 = vunpack.c.l.b16 %v174
    %v239 = vunpack.c.l.b16 %v175
    %v240 = vunpack.c.l.b16 %v176
    %v241 = vunpack.c.l.b16 %v177
    %v242 = vunpack.c.l.b16 %v178
    %v243 = vunpack.c.l.b16 %v179
    %v244 = vunpack.c.l.b16 %v180
    %v245 = vpack.c.b16 %v214, %v213
    %v246 = vpack.c.b16 %v216, %v215
    %v247 = vpack.c.b16 %v218, %v217
    %v248 = vpack.c.b16 %v220, %v219
    %v249 = vpack.c.b16 %v222, %v221
    %v250 = vpack.c.b16 %v224, %v223
    %v251 = vpack.c.b16 %v226, %v225
    %v252 = vpack.c.b16 %v228, %v227
    %v253 = vpack.c.b16 %v230, %v229
    %v254 = vpack.c.b16 %v232, %v231
    %v255 = vpack.c.b16 %v234, %v233
    %v256 = vpack.c.b16 %v236, %v235
    %v257 = vpack.c.b16 %v238, %v237
    %v258 = vpack.c.b16 %v240, %v239
    %v259 = vpack.c.b16 %v242, %v241
    %v260 = vpack.c.b16 %v244, %v243
    %277 = vmatprep.subr.bf16.mxu0 0
    %278 = vmatpush1.bf16.msra.mxu0 %v245
    %279 = vmatprep.subr.bf16.mxu0 0
    %280 = vmatpush1.bf16.msra.mxu0 %v246
    %281 = vmatprep.subr.bf16.mxu0 0
    %282 = vmatpush1.bf16.msra.mxu0 %v247
    %283 = vmatprep.subr.bf16.mxu0 0
    %284 = vmatpush1.bf16.msra.mxu0 %v248
    %285 = vmatprep.subr.bf16.mxu0 0
    %286 = vmatpush1.bf16.msra.mxu0 %v249
    %287 = vmatprep.subr.bf16.mxu0 0
    %288 = vmatpush1.bf16.msra.mxu0 %v250
    %289 = vmatprep.subr.bf16.mxu0 0
    %290 = vmatpush1.bf16.msra.mxu0 %v251
    %291 = vmatprep.subr.bf16.mxu0 0
    %292 = vmatpush1.bf16.msra.mxu0 %v252
    %293 = vmatprep.subr.bf16.mxu0 0
    %294 = vmatpush1.bf16.msra.mxu0 %v253
    %295 = vmatprep.subr.bf16.mxu0 0
    %296 = vmatpush1.bf16.msra.mxu0 %v254
    %297 = vmatprep.subr.bf16.mxu0 0
    %298 = vmatpush1.bf16.msra.mxu0 %v255
    %299 = vmatprep.subr.bf16.mxu0 0
    %300 = vmatpush1.bf16.msra.mxu0 %v256
    %301 = vmatprep.subr.bf16.mxu0 0
    %302 = vmatpush1.bf16.msra.mxu0 %v257
    %303 = vmatprep.subr.bf16.mxu0 0
    %304 = vmatpush1.bf16.msra.mxu0 %v258
    %305 = vmatprep.subr.bf16.mxu0 0
    %306 = vmatpush1.bf16.msra.mxu0 %v259
    %307 = vmatprep.subr.bf16.mxu0 0
    %308 = vmatpush1.bf16.msra.mxu0 %v260
    %309 = vmatprep.mubr.bf16.mxu0 %v148
    %310 = vmatmul.mubr.bf16.gmra.mrb[0].mxu0 %v147
    %v311 = vpop.f32.mrb[0].mxu0
    %v312 = vadd.f32 0.0, %v311
    %v313 = vpop.f32.mrb[0].mxu0
    %v314 = vpop.f32.mrb[0].mxu0
    %v315 = vadd.f32 0.0, %v314
    %v316 = vpop.f32.mrb[0].mxu0
    %317 = vdwg.mxu0
    %v318 = vld [vmem:[%s2] sm:$0xff]
    %v319 = vld [vmem:[%s2 + $0x8] sm:$0xff]
    %v320 = vld [vmem:[%s3] sm:$0xff]
    %v321 = vld [vmem:[%s3 + $0x8] sm:$0xff]
    %v322 = vlaneseq
    %v323 = vshrl.u32 %v322, 7
    %vm324 = vcmp.le.s32.totalorder %v129, %v323
    %v325 = vld [vmem:[%s4] sm:$0x1]
    %v326 = vmul.f32 %v312, %v312
    %v327 = vmul.f32 %v315, %v315
    %328 = vadd.xlane.f32.xlu0 %v326
    %v329 = vpop.xlane.xlu0 %328
    %330 = vadd.xlane.f32.xlu0 %v327
    %v331 = vpop.xlane.xlu0 %330
    %v332 = vrcp.pop 128.0
    %v333 = vmul.f32 %v329, %v332
    %v334 = vmul.f32 %v331, %v332
    %v335 = vadd.f32 %v333, 1e-06
    %v336 = vadd.f32 %v334, 1e-06
    %v337 = vrsqrt.pop %v335
    %v338 = vrsqrt.pop %v336
    %v339 = vmul.f32 %v312, %v337
    %v340 = vmul.f32 %v315, %v338
    %v342 = vlaneseq
    %v343 = vshrl.u32 %v342, 7
    %v344 = vsub.s32 0, %v343
    %v345 = vrot.slane %v325, %v344
    %v347 = vmul.f32 %v339, %v345
    %v348 = vmul.f32 %v340, %v345
    %v349 = vpack.c.bf16 %v348, %v347
    %v350 = vld [vmem:[#allocation5] sm:$0xff]
    %v351 = vld [vmem:[#allocation5 + $0x8] sm:$0xf]
    %v352 = vld [vmem:[#allocation5 + $0xc] sm:$0xff]
    %v353 = vld [vmem:[#allocation5 + $0x14] sm:$0xf]
    %v354 = vld [vmem:[#allocation5 + $0x18] sm:$0xff]
    %v355 = vld [vmem:[#allocation5 + $0x20] sm:$0xf]
    %v356 = vld [vmem:[#allocation5 + $0x24] sm:$0xff]
    %v357 = vld [vmem:[#allocation5 + $0x2c] sm:$0xf]
    %v358 = vld [vmem:[#allocation5 + $0x30] sm:$0xff]
    %v359 = vld [vmem:[#allocation5 + $0x38] sm:$0xf]
    %v360 = vld [vmem:[#allocation5 + $0x3c] sm:$0xff]
    %v361 = vld [vmem:[#allocation5 + $0x44] sm:$0xf]
    %v362 = vld [vmem:[#allocation5 + $0x48] sm:$0xff]
    %v363 = vld [vmem:[#allocation5 + $0x50] sm:$0xf]
    %v364 = vld [vmem:[#allocation5 + $0x54] sm:$0xff]
    %v365 = vld [vmem:[#allocation5 + $0x5c] sm:$0xf]
    %v366 = vld [vmem:[#allocation5 + $0x60] sm:$0xff]
    %v367 = vld [vmem:[#allocation5 + $0x68] sm:$0xf]
    %v368 = vld [vmem:[#allocation5 + $0x6c] sm:$0xff]
    %v369 = vld [vmem:[#allocation5 + $0x74] sm:$0xf]
    %v370 = vld [vmem:[#allocation5 + $0x78] sm:$0xff]
    %v371 = vld [vmem:[#allocation5 + $0x80] sm:$0xf]
    %v372 = vld [vmem:[#allocation5 + $0x84] sm:$0xff]
    %v373 = vld [vmem:[#allocation5 + $0x8c] sm:$0xf]
    %v374 = vld [vmem:[#allocation5 + $0x90] sm:$0xff]
    %v375 = vld [vmem:[#allocation5 + $0x98] sm:$0xf]
    %v376 = vld [vmem:[#allocation5 + $0x9c] sm:$0xff]
    %v377 = vld [vmem:[#allocation5 + $0xa4] sm:$0xf]
    %v378 = vld [vmem:[#allocation5 + $0xa8] sm:$0xff]
    %v379 = vld [vmem:[#allocation5 + $0xb0] sm:$0xf]
    %v380 = vld [vmem:[#allocation5 + $0xb4] sm:$0xff]
    %v381 = vld [vmem:[#allocation5 + $0xbc] sm:$0xf]
    %v414 = vunpack.c.l.b16 %v350
    %v415 = vunpack.c.h.b16 %v350
    %v416 = vunpack.c.l.b16 %v351
    %v417 = vunpack.c.l.b16 %v352
    %v418 = vunpack.c.h.b16 %v352
    %v419 = vunpack.c.l.b16 %v353
    %v420 = vunpack.c.l.b16 %v354
    %v421 = vunpack.c.h.b16 %v354
    %v422 = vunpack.c.l.b16 %v355
    %v423 = vunpack.c.l.b16 %v356
    %v424 = vunpack.c.h.b16 %v356
    %v425 = vunpack.c.l.b16 %v357
    %v426 = vunpack.c.l.b16 %v358
    %v427 = vunpack.c.h.b16 %v358
    %v428 = vunpack.c.l.b16 %v359
    %v429 = vunpack.c.l.b16 %v360
    %v430 = vunpack.c.h.b16 %v360
    %v431 = vunpack.c.l.b16 %v361
    %v432 = vunpack.c.l.b16 %v362
    %v433 = vunpack.c.h.b16 %v362
    %v434 = vunpack.c.l.b16 %v363
    %v435 = vunpack.c.l.b16 %v364
    %v436 = vunpack.c.h.b16 %v364
    %v437 = vunpack.c.l.b16 %v365
    %v438 = vunpack.c.l.b16 %v366
    %v439 = vunpack.c.h.b16 %v366
    %v440 = vunpack.c.l.b16 %v367
    %v441 = vunpack.c.l.b16 %v368
    %v442 = vunpack.c.h.b16 %v368
    %v443 = vunpack.c.l.b16 %v369
    %v444 = vunpack.c.l.b16 %v370
    %v445 = vunpack.c.h.b16 %v370
    %v446 = vunpack.c.l.b16 %v371
    %v447 = vunpack.c.l.b16 %v372
    %v448 = vunpack.c.h.b16 %v372
    %v449 = vunpack.c.l.b16 %v373
    %v450 = vunpack.c.l.b16 %v374
    %v451 = vunpack.c.h.b16 %v374
    %v452 = vunpack.c.l.b16 %v375
    %v453 = vunpack.c.l.b16 %v376
    %v454 = vunpack.c.h.b16 %v376
    %v455 = vunpack.c.l.b16 %v377
    %v456 = vunpack.c.l.b16 %v378
    %v457 = vunpack.c.h.b16 %v378
    %v458 = vunpack.c.l.b16 %v379
    %v459 = vunpack.c.l.b16 %v380
    %v460 = vunpack.c.h.b16 %v380
    %v461 = vunpack.c.l.b16 %v381
    %v462 = vpack.c.b16 %v417, %v414
    %v463 = vpack.c.b16 %v418, %v415
    %v464 = vpack.c.b16 %v419, %v416
    %v465 = vpack.c.b16 %v423, %v420
    %v466 = vpack.c.b16 %v424, %v421
    %v467 = vpack.c.b16 %v425, %v422
    %v468 = vpack.c.b16 %v429, %v426
    %v469 = vpack.c.b16 %v430, %v427
    %v470 = vpack.c.b16 %v431, %v428
    %v471 = vpack.c.b16 %v435, %v432
    %v472 = vpack.c.b16 %v436, %v433
    %v473 = vpack.c.b16 %v437, %v434
    %v474 = vpack.c.b16 %v441, %v438
    %v475 = vpack.c.b16 %v442, %v439
    %v476 = vpack.c.b16 %v443, %v440
    %v477 = vpack.c.b16 %v447, %v444
    %v478 = vpack.c.b16 %v448, %v445
    %v479 = vpack.c.b16 %v449, %v446
    %v480 = vpack.c.b16 %v453, %v450
    %v481 = vpack.c.b16 %v454, %v451
    %v482 = vpack.c.b16 %v455, %v452
    %v483 = vpack.c.b16 %v459, %v456
    %v484 = vpack.c.b16 %v460, %v457
    %v485 = vpack.c.b16 %v461, %v458
    %510 = vmatprep.subr.bf16.mxu0 %v463
    %511 = vmatpush1.bf16.msra.mxu0 %v462
    %512 = vmatprep.subr.bf16.mxu0 %v466
    %513 = vmatpush1.bf16.msra.mxu0 %v465
    %514 = vmatprep.subr.bf16.mxu0 %v469
    %515 = vmatpush1.bf16.msra.mxu0 %v468
    %516 = vmatprep.subr.bf16.mxu0 %v472
    %517 = vmatpush1.bf16.msra.mxu0 %v471
    %518 = vmatprep.subr.bf16.mxu0 %v475
    %519 = vmatpush1.bf16.msra.mxu0 %v474
    %520 = vmatprep.subr.bf16.mxu0 %v478
    %521 = vmatpush1.bf16.msra.mxu0 %v477
    %522 = vmatprep.subr.bf16.mxu0 %v481
    %523 = vmatpush1.bf16.msra.mxu0 %v480
    %524 = vmatprep.subr.bf16.mxu0 %v484
    %525 = vmatpush1.bf16.msra.mxu0 %v483
    %526 = vmatprep.subr.bf16.mxu0 0
    %527 = vmatpush1.bf16.msra.mxu0 0
    %528 = vmatprep.subr.bf16.mxu0 0
    %529 = vmatpush1.bf16.msra.mxu0 0
    %530 = vmatprep.subr.bf16.mxu0 0
    %531 = vmatpush1.bf16.msra.mxu0 0
    %532 = vmatprep.subr.bf16.mxu0 0
    %533 = vmatpush1.bf16.msra.mxu0 0
    %534 = vmatprep.subr.bf16.mxu0 0
    %535 = vmatpush1.bf16.msra.mxu0 0
    %536 = vmatprep.subr.bf16.mxu0 0
    %537 = vmatpush1.bf16.msra.mxu0 0
    %538 = vmatprep.subr.bf16.mxu0 0
    %539 = vmatpush1.bf16.msra.mxu0 0
    %540 = vmatprep.subr.bf16.mxu0 0
    %541 = vmatpush1.bf16.msra.mxu0 0
    %542 = vmatprep.mubr.bf16.mxu0 0
    %543 = vmatmul.mubr.bf16.gmra.mrb[0].mxu0 %v349
    %v544 = vpop.f32.mrb[0].mxu0
    %v545 = vadd.f32 0.0, %v544
    %v546 = vpop.f32.mrb[0].mxu0
    %v547 = vadd.f32 0.0, %v546
    %v548 = vpop.f32.mrb[0].mxu0
    %v549 = vadd.f32 0.0, %v548
    %v550 = vpop.f32.mrb[0].mxu0
    %v551 = vadd.f32 0.0, %v550
    %552 = vdwg.mxu0
    %553 = vmatprep.subr.bf16.mxu0 0
    %554 = vmatpush1.bf16.msra.mxu0 %v464
    %555 = vmatprep.subr.bf16.mxu0 0
    %556 = vmatpush1.bf16.msra.mxu0 %v467
    %557 = vmatprep.subr.bf16.mxu0 0
    %558 = vmatpush1.bf16.msra.mxu0 %v470
    %559 = vmatprep.subr.bf16.mxu0 0
    %560 = vmatpush1.bf16.msra.mxu0 %v473
    %561 = vmatprep.subr.bf16.mxu0 0
    %562 = vmatpush1.bf16.msra.mxu0 %v476
    %563 = vmatprep.subr.bf16.mxu0 0
    %564 = vmatpush1.bf16.msra.mxu0 %v479
    %565 = vmatprep.subr.bf16.mxu0 0
    %566 = vmatpush1.bf16.msra.mxu0 %v482
    %567 = vmatprep.subr.bf16.mxu0 0
    %568 = vmatpush1.bf16.msra.mxu0 %v485
    %569 = vmatprep.subr.bf16.mxu0 0
    %570 = vmatpush1.bf16.msra.mxu0 0
    %571 = vmatprep.subr.bf16.mxu0 0
    %572 = vmatpush1.bf16.msra.mxu0 0
    %573 = vmatprep.subr.bf16.mxu0 0
    %574 = vmatpush1.bf16.msra.mxu0 0
    %575 = vmatprep.subr.bf16.mxu0 0
    %576 = vmatpush1.bf16.msra.mxu0 0
    %577 = vmatprep.subr.bf16.mxu0 0
    %578 = vmatpush1.bf16.msra.mxu0 0
    %579 = vmatprep.subr.bf16.mxu0 0
    %580 = vmatpush1.bf16.msra.mxu0 0
    %581 = vmatprep.subr.bf16.mxu0 0
    %582 = vmatpush1.bf16.msra.mxu0 0
    %583 = vmatprep.subr.bf16.mxu0 0
    %584 = vmatpush1.bf16.msra.mxu0 0
    %585 = vmatprep.mubr.bf16.mxu0 0
    %586 = vmatmul.mubr.bf16.gmra.mrb[0].mxu0 %v349
    %v587 = vpop.f32.mrb[0].mxu0
    %v588 = vadd.f32 0.0, %v587
    %v589 = vpop.f32.mrb[0].mxu0
    %v590 = vpop.f32.mrb[0].mxu0
    %v591 = vadd.f32 0.0, %v590
    %v592 = vpop.f32.mrb[0].mxu0
    %593 = vdwg.mxu0
    %v594 = vpack.c.bf16 %v591, %v588
    %v595 = vmul.f32 %v545, %v318
    %v596 = vmul.f32 %v549, %v319
    %599 = vrot.lane.b32.xlu0 %v320, 64
    %v600 = vpop.permute.xlu0 %599
    %601 = vrot.lane.b32.xlu0 %v321, 64
    %v602 = vpop.permute.xlu0 %601
    %v605 = vmul.f32 %v545, %v600
    %v606 = vmul.f32 %v549, %v602
    %609 = vrot.lane.b32.xlu0 %v605, 64
    %v610 = vpop.permute.xlu0 %609
    %611 = vrot.lane.b32.xlu0 %v606, 64
    %v612 = vpop.permute.xlu0 %611
    %v615 = vsub.f32 %v595, %v610
    %v616 = vsub.f32 %v596, %v612
    %v617 = vpack.c.bf16 %v616, %v615
    %620 = vrot.lane.b32.xlu0 %v318, 64
    %v621 = vpop.permute.xlu0 %620
    %622 = vrot.lane.b32.xlu0 %v319, 64
    %v623 = vpop.permute.xlu0 %622
    %v626 = vmul.f32 %v545, %v621
    %v627 = vmul.f32 %v549, %v623
    %v628 = vmul.f32 %v545, %v320
    %v629 = vmul.f32 %v549, %v321
    %632 = vrot.lane.b32.xlu0 %v628, 64
    %v633 = vpop.permute.xlu0 %632
    %634 = vrot.lane.b32.xlu0 %v629, 64
    %v635 = vpop.permute.xlu0 %634
    %v638 = vadd.f32 %v626, %v633
    %v639 = vadd.f32 %v627, %v635
    %v640 = vpack.c.bf16 %v639, %v638
    %v641 = vmul.f32 %v547, %v318
    %v642 = vmul.f32 %v551, %v319
    %v643 = vmul.f32 %v547, %v600
    %v644 = vmul.f32 %v551, %v602
    %647 = vrot.lane.b32.xlu0 %v643, 64
    %v648 = vpop.permute.xlu0 %647
    %649 = vrot.lane.b32.xlu0 %v644, 64
    %v650 = vpop.permute.xlu0 %649
    %v653 = vsub.f32 %v641, %v648
    %v654 = vsub.f32 %v642, %v650
    %v655 = vpack.c.bf16 %v654, %v653
    %v656 = vmul.f32 %v547, %v621
    %v657 = vmul.f32 %v551, %v623
    %v658 = vmul.f32 %v547, %v320
    %v659 = vmul.f32 %v551, %v321
    %662 = vrot.lane.b32.xlu0 %v658, 64
    %v663 = vpop.permute.xlu0 %662
    %664 = vrot.lane.b32.xlu0 %v659, 64
    %v665 = vpop.permute.xlu0 %664
    %v668 = vadd.f32 %v656, %v663
    %v669 = vadd.f32 %v657, %v665
    %v670 = vpack.c.bf16 %v669, %v668
    %672 = vrot.lane.b32.xlu0 %v640, 64
    %v673 = vpop.permute.xlu0 %672
    %675 = vrot.lane.b32.xlu0 %v670, 64
    %v676 = vpop.permute.xlu0 %675
    %vm677 = vcmask 130048
    %v679 = vsel %vm677, %v673, 0
    %v682 = vsel %vm677, %v676, 0
    %684 = vmatprep.subr.bf16.mxu0 0
    %685 = vmatpush1.bf16.xpose.msra.mxu0 %v682
    %686 = vmatprep.subr.bf16.mxu0 0
    %687 = vmatpush1.bf16.xpose.msra.mxu0 0
    %688 = vmatprep.subr.bf16.mxu0 0
    %689 = vmatpush1.bf16.xpose.msra.mxu0 0
    %690 = vmatprep.subr.bf16.mxu0 0
    %691 = vmatpush1.bf16.xpose.msra.mxu0 0
    %692 = vmatprep.subr.bf16.mxu0 0
    %693 = vmatpush1.bf16.xpose.msra.mxu0 0
    %694 = vmatprep.subr.bf16.mxu0 0
    %695 = vmatpush1.bf16.xpose.msra.mxu0 0
    %696 = vmatprep.subr.bf16.mxu0 0
    %697 = vmatpush1.bf16.xpose.msra.mxu0 0
    %698 = vmatprep.subr.bf16.mxu0 0
    %699 = vmatpush1.bf16.xpose.msra.mxu0 0
    %700 = vmatprep.subr.bf16.mxu0 0
    %701 = vmatpush1.bf16.xpose.msra.mxu0 0
    %702 = vmatprep.subr.bf16.mxu0 0
    %703 = vmatpush1.bf16.xpose.msra.mxu0 0
    %704 = vmatprep.subr.bf16.mxu0 0
    %705 = vmatpush1.bf16.xpose.msra.mxu0 0
    %706 = vmatprep.subr.bf16.mxu0 0
    %707 = vmatpush1.bf16.xpose.msra.mxu0 0
    %708 = vmatprep.subr.bf16.mxu0 0
    %709 = vmatpush1.bf16.xpose.msra.mxu0 0
    %710 = vmatprep.subr.bf16.mxu0 0
    %711 = vmatpush1.bf16.xpose.msra.mxu0 0
    %712 = vmatprep.subr.bf16.mxu0 0
    %713 = vmatpush1.bf16.xpose.msra.mxu0 0
    %714 = vmatprep.subr.bf16.mxu0 0
    %715 = vmatpush1.bf16.xpose.msra.mxu0 0
    %716 = vmatprep.mubr.bf16.mxu0 0
    %717 = vmatmul.mubr.bf16.gmra.mrb[0].mxu0 %v679
    %v718 = vpop.f32.mrb[0].mxu0
    %v719 = vadd.f32 0.0, %v718
    %v720 = vpop.f32.mrb[0].mxu0
    %v721 = vpop.f32.mrb[0].mxu0
    %v722 = vpop.f32.mrb[0].mxu0
    %723 = vdwg.mxu0
    %v725 = vsel %vm677, %v617, 0
    %v728 = vsel %vm677, %v655, 0
    %730 = vmatprep.subr.bf16.mxu0 0
    %731 = vmatpush1.bf16.xpose.msra.mxu0 %v728
    %732 = vmatprep.subr.bf16.mxu0 0
    %733 = vmatpush1.bf16.xpose.msra.mxu0 0
    %734 = vmatprep.subr.bf16.mxu0 0
    %735 = vmatpush1.bf16.xpose.msra.mxu0 0
    %736 = vmatprep.subr.bf16.mxu0 0
    %737 = vmatpush1.bf16.xpose.msra.mxu0 0
    %738 = vmatprep.subr.bf16.mxu0 0
    %739 = vmatpush1.bf16.xpose.msra.mxu0 0
    %740 = vmatprep.subr.bf16.mxu0 0
    %741 = vmatpush1.bf16.xpose.msra.mxu0 0
    %742 = vmatprep.subr.bf16.mxu0 0
    %743 = vmatpush1.bf16.xpose.msra.mxu0 0
    %744 = vmatprep.subr.bf16.mxu0 0
    %745 = vmatpush1.bf16.xpose.msra.mxu0 0
    %746 = vmatprep.subr.bf16.mxu0 0
    %747 = vmatpush1.bf16.xpose.msra.mxu0 0
    %748 = vmatprep.subr.bf16.mxu0 0
    %749 = vmatpush1.bf16.xpose.msra.mxu0 0
    %750 = vmatprep.subr.bf16.mxu0 0
    %751 = vmatpush1.bf16.xpose.msra.mxu0 0
    %752 = vmatprep.subr.bf16.mxu0 0
    %753 = vmatpush1.bf16.xpose.msra.mxu0 0
    %754 = vmatprep.subr.bf16.mxu0 0
    %755 = vmatpush1.bf16.xpose.msra.mxu0 0
    %756 = vmatprep.subr.bf16.mxu0 0
    %757 = vmatpush1.bf16.xpose.msra.mxu0 0
    %758 = vmatprep.subr.bf16.mxu0 0
    %759 = vmatpush1.bf16.xpose.msra.mxu0 0
    %760 = vmatprep.subr.bf16.mxu0 0
    %761 = vmatpush1.bf16.xpose.msra.mxu0 0
    %762 = vmatprep.mubr.bf16.mxu0 0
    %763 = vmatmul.mubr.bf16.gmra.mrb[0].mxu0 %v725
    %v764 = vpop.f32.mrb[0].mxu0
    %v765 = vadd.f32 %v719, %v764
    %v766 = vpop.f32.mrb[0].mxu0
    %v767 = vpop.f32.mrb[0].mxu0
    %v768 = vpop.f32.mrb[0].mxu0
    %769 = vdwg.mxu0
    %v770 = vmul.f32 %v765, 0.17677669
    %v771 = vsel %vm324, %v770, -1e+30
    %vm772 = vcmask 64512
    %v773 = vsel %vm772, %v771, -inf
    %774 = vmax.xlane.f32.xlu0 %v773
    %v775 = vpop.xlane.xlu0 %774
    %v776 = vsub.f32 %v771, %v775
    %v777 = vmul.f32 %v776, 1.442695
    %v778 = vpow.pop %v777
    %v779 = vsel %vm772, %v778, 0.0
    %780 = vadd.xlane.f32.xlu0 %v779
    %v781 = vpop.xlane.xlu0 %780
    %v782 = vpack.c.bf16 %v778, %v778
    %v784 = vsel %vm772, %v782, 0
    %vm786 = vcmask 1043456
    %v788 = vsel %vm786, %v594, 0
    %790 = vmatprep.subr.bf16.mxu0 0
    %791 = vmatpush1.bf16.msra.mxu0 %v788
    %792 = vmatprep.subr.bf16.mxu0 0
    %793 = vmatpush1.bf16.msra.mxu0 0
    %794 = vmatprep.subr.bf16.mxu0 0
    %795 = vmatpush1.bf16.msra.mxu0 0
    %796 = vmatprep.subr.bf16.mxu0 0
    %797 = vmatpush1.bf16.msra.mxu0 0
    %798 = vmatprep.subr.bf16.mxu0 0
    %799 = vmatpush1.bf16.msra.mxu0 0
    %800 = vmatprep.subr.bf16.mxu0 0
    %801 = vmatpush1.bf16.msra.mxu0 0
    %802 = vmatprep.subr.bf16.mxu0 0
    %803 = vmatpush1.bf16.msra.mxu0 0
    %804 = vmatprep.subr.bf16.mxu0 0
    %805 = vmatpush1.bf16.msra.mxu0 0
    %806 = vmatprep.subr.bf16.mxu0 0
    %807 = vmatpush1.bf16.msra.mxu0 0
    %808 = vmatprep.subr.bf16.mxu0 0
    %809 = vmatpush1.bf16.msra.mxu0 0
    %810 = vmatprep.subr.bf16.mxu0 0
    %811 = vmatpush1.bf16.msra.mxu0 0
    %812 = vmatprep.subr.bf16.mxu0 0
    %813 = vmatpush1.bf16.msra.mxu0 0
    %814 = vmatprep.subr.bf16.mxu0 0
    %815 = vmatpush1.bf16.msra.mxu0 0
    %816 = vmatprep.subr.bf16.mxu0 0
    %817 = vmatpush1.bf16.msra.mxu0 0
    %818 = vmatprep.subr.bf16.mxu0 0
    %819 = vmatpush1.bf16.msra.mxu0 0
    %820 = vmatprep.subr.bf16.mxu0 0
    %821 = vmatpush1.bf16.msra.mxu0 0
    %822 = vmatprep.mubr.bf16.mxu0 0
    %823 = vmatmul.mubr.bf16.gmra.mrb[0].mxu0 %v784
    %v824 = vpop.f32.mrb[0].mxu0
    %v825 = vadd.f32 0.0, %v824
    %v826 = vpop.f32.mrb[0].mxu0
    %v827 = vpop.f32.mrb[0].mxu0
    %v828 = vpop.f32.mrb[0].mxu0
    %829 = vdwg.mxu0
    %v830 = vrcp.pop %v781
    %v831 = vmul.f32 %v825, %v830
    %832 = vrot.lane.b32.xlu0 %v640, 48
    %v833 = vpop.permute.xlu0 %832
    %834 = vrot.lane.b32.xlu0 %v670, 48
    %v835 = vpop.permute.xlu0 %834
    %v837 = vsel %vm677, %v833, 0
    %v840 = vsel %vm677, %v835, 0
    %842 = vmatprep.subr.bf16.mxu0 0
    %843 = vmatpush1.bf16.xpose.msra.mxu0 %v840
    %844 = vmatprep.subr.bf16.mxu0 0
    %845 = vmatpush1.bf16.xpose.msra.mxu0 0
    %846 = vmatprep.subr.bf16.mxu0 0
    %847 = vmatpush1.bf16.xpose.msra.mxu0 0
    %848 = vmatprep.subr.bf16.mxu0 0
    %849 = vmatpush1.bf16.xpose.msra.mxu0 0
    %850 = vmatprep.subr.bf16.mxu0 0
    %851 = vmatpush1.bf16.xpose.msra.mxu0 0
    %852 = vmatprep.subr.bf16.mxu0 0
    %853 = vmatpush1.bf16.xpose.msra.mxu0 0
    %854 = vmatprep.subr.bf16.mxu0 0
    %855 = vmatpush1.bf16.xpose.msra.mxu0 0
    %856 = vmatprep.subr.bf16.mxu0 0
    %857 = vmatpush1.bf16.xpose.msra.mxu0 0
    %858 = vmatprep.subr.bf16.mxu0 0
    %859 = vmatpush1.bf16.xpose.msra.mxu0 0
    %860 = vmatprep.subr.bf16.mxu0 0
    %861 = vmatpush1.bf16.xpose.msra.mxu0 0
    %862 = vmatprep.subr.bf16.mxu0 0
    %863 = vmatpush1.bf16.xpose.msra.mxu0 0
    %864 = vmatprep.subr.bf16.mxu0 0
    %865 = vmatpush1.bf16.xpose.msra.mxu0 0
    %866 = vmatprep.subr.bf16.mxu0 0
    %867 = vmatpush1.bf16.xpose.msra.mxu0 0
    %868 = vmatprep.subr.bf16.mxu0 0
    %869 = vmatpush1.bf16.xpose.msra.mxu0 0
    %870 = vmatprep.subr.bf16.mxu0 0
    %871 = vmatpush1.bf16.xpose.msra.mxu0 0
    %872 = vmatprep.subr.bf16.mxu0 0
    %873 = vmatpush1.bf16.xpose.msra.mxu0 0
    %874 = vmatprep.mubr.bf16.mxu0 0
    %875 = vmatmul.mubr.bf16.gmra.mrb[0].mxu0 %v837
    %v876 = vpop.f32.mrb[0].mxu0
    %v877 = vadd.f32 0.0, %v876
    %v878 = vpop.f32.mrb[0].mxu0
    %v879 = vpop.f32.mrb[0].mxu0
    %v880 = vpop.f32.mrb[0].mxu0
    %881 = vdwg.mxu0
    %883 = vrot.lane.b32.xlu0 %v617, 112
    %v884 = vpop.permute.xlu0 %883
    %886 = vrot.lane.b32.xlu0 %v655, 112
    %v887 = vpop.permute.xlu0 %886
    %v889 = vsel %vm677, %v884, 0
    %v892 = vsel %vm677, %v887, 0
    %894 = vmatprep.subr.bf16.mxu0 0
    %895 = vmatpush1.bf16.xpose.msra.mxu0 %v892
    %896 = vmatprep.subr.bf16.mxu0 0
    %897 = vmatpush1.bf16.xpose.msra.mxu0 0
    %898 = vmatprep.subr.bf16.mxu0 0
    %899 = vmatpush1.bf16.xpose.msra.mxu0 0
    %900 = vmatprep.subr.bf16.mxu0 0
    %901 = vmatpush1.bf16.xpose.msra.mxu0 0
    %902 = vmatprep.subr.bf16.mxu0 0
    %903 = vmatpush1.bf16.xpose.msra.mxu0 0
    %904 = vmatprep.subr.bf16.mxu0 0
    %905 = vmatpush1.bf16.xpose.msra.mxu0 0
    %906 = vmatprep.subr.bf16.mxu0 0
    %907 = vmatpush1.bf16.xpose.msra.mxu0 0
    %908 = vmatprep.subr.bf16.mxu0 0
    %909 = vmatpush1.bf16.xpose.msra.mxu0 0
    %910 = vmatprep.subr.bf16.mxu0 0
    %911 = vmatpush1.bf16.xpose.msra.mxu0 0
    %912 = vmatprep.subr.bf16.mxu0 0
    %913 = vmatpush1.bf16.xpose.msra.mxu0 0
    %914 = vmatprep.subr.bf16.mxu0 0
    %915 = vmatpush1.bf16.xpose.msra.mxu0 0
    %916 = vmatprep.subr.bf16.mxu0 0
    %917 = vmatpush1.bf16.xpose.msra.mxu0 0
    %918 = vmatprep.subr.bf16.mxu0 0
    %919 = vmatpush1.bf16.xpose.msra.mxu0 0
    %920 = vmatprep.subr.bf16.mxu0 0
    %921 = vmatpush1.bf16.xpose.msra.mxu0 0
    %922 = vmatprep.subr.bf16.mxu0 0
    %923 = vmatpush1.bf16.xpose.msra.mxu0 0
    %924 = vmatprep.subr.bf16.mxu0 0
    %925 = vmatpush1.bf16.xpose.msra.mxu0 0
    %926 = vmatprep.mubr.bf16.mxu0 0
    %927 = vmatmul.mubr.bf16.gmra.mrb[0].mxu0 %v889
    %v928 = vpop.f32.mrb[0].mxu0
    %v929 = vadd.f32 %v877, %v928
    %v930 = vpop.f32.mrb[0].mxu0
    %v931 = vpop.f32.mrb[0].mxu0
    %v932 = vpop.f32.mrb[0].mxu0
    %933 = vdwg.mxu0
    %v934 = vmul.f32 %v929, 0.17677669
    %v935 = vsel %vm324, %v934, -1e+30
    %v936 = vsel %vm772, %v935, -inf
    %937 = vmax.xlane.f32.xlu0 %v936
    %v938 = vpop.xlane.xlu0 %937
    %v939 = vsub.f32 %v935, %v938
    %v940 = vmul.f32 %v939, 1.442695
    %v941 = vpow.pop %v940
    %v942 = vsel %vm772, %v941, 0.0
    %943 = vadd.xlane.f32.xlu0 %v942
    %v944 = vpop.xlane.xlu0 %943
    %v945 = vpack.c.bf16 %v941, %v941
    %947 = vrot.lane.b32.xlu0 %v594, 96
    %v948 = vpop.permute.xlu0 %947
    %v950 = vsel %vm772, %v945, 0
    %v953 = vsel %vm786, %v948, 0
    %955 = vmatprep.subr.bf16.mxu0 0
    %956 = vmatpush1.bf16.msra.mxu0 %v953
    %957 = vmatprep.subr.bf16.mxu0 0
    %958 = vmatpush1.bf16.msra.mxu0 0
    %959 = vmatprep.subr.bf16.mxu0 0
    %960 = vmatpush1.bf16.msra.mxu0 0
    %961 = vmatprep.subr.bf16.mxu0 0
    %962 = vmatpush1.bf16.msra.mxu0 0
    %963 = vmatprep.subr.bf16.mxu0 0
    %964 = vmatpush1.bf16.msra.mxu0 0
    %965 = vmatprep.subr.bf16.mxu0 0
    %966 = vmatpush1.bf16.msra.mxu0 0
    %967 = vmatprep.subr.bf16.mxu0 0
    %968 = vmatpush1.bf16.msra.mxu0 0
    %969 = vmatprep.subr.bf16.mxu0 0
    %970 = vmatpush1.bf16.msra.mxu0 0
    %971 = vmatprep.subr.bf16.mxu0 0
    %972 = vmatpush1.bf16.msra.mxu0 0
    %973 = vmatprep.subr.bf16.mxu0 0
    %974 = vmatpush1.bf16.msra.mxu0 0
    %975 = vmatprep.subr.bf16.mxu0 0
    %976 = vmatpush1.bf16.msra.mxu0 0
    %977 = vmatprep.subr.bf16.mxu0 0
    %978 = vmatpush1.bf16.msra.mxu0 0
    %979 = vmatprep.subr.bf16.mxu0 0
    %980 = vmatpush1.bf16.msra.mxu0 0
    %981 = vmatprep.subr.bf16.mxu0 0
    %982 = vmatpush1.bf16.msra.mxu0 0
    %983 = vmatprep.subr.bf16.mxu0 0
    %984 = vmatpush1.bf16.msra.mxu0 0
    %985 = vmatprep.subr.bf16.mxu0 0
    %986 = vmatpush1.bf16.msra.mxu0 0
    %987 = vmatprep.mubr.bf16.mxu0 0
    %988 = vmatmul.mubr.bf16.gmra.mrb[0].mxu0 %v950
    %v989 = vpop.f32.mrb[0].mxu0
    %v990 = vadd.f32 0.0, %v989
    %v991 = vpop.f32.mrb[0].mxu0
    %v992 = vpop.f32.mrb[0].mxu0
    %v993 = vpop.f32.mrb[0].mxu0
    %994 = vdwg.mxu0
    %v995 = vrcp.pop %v944
    %v996 = vmul.f32 %v990, %v995
    %997 = vrot.lane.b32.xlu0 %v640, 32
    %v998 = vpop.permute.xlu0 %997
    %999 = vrot.lane.b32.xlu0 %v670, 32
    %v1000 = vpop.permute.xlu0 %999
    %v1002 = vsel %vm677, %v998, 0
    %v1005 = vsel %vm677, %v1000, 0
    %1007 = vmatprep.subr.bf16.mxu0 0
    %1008 = vmatpush1.bf16.xpose.msra.mxu0 %v1005
    %1009 = vmatprep.subr.bf16.mxu0 0
    %1010 = vmatpush1.bf16.xpose.msra.mxu0 0
    %1011 = vmatprep.subr.bf16.mxu0 0
    %1012 = vmatpush1.bf16.xpose.msra.mxu0 0
    %1013 = vmatprep.subr.bf16.mxu0 0
    %1014 = vmatpush1.bf16.xpose.msra.mxu0 0
    %1015 = vmatprep.subr.bf16.mxu0 0
    %1016 = vmatpush1.bf16.xpose.msra.mxu0 0
    %1017 = vmatprep.subr.bf16.mxu0 0
    %1018 = vmatpush1.bf16.xpose.msra.mxu0 0
    %1019 = vmatprep.subr.bf16.mxu0 0
    %1020 = vmatpush1.bf16.xpose.msra.mxu0 0
    %1021 = vmatprep.subr.bf16.mxu0 0
    %1022 = vmatpush1.bf16.xpose.msra.mxu0 0
    %1023 = vmatprep.subr.bf16.mxu0 0
    %1024 = vmatpush1.bf16.xpose.msra.mxu0 0
    %1025 = vmatprep.subr.bf16.mxu0 0
    %1026 = vmatpush1.bf16.xpose.msra.mxu0 0
    %1027 = vmatprep.subr.bf16.mxu0 0
    %1028 = vmatpush1.bf16.xpose.msra.mxu0 0
    %1029 = vmatprep.subr.bf16.mxu0 0
    %1030 = vmatpush1.bf16.xpose.msra.mxu0 0
    %1031 = vmatprep.subr.bf16.mxu0 0
    %1032 = vmatpush1.bf16.xpose.msra.mxu0 0
    %1033 = vmatprep.subr.bf16.mxu0 0
    %1034 = vmatpush1.bf16.xpose.msra.mxu0 0
    %1035 = vmatprep.subr.bf16.mxu0 0
    %1036 = vmatpush1.bf16.xpose.msra.mxu0 0
    %1037 = vmatprep.subr.bf16.mxu0 0
    %1038 = vmatpush1.bf16.xpose.msra.mxu0 0
    %1039 = vmatprep.mubr.bf16.mxu0 0
    %1040 = vmatmul.mubr.bf16.gmra.mrb[0].mxu0 %v1002
    %v1041 = vpop.f32.mrb[0].mxu0
    %v1042 = vadd.f32 0.0, %v1041
    %v1043 = vpop.f32.mrb[0].mxu0
    %v1044 = vpop.f32.mrb[0].mxu0
    %v1045 = vpop.f32.mrb[0].mxu0
    %1046 = vdwg.mxu0
    %1047 = vrot.lane.b32.xlu0 %v617, 96
    %v1048 = vpop.permute.xlu0 %1047
    %1049 = vrot.lane.b32.xlu0 %v655, 96
    %v1050 = vpop.permute.xlu0 %1049
    %v1052 = vsel %vm677, %v1048, 0
    %v1055 = vsel %vm677, %v1050, 0
    %1057 = vmatprep.subr.bf16.mxu0 0
    %1058 = vmatpush1.bf16.xpose.msra.mxu0 %v1055
    %1059 = vmatprep.subr.bf16.mxu0 0
    %1060 = vmatpush1.bf16.xpose.msra.mxu0 0
    %1061 = vmatprep.subr.bf16.mxu0 0
    %1062 = vmatpush1.bf16.xpose.msra.mxu0 0
    %1063 = vmatprep.subr.bf16.mxu0 0
    %1064 = vmatpush1.bf16.xpose.msra.mxu0 0
    %1065 = vmatprep.subr.bf16.mxu0 0
    %1066 = vmatpush1.bf16.xpose.msra.mxu0 0
    %1067 = vmatprep.subr.bf16.mxu0 0
    %1068 = vmatpush1.bf16.xpose.msra.mxu0 0
    %1069 = vmatprep.subr.bf16.mxu0 0
    %1070 = vmatpush1.bf16.xpose.msra.mxu0 0
    %1071 = vmatprep.subr.bf16.mxu0 0
    %1072 = vmatpush1.bf16.xpose.msra.mxu0 0
    %1073 = vmatprep.subr.bf16.mxu0 0
    %1074 = vmatpush1.bf16.xpose.msra.mxu0 0
    %1075 = vmatprep.subr.bf16.mxu0 0
    %1076 = vmatpush1.bf16.xpose.msra.mxu0 0
    %1077 = vmatprep.subr.bf16.mxu0 0
    %1078 = vmatpush1.bf16.xpose.msra.mxu0 0
    %1079 = vmatprep.subr.bf16.mxu0 0
    %1080 = vmatpush1.bf16.xpose.msra.mxu0 0
    %1081 = vmatprep.subr.bf16.mxu0 0
    %1082 = vmatpush1.bf16.xpose.msra.mxu0 0
    %1083 = vmatprep.subr.bf16.mxu0 0
    %1084 = vmatpush1.bf16.xpose.msra.mxu0 0
    %1085 = vmatprep.subr.bf16.mxu0 0
    %1086 = vmatpush1.bf16.xpose.msra.mxu0 0
    %1087 = vmatprep.subr.bf16.mxu0 0
    %1088 = vmatpush1.bf16.xpose.msra.mxu0 0
    %1089 = vmatprep.mubr.bf16.mxu0 0
    %1090 = vmatmul.mubr.bf16.gmra.mrb[0].mxu0 %v1052
    %v1091 = vpop.f32.mrb[0].mxu0
    %v1092 = vadd.f32 %v1042, %v1091
    %v1093 = vpop.f32.mrb[0].mxu0
    %v1094 = vpop.f32.mrb[0].mxu0
    %v1095 = vpop.f32.mrb[0].mxu0
    %1096 = vdwg.mxu0
    %v1097 = vmul.f32 %v1092, 0.17677669
    %v1098 = vsel %vm324, %v1097, -1e+30
    %v1099 = vsel %vm772, %v1098, -inf
    %1100 = vmax.xlane.f32.xlu0 %v1099
    %v1101 = vpop.xlane.xlu0 %1100
    %v1102 = vsub.f32 %v1098, %v1101
    %v1103 = vmul.f32 %v1102, 1.442695
    %v1104 = vpow.pop %v1103
    %v1105 = vsel %vm772, %v1104, 0.0
    %1106 = vadd.xlane.f32.xlu0 %v1105
    %v1107 = vpop.xlane.xlu0 %1106
    %v1108 = vpack.c.bf16 %v1104, %v1104
    %1109 = vrot.lane.b32.xlu0 %v594, 64
    %v1110 = vpop.permute.xlu0 %1109
    %v1112 = vsel %vm772, %v1108, 0
    %v1115 = vsel %vm786, %v1110, 0
    %1117 = vmatprep.subr.bf16.mxu0 0
    %1118 = vmatpush1.bf16.msra.mxu0 %v1115
    %1119 = vmatprep.subr.bf16.mxu0 0
    %1120 = vmatpush1.bf16.msra.mxu0 0
    %1121 = vmatprep.subr.bf16.mxu0 0
    %1122 = vmatpush1.bf16.msra.mxu0 0
    %1123 = vmatprep.subr.bf16.mxu0 0
    %1124 = vmatpush1.bf16.msra.mxu0 0
    %1125 = vmatprep.subr.bf16.mxu0 0
    %1126 = vmatpush1.bf16.msra.mxu0 0
    %1127 = vmatprep.subr.bf16.mxu0 0
    %1128 = vmatpush1.bf16.msra.mxu0 0
    %1129 = vmatprep.subr.bf16.mxu0 0
    %1130 = vmatpush1.bf16.msra.mxu0 0
    %1131 = vmatprep.subr.bf16.mxu0 0
    %1132 = vmatpush1.bf16.msra.mxu0 0
    %1133 = vmatprep.subr.bf16.mxu0 0
    %1134 = vmatpush1.bf16.msra.mxu0 0
    %1135 = vmatprep.subr.bf16.mxu0 0
    %1136 = vmatpush1.bf16.msra.mxu0 0
    %1137 = vmatprep.subr.bf16.mxu0 0
    %1138 = vmatpush1.bf16.msra.mxu0 0
    %1139 = vmatprep.subr.bf16.mxu0 0
    %1140 = vmatpush1.bf16.msra.mxu0 0
    %1141 = vmatprep.subr.bf16.mxu0 0
    %1142 = vmatpush1.bf16.msra.mxu0 0
    %1143 = vmatprep.subr.bf16.mxu0 0
    %1144 = vmatpush1.bf16.msra.mxu0 0
    %1145 = vmatprep.subr.bf16.mxu0 0
    %1146 = vmatpush1.bf16.msra.mxu0 0
    %1147 = vmatprep.subr.bf16.mxu0 0
    %1148 = vmatpush1.bf16.msra.mxu0 0
    %1149 = vmatprep.mubr.bf16.mxu0 0
    %1150 = vmatmul.mubr.bf16.gmra.mrb[0].mxu0 %v1112
    %v1151 = vpop.f32.mrb[0].mxu0
    %v1152 = vadd.f32 0.0, %v1151
    %v1153 = vpop.f32.mrb[0].mxu0
    %v1154 = vpop.f32.mrb[0].mxu0
    %v1155 = vpop.f32.mrb[0].mxu0
    %1156 = vdwg.mxu0
    %v1157 = vrcp.pop %v1107
    %v1158 = vmul.f32 %v1152, %v1157
    %1159 = vrot.lane.b32.xlu0 %v640, 16
    %v1160 = vpop.permute.xlu0 %1159
    %1161 = vrot.lane.b32.xlu0 %v670, 16
    %v1162 = vpop.permute.xlu0 %1161
    %v1164 = vsel %vm677, %v1160, 0
    %v1167 = vsel %vm677, %v1162, 0
    %1169 = vmatprep.subr.bf16.mxu0 0
    %1170 = vmatpush1.bf16.xpose.msra.mxu0 %v1167
    %1171 = vmatprep.subr.bf16.mxu0 0
    %1172 = vmatpush1.bf16.xpose.msra.mxu0 0
    %1173 = vmatprep.subr.bf16.mxu0 0
    %1174 = vmatpush1.bf16.xpose.msra.mxu0 0
    %1175 = vmatprep.subr.bf16.mxu0 0
    %1176 = vmatpush1.bf16.xpose.msra.mxu0 0
    %1177 = vmatprep.subr.bf16.mxu0 0
    %1178 = vmatpush1.bf16.xpose.msra.mxu0 0
    %1179 = vmatprep.subr.bf16.mxu0 0
    %1180 = vmatpush1.bf16.xpose.msra.mxu0 0
    %1181 = vmatprep.subr.bf16.mxu0 0
    %1182 = vmatpush1.bf16.xpose.msra.mxu0 0
    %1183 = vmatprep.subr.bf16.mxu0 0
    %1184 = vmatpush1.bf16.xpose.msra.mxu0 0
    %1185 = vmatprep.subr.bf16.mxu0 0
    %1186 = vmatpush1.bf16.xpose.msra.mxu0 0
    %1187 = vmatprep.subr.bf16.mxu0 0
    %1188 = vmatpush1.bf16.xpose.msra.mxu0 0
    %1189 = vmatprep.subr.bf16.mxu0 0
    %1190 = vmatpush1.bf16.xpose.msra.mxu0 0
    %1191 = vmatprep.subr.bf16.mxu0 0
    %1192 = vmatpush1.bf16.xpose.msra.mxu0 0
    %1193 = vmatprep.subr.bf16.mxu0 0
    %1194 = vmatpush1.bf16.xpose.msra.mxu0 0
    %1195 = vmatprep.subr.bf16.mxu0 0
    %1196 = vmatpush1.bf16.xpose.msra.mxu0 0
    %1197 = vmatprep.subr.bf16.mxu0 0
    %1198 = vmatpush1.bf16.xpose.msra.mxu0 0
    %1199 = vmatprep.subr.bf16.mxu0 0
    %1200 = vmatpush1.bf16.xpose.msra.mxu0 0
    %1201 = vmatprep.mubr.bf16.mxu0 0
    %1202 = vmatmul.mubr.bf16.gmra.mrb[0].mxu0 %v1164
    %v1203 = vpop.f32.mrb[0].mxu0
    %v1204 = vadd.f32 0.0, %v1203
    %v1205 = vpop.f32.mrb[0].mxu0
    %v1206 = vpop.f32.mrb[0].mxu0
    %v1207 = vpop.f32.mrb[0].mxu0
    %1208 = vdwg.mxu0
    %1209 = vrot.lane.b32.xlu0 %v617, 80
    %v1210 = vpop.permute.xlu0 %1209
    %1211 = vrot.lane.b32.xlu0 %v655, 80
    %v1212 = vpop.permute.xlu0 %1211
    %v1214 = vsel %vm677, %v1210, 0
    %v1217 = vsel %vm677, %v1212, 0
    %1219 = vmatprep.subr.bf16.mxu0 0
    %1220 = vmatpush1.bf16.xpose.msra.mxu0 %v1217
    %1221 = vmatprep.subr.bf16.mxu0 0
    %1222 = vmatpush1.bf16.xpose.msra.mxu0 0
    %1223 = vmatprep.subr.bf16.mxu0 0
    %1224 = vmatpush1.bf16.xpose.msra.mxu0 0
    %1225 = vmatprep.subr.bf16.mxu0 0
    %1226 = vmatpush1.bf16.xpose.msra.mxu0 0
    %1227 = vmatprep.subr.bf16.mxu0 0
    %1228 = vmatpush1.bf16.xpose.msra.mxu0 0
    %1229 = vmatprep.subr.bf16.mxu0 0
    %1230 = vmatpush1.bf16.xpose.msra.mxu0 0
    %1231 = vmatprep.subr.bf16.mxu0 0
    %1232 = vmatpush1.bf16.xpose.msra.mxu0 0
    %1233 = vmatprep.subr.bf16.mxu0 0
    %1234 = vmatpush1.bf16.xpose.msra.mxu0 0
    %1235 = vmatprep.subr.bf16.mxu0 0
    %1236 = vmatpush1.bf16.xpose.msra.mxu0 0
    %1237 = vmatprep.subr.bf16.mxu0 0
    %1238 = vmatpush1.bf16.xpose.msra.mxu0 0
    %1239 = vmatprep.subr.bf16.mxu0 0
    %1240 = vmatpush1.bf16.xpose.msra.mxu0 0
    %1241 = vmatprep.subr.bf16.mxu0 0
    %1242 = vmatpush1.bf16.xpose.msra.mxu0 0
    %1243 = vmatprep.subr.bf16.mxu0 0
    %1244 = vmatpush1.bf16.xpose.msra.mxu0 0
    %1245 = vmatprep.subr.bf16.mxu0 0
    %1246 = vmatpush1.bf16.xpose.msra.mxu0 0
    %1247 = vmatprep.subr.bf16.mxu0 0
    %1248 = vmatpush1.bf16.xpose.msra.mxu0 0
    %1249 = vmatprep.subr.bf16.mxu0 0
    %1250 = vmatpush1.bf16.xpose.msra.mxu0 0
    %1251 = vmatprep.mubr.bf16.mxu0 0
    %1252 = vmatmul.mubr.bf16.gmra.mrb[0].mxu0 %v1214
    %v1253 = vpop.f32.mrb[0].mxu0
    %v1254 = vadd.f32 %v1204, %v1253
    %v1255 = vpop.f32.mrb[0].mxu0
    %v1256 = vpop.f32.mrb[0].mxu0
    %v1257 = vpop.f32.mrb[0].mxu0
    %1258 = vdwg.mxu0
    %v1259 = vmul.f32 %v1254, 0.17677669
    %v1260 = vsel %vm324, %v1259, -1e+30
    %v1261 = vsel %vm772, %v1260, -inf
    %1262 = vmax.xlane.f32.xlu0 %v1261
    %v1263 = vpop.xlane.xlu0 %1262
    %v1264 = vsub.f32 %v1260, %v1263
    %v1265 = vmul.f32 %v1264, 1.442695
    %v1266 = vpow.pop %v1265
    %v1267 = vsel %vm772, %v1266, 0.0
    %1268 = vadd.xlane.f32.xlu0 %v1267
    %v1269 = vpop.xlane.xlu0 %1268
    %v1270 = vpack.c.bf16 %v1266, %v1266
    %1271 = vrot.lane.b32.xlu0 %v594, 32
    %v1272 = vpop.permute.xlu0 %1271
    %v1274 = vsel %vm772, %v1270, 0
    %v1277 = vsel %vm786, %v1272, 0
    %1279 = vmatprep.subr.bf16.mxu0 0
    %1280 = vmatpush1.bf16.msra.mxu0 %v1277
    %1281 = vmatprep.subr.bf16.mxu0 0
    %1282 = vmatpush1.bf16.msra.mxu0 0
    %1283 = vmatprep.subr.bf16.mxu0 0
    %1284 = vmatpush1.bf16.msra.mxu0 0
    %1285 = vmatprep.subr.bf16.mxu0 0
    %1286 = vmatpush1.bf16.msra.mxu0 0
    %1287 = vmatprep.subr.bf16.mxu0 0
    %1288 = vmatpush1.bf16.msra.mxu0 0
    %1289 = vmatprep.subr.bf16.mxu0 0
    %1290 = vmatpush1.bf16.msra.mxu0 0
    %1291 = vmatprep.subr.bf16.mxu0 0
    %1292 = vmatpush1.bf16.msra.mxu0 0
    %1293 = vmatprep.subr.bf16.mxu0 0
    %1294 = vmatpush1.bf16.msra.mxu0 0
    %1295 = vmatprep.subr.bf16.mxu0 0
    %1296 = vmatpush1.bf16.msra.mxu0 0
    %1297 = vmatprep.subr.bf16.mxu0 0
    %1298 = vmatpush1.bf16.msra.mxu0 0
    %1299 = vmatprep.subr.bf16.mxu0 0
    %1300 = vmatpush1.bf16.msra.mxu0 0
    %1301 = vmatprep.subr.bf16.mxu0 0
    %1302 = vmatpush1.bf16.msra.mxu0 0
    %1303 = vmatprep.subr.bf16.mxu0 0
    %1304 = vmatpush1.bf16.msra.mxu0 0
    %1305 = vmatprep.subr.bf16.mxu0 0
    %1306 = vmatpush1.bf16.msra.mxu0 0
    %1307 = vmatprep.subr.bf16.mxu0 0
    %1308 = vmatpush1.bf16.msra.mxu0 0
    %1309 = vmatprep.subr.bf16.mxu0 0
    %1310 = vmatpush1.bf16.msra.mxu0 0
    %1311 = vmatprep.mubr.bf16.mxu0 0
    %1312 = vmatmul.mubr.bf16.gmra.mrb[0].mxu0 %v1274
    %v1313 = vpop.f32.mrb[0].mxu0
    %v1314 = vadd.f32 0.0, %v1313
    %v1315 = vpop.f32.mrb[0].mxu0
    %v1316 = vpop.f32.mrb[0].mxu0
    %v1317 = vpop.f32.mrb[0].mxu0
    %1318 = vdwg.mxu0
    %v1319 = vrcp.pop %v1269
    %v1320 = vmul.f32 %v1314, %v1319
    %1322 = vrot.lane.b32.xlu0 %v996, 32
    %v1323 = vpop.permute.xlu0 %1322
    %1326 = vrot.lane.b32.xlu0 %v1158, 64
    %v1327 = vpop.permute.xlu0 %1326
    %1330 = vrot.lane.b32.xlu0 %v1320, 96
    %v1331 = vpop.permute.xlu0 %1330
    %vm1333 = vcmask 261120
    %v1334 = vsel %vm1333, %v831, %v1323
    %vm1335 = vcmask 523264
    %v1336 = vsel %vm1335, %v1334, %v1327
    %vm1337 = vcmask 785408
    %v1338 = vsel %vm1337, %v1336, %v1331
    %v1339 = vrot.slane %v640, 4
    %1340 = vrot.lane.b32.xlu0 %v1339, 64
    %v1341 = vpop.permute.xlu0 %1340
    %v1342 = vrot.slane %v670, 4
    %1343 = vrot.lane.b32.xlu0 %v1342, 64
    %v1344 = vpop.permute.xlu0 %1343
    %v1346 = vsel %vm677, %v1341, 0
    %v1349 = vsel %vm677, %v1344, 0
    %1351 = vmatprep.subr.bf16.mxu0 0
    %1352 = vmatpush1.bf16.xpose.msra.mxu0 %v1349
    %1353 = vmatprep.subr.bf16.mxu0 0
    %1354 = vmatpush1.bf16.xpose.msra.mxu0 0
    %1355 = vmatprep.subr.bf16.mxu0 0
    %1356 = vmatpush1.bf16.xpose.msra.mxu0 0
    %1357 = vmatprep.subr.bf16.mxu0 0
    %1358 = vmatpush1.bf16.xpose.msra.mxu0 0
    %1359 = vmatprep.subr.bf16.mxu0 0
    %1360 = vmatpush1.bf16.xpose.msra.mxu0 0
    %1361 = vmatprep.subr.bf16.mxu0 0
    %1362 = vmatpush1.bf16.xpose.msra.mxu0 0
    %1363 = vmatprep.subr.bf16.mxu0 0
    %1364 = vmatpush1.bf16.xpose.msra.mxu0 0
    %1365 = vmatprep.subr.bf16.mxu0 0
    %1366 = vmatpush1.bf16.xpose.msra.mxu0 0
    %1367 = vmatprep.subr.bf16.mxu0 0
    %1368 = vmatpush1.bf16.xpose.msra.mxu0 0
    %1369 = vmatprep.subr.bf16.mxu0 0
    %1370 = vmatpush1.bf16.xpose.msra.mxu0 0
    %1371 = vmatprep.subr.bf16.mxu0 0
    %1372 = vmatpush1.bf16.xpose.msra.mxu0 0
    %1373 = vmatprep.subr.bf16.mxu0 0
    %1374 = vmatpush1.bf16.xpose.msra.mxu0 0
    %1375 = vmatprep.subr.bf16.mxu0 0
    %1376 = vmatpush1.bf16.xpose.msra.mxu0 0
    %1377 = vmatprep.subr.bf16.mxu0 0
    %1378 = vmatpush1.bf16.xpose.msra.mxu0 0
    %1379 = vmatprep.subr.bf16.mxu0 0
    %1380 = vmatpush1.bf16.xpose.msra.mxu0 0
    %1381 = vmatprep.subr.bf16.mxu0 0
    %1382 = vmatpush1.bf16.xpose.msra.mxu0 0
    %1383 = vmatprep.mubr.bf16.mxu0 0
    %1384 = vmatmul.mubr.bf16.gmra.mrb[0].mxu0 %v1346
    %v1385 = vpop.f32.mrb[0].mxu0
    %v1386 = vadd.f32 0.0, %v1385
    %v1387 = vpop.f32.mrb[0].mxu0
    %v1388 = vpop.f32.mrb[0].mxu0
    %v1389 = vpop.f32.mrb[0].mxu0
    %1390 = vdwg.mxu0
    %v1391 = vrot.slane %v617, 4
    %v1392 = vrot.slane %v655, 4
    %v1394 = vsel %vm677, %v1391, 0
    %v1397 = vsel %vm677, %v1392, 0
    %1399 = vmatprep.subr.bf16.mxu0 0
    %1400 = vmatpush1.bf16.xpose.msra.mxu0 %v1397
    %1401 = vmatprep.subr.bf16.mxu0 0
    %1402 = vmatpush1.bf16.xpose.msra.mxu0 0
    %1403 = vmatprep.subr.bf16.mxu0 0
    %1404 = vmatpush1.bf16.xpose.msra.mxu0 0
    %1405 = vmatprep.subr.bf16.mxu0 0
    %1406 = vmatpush1.bf16.xpose.msra.mxu0 0
    %1407 = vmatprep.subr.bf16.mxu0 0
    %1408 = vmatpush1.bf16.xpose.msra.mxu0 0
    %1409 = vmatprep.subr.bf16.mxu0 0
    %1410 = vmatpush1.bf16.xpose.msra.mxu0 0
    %1411 = vmatprep.subr.bf16.mxu0 0
    %1412 = vmatpush1.bf16.xpose.msra.mxu0 0
    %1413 = vmatprep.subr.bf16.mxu0 0
    %1414 = vmatpush1.bf16.xpose.msra.mxu0 0
    %1415 = vmatprep.subr.bf16.mxu0 0
    %1416 = vmatpush1.bf16.xpose.msra.mxu0 0
    %1417 = vmatprep.subr.bf16.mxu0 0
    %1418 = vmatpush1.bf16.xpose.msra.mxu0 0
    %1419 = vmatprep.subr.bf16.mxu0 0
    %1420 = vmatpush1.bf16.xpose.msra.mxu0 0
    %1421 = vmatprep.subr.bf16.mxu0 0
    %1422 = vmatpush1.bf16.xpose.msra.mxu0 0
    %1423 = vmatprep.subr.bf16.mxu0 0
    %1424 = vmatpush1.bf16.xpose.msra.mxu0 0
    %1425 = vmatprep.subr.bf16.mxu0 0
    %1426 = vmatpush1.bf16.xpose.msra.mxu0 0
    %1427 = vmatprep.subr.bf16.mxu0 0
    %1428 = vmatpush1.bf16.xpose.msra.mxu0 0
    %1429 = vmatprep.subr.bf16.mxu0 0
    %1430 = vmatpush1.bf16.xpose.msra.mxu0 0
    %1431 = vmatprep.mubr.bf16.mxu0 0
    %1432 = vmatmul.mubr.bf16.gmra.mrb[0].mxu0 %v1394
    %v1433 = vpop.f32.mrb[0].mxu0
    %v1434 = vadd.f32 %v1386, %v1433
    %v1435 = vpop.f32.mrb[0].mxu0
    %v1436 = vpop.f32.mrb[0].mxu0
    %v1437 = vpop.f32.mrb[0].mxu0
    %1438 = vdwg.mxu0
    %v1439 = vmul.f32 %v1434, 0.17677669
    %v1440 = vsel %vm324, %v1439, -1e+30
    %v1441 = vsel %vm772, %v1440, -inf
    %1442 = vmax.xlane.f32.xlu0 %v1441
    %v1443 = vpop.xlane.xlu0 %1442
    %v1444 = vsub.f32 %v1440, %v1443
    %v1445 = vmul.f32 %v1444, 1.442695
    %v1446 = vpow.pop %v1445
    %v1447 = vsel %vm772, %v1446, 0.0
    %1448 = vadd.xlane.f32.xlu0 %v1447
    %v1449 = vpop.xlane.xlu0 %1448
    %v1450 = vpack.c.bf16 %v1446, %v1446
    %v1451 = vrot.slane %v594, 4
    %v1453 = vsel %vm772, %v1450, 0
    %v1456 = vsel %vm786, %v1451, 0
    %1458 = vmatprep.subr.bf16.mxu0 0
    %1459 = vmatpush1.bf16.msra.mxu0 %v1456
    %1460 = vmatprep.subr.bf16.mxu0 0
    %1461 = vmatpush1.bf16.msra.mxu0 0
    %1462 = vmatprep.subr.bf16.mxu0 0
    %1463 = vmatpush1.bf16.msra.mxu0 0
    %1464 = vmatprep.subr.bf16.mxu0 0
    %1465 = vmatpush1.bf16.msra.mxu0 0
    %1466 = vmatprep.subr.bf16.mxu0 0
    %1467 = vmatpush1.bf16.msra.mxu0 0
    %1468 = vmatprep.subr.bf16.mxu0 0
    %1469 = vmatpush1.bf16.msra.mxu0 0
    %1470 = vmatprep.subr.bf16.mxu0 0
    %1471 = vmatpush1.bf16.msra.mxu0 0
    %1472 = vmatprep.subr.bf16.mxu0 0
    %1473 = vmatpush1.bf16.msra.mxu0 0
    %1474 = vmatprep.subr.bf16.mxu0 0
    %1475 = vmatpush1.bf16.msra.mxu0 0
    %1476 = vmatprep.subr.bf16.mxu0 0
    %1477 = vmatpush1.bf16.msra.mxu0 0
    %1478 = vmatprep.subr.bf16.mxu0 0
    %1479 = vmatpush1.bf16.msra.mxu0 0
    %1480 = vmatprep.subr.bf16.mxu0 0
    %1481 = vmatpush1.bf16.msra.mxu0 0
    %1482 = vmatprep.subr.bf16.mxu0 0
    %1483 = vmatpush1.bf16.msra.mxu0 0
    %1484 = vmatprep.subr.bf16.mxu0 0
    %1485 = vmatpush1.bf16.msra.mxu0 0
    %1486 = vmatprep.subr.bf16.mxu0 0
    %1487 = vmatpush1.bf16.msra.mxu0 0
    %1488 = vmatprep.subr.bf16.mxu0 0
    %1489 = vmatpush1.bf16.msra.mxu0 0
    %1490 = vmatprep.mubr.bf16.mxu0 0
    %1491 = vmatmul.mubr.bf16.gmra.mrb[0].mxu0 %v1453
    %v1492 = vpop.f32.mrb[0].mxu0
    %v1493 = vadd.f32 0.0, %v1492
    %v1494 = vpop.f32.mrb[0].mxu0
    %v1495 = vpop.f32.mrb[0].mxu0
    %v1496 = vpop.f32.mrb[0].mxu0
    %1497 = vdwg.mxu0
    %v1498 = vrcp.pop %v1449
    %v1499 = vmul.f32 %v1493, %v1498
    %1500 = vrot.lane.b32.xlu0 %v1339, 48
    %v1501 = vpop.permute.xlu0 %1500
    %1502 = vrot.lane.b32.xlu0 %v1342, 48
    %v1503 = vpop.permute.xlu0 %1502
    %v1505 = vsel %vm677, %v1501, 0
    %v1508 = vsel %vm677, %v1503, 0
    %1510 = vmatprep.subr.bf16.mxu0 0
    %1511 = vmatpush1.bf16.xpose.msra.mxu0 %v1508
    %1512 = vmatprep.subr.bf16.mxu0 0
    %1513 = vmatpush1.bf16.xpose.msra.mxu0 0
    %1514 = vmatprep.subr.bf16.mxu0 0
    %1515 = vmatpush1.bf16.xpose.msra.mxu0 0
    %1516 = vmatprep.subr.bf16.mxu0 0
    %1517 = vmatpush1.bf16.xpose.msra.mxu0 0
    %1518 = vmatprep.subr.bf16.mxu0 0
    %1519 = vmatpush1.bf16.xpose.msra.mxu0 0
    %1520 = vmatprep.subr.bf16.mxu0 0
    %1521 = vmatpush1.bf16.xpose.msra.mxu0 0
    %1522 = vmatprep.subr.bf16.mxu0 0
    %1523 = vmatpush1.bf16.xpose.msra.mxu0 0
    %1524 = vmatprep.subr.bf16.mxu0 0
    %1525 = vmatpush1.bf16.xpose.msra.mxu0 0
    %1526 = vmatprep.subr.bf16.mxu0 0
    %1527 = vmatpush1.bf16.xpose.msra.mxu0 0
    %1528 = vmatprep.subr.bf16.mxu0 0
    %1529 = vmatpush1.bf16.xpose.msra.mxu0 0
    %1530 = vmatprep.subr.bf16.mxu0 0
    %1531 = vmatpush1.bf16.xpose.msra.mxu0 0
    %1532 = vmatprep.subr.bf16.mxu0 0
    %1533 = vmatpush1.bf16.xpose.msra.mxu0 0
    %1534 = vmatprep.subr.bf16.mxu0 0
    %1535 = vmatpush1.bf16.xpose.msra.mxu0 0
    %1536 = vmatprep.subr.bf16.mxu0 0
    %1537 = vmatpush1.bf16.xpose.msra.mxu0 0
    %1538 = vmatprep.subr.bf16.mxu0 0
    %1539 = vmatpush1.bf16.xpose.msra.mxu0 0
    %1540 = vmatprep.subr.bf16.mxu0 0
    %1541 = vmatpush1.bf16.xpose.msra.mxu0 0
    %1542 = vmatprep.mubr.bf16.mxu0 0
    %1543 = vmatmul.mubr.bf16.gmra.mrb[0].mxu0 %v1505
    %v1544 = vpop.f32.mrb[0].mxu0
    %v1545 = vadd.f32 0.0, %v1544
    %v1546 = vpop.f32.mrb[0].mxu0
    %v1547 = vpop.f32.mrb[0].mxu0
    %v1548 = vpop.f32.mrb[0].mxu0
    %1549 = vdwg.mxu0
    %1550 = vrot.lane.b32.xlu0 %v1391, 112
    %v1551 = vpop.permute.xlu0 %1550
    %1552 = vrot.lane.b32.xlu0 %v1392, 112
    %v1553 = vpop.permute.xlu0 %1552
    %v1555 = vsel %vm677, %v1551, 0
    %v1558 = vsel %vm677, %v1553, 0
    %1560 = vmatprep.subr.bf16.mxu0 0
    %1561 = vmatpush1.bf16.xpose.msra.mxu0 %v1558
    %1562 = vmatprep.subr.bf16.mxu0 0
    %1563 = vmatpush1.bf16.xpose.msra.mxu0 0
    %1564 = vmatprep.subr.bf16.mxu0 0
    %1565 = vmatpush1.bf16.xpose.msra.mxu0 0
    %1566 = vmatprep.subr.bf16.mxu0 0
    %1567 = vmatpush1.bf16.xpose.msra.mxu0 0
    %1568 = vmatprep.subr.bf16.mxu0 0
    %1569 = vmatpush1.bf16.xpose.msra.mxu0 0
    %1570 = vmatprep.subr.bf16.mxu0 0
    %1571 = vmatpush1.bf16.xpose.msra.mxu0 0
    %1572 = vmatprep.subr.bf16.mxu0 0
    %1573 = vmatpush1.bf16.xpose.msra.mxu0 0
    %1574 = vmatprep.subr.bf16.mxu0 0
    %1575 = vmatpush1.bf16.xpose.msra.mxu0 0
    %1576 = vmatprep.subr.bf16.mxu0 0
    %1577 = vmatpush1.bf16.xpose.msra.mxu0 0
    %1578 = vmatprep.subr.bf16.mxu0 0
    %1579 = vmatpush1.bf16.xpose.msra.mxu0 0
    %1580 = vmatprep.subr.bf16.mxu0 0
    %1581 = vmatpush1.bf16.xpose.msra.mxu0 0
    %1582 = vmatprep.subr.bf16.mxu0 0
    %1583 = vmatpush1.bf16.xpose.msra.mxu0 0
    %1584 = vmatprep.subr.bf16.mxu0 0
    %1585 = vmatpush1.bf16.xpose.msra.mxu0 0
    %1586 = vmatprep.subr.bf16.mxu0 0
    %1587 = vmatpush1.bf16.xpose.msra.mxu0 0
    %1588 = vmatprep.subr.bf16.mxu0 0
    %1589 = vmatpush1.bf16.xpose.msra.mxu0 0
    %1590 = vmatprep.subr.bf16.mxu0 0
    %1591 = vmatpush1.bf16.xpose.msra.mxu0 0
    %1592 = vmatprep.mubr.bf16.mxu0 0
    %1593 = vmatmul.mubr.bf16.gmra.mrb[0].mxu0 %v1555
    %v1594 = vpop.f32.mrb[0].mxu0
    %v1595 = vadd.f32 %v1545, %v1594
    %v1596 = vpop.f32.mrb[0].mxu0
    %v1597 = vpop.f32.mrb[0].mxu0
    %v1598 = vpop.f32.mrb[0].mxu0
    %1599 = vdwg.mxu0
    %v1600 = vmul.f32 %v1595, 0.17677669
    %v1601 = vsel %vm324, %v1600, -1e+30
    %v1602 = vsel %vm772, %v1601, -inf
    %1603 = vmax.xlane.f32.xlu0 %v1602
    %v1604 = vpop.xlane.xlu0 %1603
    %v1605 = vsub.f32 %v1601, %v1604
    %v1606 = vmul.f32 %v1605, 1.442695
    %v1607 = vpow.pop %v1606
    %v1608 = vsel %vm772, %v1607, 0.0
    %1609 = vadd.xlane.f32.xlu0 %v1608
    %v1610 = vpop.xlane.xlu0 %1609
    %v1611 = vpack.c.bf16 %v1607, %v1607
    %1612 = vrot.lane.b32.xlu0 %v1451, 96
    %v1613 = vpop.permute.xlu0 %1612
    %v1615 = vsel %vm772, %v1611, 0
    %v1618 = vsel %vm786, %v1613, 0
    %1620 = vmatprep.subr.bf16.mxu0 0
    %1621 = vmatpush1.bf16.msra.mxu0 %v1618
    %1622 = vmatprep.subr.bf16.mxu0 0
    %1623 = vmatpush1.bf16.msra.mxu0 0
    %1624 = vmatprep.subr.bf16.mxu0 0
    %1625 = vmatpush1.bf16.msra.mxu0 0
    %1626 = vmatprep.subr.bf16.mxu0 0
    %1627 = vmatpush1.bf16.msra.mxu0 0
    %1628 = vmatprep.subr.bf16.mxu0 0
    %1629 = vmatpush1.bf16.msra.mxu0 0
    %1630 = vmatprep.subr.bf16.mxu0 0
    %1631 = vmatpush1.bf16.msra.mxu0 0
    %1632 = vmatprep.subr.bf16.mxu0 0
    %1633 = vmatpush1.bf16.msra.mxu0 0
    %1634 = vmatprep.subr.bf16.mxu0 0
    %1635 = vmatpush1.bf16.msra.mxu0 0
    %1636 = vmatprep.subr.bf16.mxu0 0
    %1637 = vmatpush1.bf16.msra.mxu0 0
    %1638 = vmatprep.subr.bf16.mxu0 0
    %1639 = vmatpush1.bf16.msra.mxu0 0
    %1640 = vmatprep.subr.bf16.mxu0 0
    %1641 = vmatpush1.bf16.msra.mxu0 0
    %1642 = vmatprep.subr.bf16.mxu0 0
    %1643 = vmatpush1.bf16.msra.mxu0 0
    %1644 = vmatprep.subr.bf16.mxu0 0
    %1645 = vmatpush1.bf16.msra.mxu0 0
    %1646 = vmatprep.subr.bf16.mxu0 0
    %1647 = vmatpush1.bf16.msra.mxu0 0
    %1648 = vmatprep.subr.bf16.mxu0 0
    %1649 = vmatpush1.bf16.msra.mxu0 0
    %1650 = vmatprep.subr.bf16.mxu0 0
    %1651 = vmatpush1.bf16.msra.mxu0 0
    %1652 = vmatprep.mubr.bf16.mxu0 0
    %1653 = vmatmul.mubr.bf16.gmra.mrb[0].mxu0 %v1615
    %v1654 = vpop.f32.mrb[0].mxu0
    %v1655 = vadd.f32 0.0, %v1654
    %v1656 = vpop.f32.mrb[0].mxu0
    %v1657 = vpop.f32.mrb[0].mxu0
    %v1658 = vpop.f32.mrb[0].mxu0
    %1659 = vdwg.mxu0
    %v1660 = vrcp.pop %v1610
    %v1661 = vmul.f32 %v1655, %v1660
    %1662 = vrot.lane.b32.xlu0 %v1339, 32
    %v1663 = vpop.permute.xlu0 %1662
    %1664 = vrot.lane.b32.xlu0 %v1342, 32
    %v1665 = vpop.permute.xlu0 %1664
    %v1667 = vsel %vm677, %v1663, 0
    %v1670 = vsel %vm677, %v1665, 0
    %1672 = vmatprep.subr.bf16.mxu0 0
    %1673 = vmatpush1.bf16.xpose.msra.mxu0 %v1670
    %1674 = vmatprep.subr.bf16.mxu0 0
    %1675 = vmatpush1.bf16.xpose.msra.mxu0 0
    %1676 = vmatprep.subr.bf16.mxu0 0
    %1677 = vmatpush1.bf16.xpose.msra.mxu0 0
    %1678 = vmatprep.subr.bf16.mxu0 0
    %1679 = vmatpush1.bf16.xpose.msra.mxu0 0
    %1680 = vmatprep.subr.bf16.mxu0 0
    %1681 = vmatpush1.bf16.xpose.msra.mxu0 0
    %1682 = vmatprep.subr.bf16.mxu0 0
    %1683 = vmatpush1.bf16.xpose.msra.mxu0 0
    %1684 = vmatprep.subr.bf16.mxu0 0
    %1685 = vmatpush1.bf16.xpose.msra.mxu0 0
    %1686 = vmatprep.subr.bf16.mxu0 0
    %1687 = vmatpush1.bf16.xpose.msra.mxu0 0
    %1688 = vmatprep.subr.bf16.mxu0 0
    %1689 = vmatpush1.bf16.xpose.msra.mxu0 0
    %1690 = vmatprep.subr.bf16.mxu0 0
    %1691 = vmatpush1.bf16.xpose.msra.mxu0 0
    %1692 = vmatprep.subr.bf16.mxu0 0
    %1693 = vmatpush1.bf16.xpose.msra.mxu0 0
    %1694 = vmatprep.subr.bf16.mxu0 0
    %1695 = vmatpush1.bf16.xpose.msra.mxu0 0
    %1696 = vmatprep.subr.bf16.mxu0 0
    %1697 = vmatpush1.bf16.xpose.msra.mxu0 0
    %1698 = vmatprep.subr.bf16.mxu0 0
    %1699 = vmatpush1.bf16.xpose.msra.mxu0 0
    %1700 = vmatprep.subr.bf16.mxu0 0
    %1701 = vmatpush1.bf16.xpose.msra.mxu0 0
    %1702 = vmatprep.subr.bf16.mxu0 0
    %1703 = vmatpush1.bf16.xpose.msra.mxu0 0
    %1704 = vmatprep.mubr.bf16.mxu0 0
    %1705 = vmatmul.mubr.bf16.gmra.mrb[0].mxu0 %v1667
    %v1706 = vpop.f32.mrb[0].mxu0
    %v1707 = vadd.f32 0.0, %v1706
    %v1708 = vpop.f32.mrb[0].mxu0
    %v1709 = vpop.f32.mrb[0].mxu0
    %v1710 = vpop.f32.mrb[0].mxu0
    %1711 = vdwg.mxu0
    %1712 = vrot.lane.b32.xlu0 %v1391, 96
    %v1713 = vpop.permute.xlu0 %1712
    %1714 = vrot.lane.b32.xlu0 %v1392, 96
    %v1715 = vpop.permute.xlu0 %1714
    %v1717 = vsel %vm677, %v1713, 0
    %v1720 = vsel %vm677, %v1715, 0
    %1722 = vmatprep.subr.bf16.mxu0 0
    %1723 = vmatpush1.bf16.xpose.msra.mxu0 %v1720
    %1724 = vmatprep.subr.bf16.mxu0 0
    %1725 = vmatpush1.bf16.xpose.msra.mxu0 0
    %1726 = vmatprep.subr.bf16.mxu0 0
    %1727 = vmatpush1.bf16.xpose.msra.mxu0 0
    %1728 = vmatprep.subr.bf16.mxu0 0
    %1729 = vmatpush1.bf16.xpose.msra.mxu0 0
    %1730 = vmatprep.subr.bf16.mxu0 0
    %1731 = vmatpush1.bf16.xpose.msra.mxu0 0
    %1732 = vmatprep.subr.bf16.mxu0 0
    %1733 = vmatpush1.bf16.xpose.msra.mxu0 0
    %1734 = vmatprep.subr.bf16.mxu0 0
    %1735 = vmatpush1.bf16.xpose.msra.mxu0 0
    %1736 = vmatprep.subr.bf16.mxu0 0
    %1737 = vmatpush1.bf16.xpose.msra.mxu0 0
    %1738 = vmatprep.subr.bf16.mxu0 0
    %1739 = vmatpush1.bf16.xpose.msra.mxu0 0
    %1740 = vmatprep.subr.bf16.mxu0 0
    %1741 = vmatpush1.bf16.xpose.msra.mxu0 0
    %1742 = vmatprep.subr.bf16.mxu0 0
    %1743 = vmatpush1.bf16.xpose.msra.mxu0 0
    %1744 = vmatprep.subr.bf16.mxu0 0
    %1745 = vmatpush1.bf16.xpose.msra.mxu0 0
    %1746 = vmatprep.subr.bf16.mxu0 0
    %1747 = vmatpush1.bf16.xpose.msra.mxu0 0
    %1748 = vmatprep.subr.bf16.mxu0 0
    %1749 = vmatpush1.bf16.xpose.msra.mxu0 0
    %1750 = vmatprep.subr.bf16.mxu0 0
    %1751 = vmatpush1.bf16.xpose.msra.mxu0 0
    %1752 = vmatprep.subr.bf16.mxu0 0
    %1753 = vmatpush1.bf16.xpose.msra.mxu0 0
    %1754 = vmatprep.mubr.bf16.mxu0 0
    %1755 = vmatmul.mubr.bf16.gmra.mrb[0].mxu0 %v1717
    %v1756 = vpop.f32.mrb[0].mxu0
    %v1757 = vadd.f32 %v1707, %v1756
    %v1758 = vpop.f32.mrb[0].mxu0
    %v1759 = vpop.f32.mrb[0].mxu0
    %v1760 = vpop.f32.mrb[0].mxu0
    %1761 = vdwg.mxu0
    %v1762 = vmul.f32 %v1757, 0.17677669
    %v1763 = vsel %vm324, %v1762, -1e+30
    %v1764 = vsel %vm772, %v1763, -inf
    %1765 = vmax.xlane.f32.xlu0 %v1764
    %v1766 = vpop.xlane.xlu0 %1765
    %v1767 = vsub.f32 %v1763, %v1766
    %v1768 = vmul.f32 %v1767, 1.442695
    %v1769 = vpow.pop %v1768
    %v1770 = vsel %vm772, %v1769, 0.0
    %1771 = vadd.xlane.f32.xlu0 %v1770
    %v1772 = vpop.xlane.xlu0 %1771
    %v1773 = vpack.c.bf16 %v1769, %v1769
    %1774 = vrot.lane.b32.xlu0 %v1451, 64
    %v1775 = vpop.permute.xlu0 %1774
    %v1777 = vsel %vm772, %v1773, 0
    %v1780 = vsel %vm786, %v1775, 0
    %1782 = vmatprep.subr.bf16.mxu0 0
    %1783 = vmatpush1.bf16.msra.mxu0 %v1780
    %1784 = vmatprep.subr.bf16.mxu0 0
    %1785 = vmatpush1.bf16.msra.mxu0 0
    %1786 = vmatprep.subr.bf16.mxu0 0
    %1787 = vmatpush1.bf16.msra.mxu0 0
    %1788 = vmatprep.subr.bf16.mxu0 0
    %1789 = vmatpush1.bf16.msra.mxu0 0
    %1790 = vmatprep.subr.bf16.mxu0 0
    %1791 = vmatpush1.bf16.msra.mxu0 0
    %1792 = vmatprep.subr.bf16.mxu0 0
    %1793 = vmatpush1.bf16.msra.mxu0 0
    %1794 = vmatprep.subr.bf16.mxu0 0
    %1795 = vmatpush1.bf16.msra.mxu0 0
    %1796 = vmatprep.subr.bf16.mxu0 0
    %1797 = vmatpush1.bf16.msra.mxu0 0
    %1798 = vmatprep.subr.bf16.mxu0 0
    %1799 = vmatpush1.bf16.msra.mxu0 0
    %1800 = vmatprep.subr.bf16.mxu0 0
    %1801 = vmatpush1.bf16.msra.mxu0 0
    %1802 = vmatprep.subr.bf16.mxu0 0
    %1803 = vmatpush1.bf16.msra.mxu0 0
    %1804 = vmatprep.subr.bf16.mxu0 0
    %1805 = vmatpush1.bf16.msra.mxu0 0
    %1806 = vmatprep.subr.bf16.mxu0 0
    %1807 = vmatpush1.bf16.msra.mxu0 0
    %1808 = vmatprep.subr.bf16.mxu0 0
    %1809 = vmatpush1.bf16.msra.mxu0 0
    %1810 = vmatprep.subr.bf16.mxu0 0
    %1811 = vmatpush1.bf16.msra.mxu0 0
    %1812 = vmatprep.subr.bf16.mxu0 0
    %1813 = vmatpush1.bf16.msra.mxu0 0
    %1814 = vmatprep.mubr.bf16.mxu0 0
    %1815 = vmatmul.mubr.bf16.gmra.mrb[0].mxu0 %v1777
    %v1816 = vpop.f32.mrb[0].mxu0
    %v1817 = vadd.f32 0.0, %v1816
    %v1818 = vpop.f32.mrb[0].mxu0
    %v1819 = vpop.f32.mrb[0].mxu0
    %v1820 = vpop.f32.mrb[0].mxu0
    %1821 = vdwg.mxu0
    %v1822 = vrcp.pop %v1772
    %v1823 = vmul.f32 %v1817, %v1822
    %1824 = vrot.lane.b32.xlu0 %v1339, 16
    %v1825 = vpop.permute.xlu0 %1824
    %1826 = vrot.lane.b32.xlu0 %v1342, 16
    %v1827 = vpop.permute.xlu0 %1826
    %v1829 = vsel %vm677, %v1825, 0
    %v1832 = vsel %vm677, %v1827, 0
    %1834 = vmatprep.subr.bf16.mxu0 0
    %1835 = vmatpush1.bf16.xpose.msra.mxu0 %v1832
    %1836 = vmatprep.subr.bf16.mxu0 0
    %1837 = vmatpush1.bf16.xpose.msra.mxu0 0
    %1838 = vmatprep.subr.bf16.mxu0 0
    %1839 = vmatpush1.bf16.xpose.msra.mxu0 0
    %1840 = vmatprep.subr.bf16.mxu0 0
    %1841 = vmatpush1.bf16.xpose.msra.mxu0 0
    %1842 = vmatprep.subr.bf16.mxu0 0
    %1843 = vmatpush1.bf16.xpose.msra.mxu0 0
    %1844 = vmatprep.subr.bf16.mxu0 0
    %1845 = vmatpush1.bf16.xpose.msra.mxu0 0
    %1846 = vmatprep.subr.bf16.mxu0 0
    %1847 = vmatpush1.bf16.xpose.msra.mxu0 0
    %1848 = vmatprep.subr.bf16.mxu0 0
    %1849 = vmatpush1.bf16.xpose.msra.mxu0 0
    %1850 = vmatprep.subr.bf16.mxu0 0
    %1851 = vmatpush1.bf16.xpose.msra.mxu0 0
    %1852 = vmatprep.subr.bf16.mxu0 0
    %1853 = vmatpush1.bf16.xpose.msra.mxu0 0
    %1854 = vmatprep.subr.bf16.mxu0 0
    %1855 = vmatpush1.bf16.xpose.msra.mxu0 0
    %1856 = vmatprep.subr.bf16.mxu0 0
    %1857 = vmatpush1.bf16.xpose.msra.mxu0 0
    %1858 = vmatprep.subr.bf16.mxu0 0
    %1859 = vmatpush1.bf16.xpose.msra.mxu0 0
    %1860 = vmatprep.subr.bf16.mxu0 0
    %1861 = vmatpush1.bf16.xpose.msra.mxu0 0
    %1862 = vmatprep.subr.bf16.mxu0 0
    %1863 = vmatpush1.bf16.xpose.msra.mxu0 0
    %1864 = vmatprep.subr.bf16.mxu0 0
    %1865 = vmatpush1.bf16.xpose.msra.mxu0 0
    %1866 = vmatprep.mubr.bf16.mxu0 0
    %1867 = vmatmul.mubr.bf16.gmra.mrb[0].mxu0 %v1829
    %v1868 = vpop.f32.mrb[0].mxu0
    %v1869 = vadd.f32 0.0, %v1868
    %v1870 = vpop.f32.mrb[0].mxu0
    %v1871 = vpop.f32.mrb[0].mxu0
    %v1872 = vpop.f32.mrb[0].mxu0
    %1873 = vdwg.mxu0
    %1874 = vrot.lane.b32.xlu0 %v1391, 80
    %v1875 = vpop.permute.xlu0 %1874
    %1876 = vrot.lane.b32.xlu0 %v1392, 80
    %v1877 = vpop.permute.xlu0 %1876
    %v1879 = vsel %vm677, %v1875, 0
    %v1882 = vsel %vm677, %v1877, 0
    %1884 = vmatprep.subr.bf16.mxu0 0
    %1885 = vmatpush1.bf16.xpose.msra.mxu0 %v1882
    %1886 = vmatprep.subr.bf16.mxu0 0
    %1887 = vmatpush1.bf16.xpose.msra.mxu0 0
    %1888 = vmatprep.subr.bf16.mxu0 0
    %1889 = vmatpush1.bf16.xpose.msra.mxu0 0
    %1890 = vmatprep.subr.bf16.mxu0 0
    %1891 = vmatpush1.bf16.xpose.msra.mxu0 0
    %1892 = vmatprep.subr.bf16.mxu0 0
    %1893 = vmatpush1.bf16.xpose.msra.mxu0 0
    %1894 = vmatprep.subr.bf16.mxu0 0
    %1895 = vmatpush1.bf16.xpose.msra.mxu0 0
    %1896 = vmatprep.subr.bf16.mxu0 0
    %1897 = vmatpush1.bf16.xpose.msra.mxu0 0
    %1898 = vmatprep.subr.bf16.mxu0 0
    %1899 = vmatpush1.bf16.xpose.msra.mxu0 0
    %1900 = vmatprep.subr.bf16.mxu0 0
    %1901 = vmatpush1.bf16.xpose.msra.mxu0 0
    %1902 = vmatprep.subr.bf16.mxu0 0
    %1903 = vmatpush1.bf16.xpose.msra.mxu0 0
    %1904 = vmatprep.subr.bf16.mxu0 0
    %1905 = vmatpush1.bf16.xpose.msra.mxu0 0
    %1906 = vmatprep.subr.bf16.mxu0 0
    %1907 = vmatpush1.bf16.xpose.msra.mxu0 0
    %1908 = vmatprep.subr.bf16.mxu0 0
    %1909 = vmatpush1.bf16.xpose.msra.mxu0 0
    %1910 = vmatprep.subr.bf16.mxu0 0
    %1911 = vmatpush1.bf16.xpose.msra.mxu0 0
    %1912 = vmatprep.subr.bf16.mxu0 0
    %1913 = vmatpush1.bf16.xpose.msra.mxu0 0
    %1914 = vmatprep.subr.bf16.mxu0 0
    %1915 = vmatpush1.bf16.xpose.msra.mxu0 0
    %1916 = vmatprep.mubr.bf16.mxu0 0
    %1917 = vmatmul.mubr.bf16.gmra.mrb[0].mxu0 %v1879
    %v1918 = vpop.f32.mrb[0].mxu0
    %v1919 = vadd.f32 %v1869, %v1918
    %v1920 = vpop.f32.mrb[0].mxu0
    %v1921 = vpop.f32.mrb[0].mxu0
    %v1922 = vpop.f32.mrb[0].mxu0
    %1923 = vdwg.mxu0
    %v1924 = vmul.f32 %v1919, 0.17677669
    %v1925 = vsel %vm324, %v1924, -1e+30
    %v1926 = vsel %vm772, %v1925, -inf
    %1927 = vmax.xlane.f32.xlu0 %v1926
    %v1928 = vpop.xlane.xlu0 %1927
    %v1929 = vsub.f32 %v1925, %v1928
    %v1930 = vmul.f32 %v1929, 1.442695
    %v1931 = vpow.pop %v1930
    %v1932 = vsel %vm772, %v1931, 0.0
    %1933 = vadd.xlane.f32.xlu0 %v1932
    %v1934 = vpop.xlane.xlu0 %1933
    %v1935 = vpack.c.bf16 %v1931, %v1931
    %1936 = vrot.lane.b32.xlu0 %v1451, 32
    %v1937 = vpop.permute.xlu0 %1936
    %v1939 = vsel %vm772, %v1935, 0
    %v1942 = vsel %vm786, %v1937, 0
    %1944 = vmatprep.subr.bf16.mxu0 0
    %1945 = vmatpush1.bf16.msra.mxu0 %v1942
    %1946 = vmatprep.subr.bf16.mxu0 0
    %1947 = vmatpush1.bf16.msra.mxu0 0
    %1948 = vmatprep.subr.bf16.mxu0 0
    %1949 = vmatpush1.bf16.msra.mxu0 0
    %1950 = vmatprep.subr.bf16.mxu0 0
    %1951 = vmatpush1.bf16.msra.mxu0 0
    %1952 = vmatprep.subr.bf16.mxu0 0
    %1953 = vmatpush1.bf16.msra.mxu0 0
    %1954 = vmatprep.subr.bf16.mxu0 0
    %1955 = vmatpush1.bf16.msra.mxu0 0
    %1956 = vmatprep.subr.bf16.mxu0 0
    %1957 = vmatpush1.bf16.msra.mxu0 0
    %1958 = vmatprep.subr.bf16.mxu0 0
    %1959 = vmatpush1.bf16.msra.mxu0 0
    %1960 = vmatprep.subr.bf16.mxu0 0
    %1961 = vmatpush1.bf16.msra.mxu0 0
    %1962 = vmatprep.subr.bf16.mxu0 0
    %1963 = vmatpush1.bf16.msra.mxu0 0
    %1964 = vmatprep.subr.bf16.mxu0 0
    %1965 = vmatpush1.bf16.msra.mxu0 0
    %1966 = vmatprep.subr.bf16.mxu0 0
    %1967 = vmatpush1.bf16.msra.mxu0 0
    %1968 = vmatprep.subr.bf16.mxu0 0
    %1969 = vmatpush1.bf16.msra.mxu0 0
    %1970 = vmatprep.subr.bf16.mxu0 0
    %1971 = vmatpush1.bf16.msra.mxu0 0
    %1972 = vmatprep.subr.bf16.mxu0 0
    %1973 = vmatpush1.bf16.msra.mxu0 0
    %1974 = vmatprep.subr.bf16.mxu0 0
    %1975 = vmatpush1.bf16.msra.mxu0 0
    %1976 = vmatprep.mubr.bf16.mxu0 0
    %1977 = vmatmul.mubr.bf16.gmra.mrb[0].mxu0 %v1939
    %v1978 = vpop.f32.mrb[0].mxu0
    %v1979 = vadd.f32 0.0, %v1978
    %v1980 = vpop.f32.mrb[0].mxu0
    %v1981 = vpop.f32.mrb[0].mxu0
    %v1982 = vpop.f32.mrb[0].mxu0
    %1983 = vdwg.mxu0
    %v1984 = vrcp.pop %v1934
    %v1985 = vmul.f32 %v1979, %v1984
    %1987 = vrot.lane.b32.xlu0 %v1661, 32
    %v1988 = vpop.permute.xlu0 %1987
    %1991 = vrot.lane.b32.xlu0 %v1823, 64
    %v1992 = vpop.permute.xlu0 %1991
    %1995 = vrot.lane.b32.xlu0 %v1985, 96
    %v1996 = vpop.permute.xlu0 %1995
    %v1998 = vsel %vm1333, %v1499, %v1988
    %v1999 = vsel %vm1335, %v1998, %v1992
    %v2000 = vsel %vm1337, %v1999, %v1996
    %v2001 = vpack.c.bf16 %v2000, %v1338
    %v2002 = vld [vmem:[#allocation7] sm:$0xf]
    %v2003 = vld [vmem:[#allocation7 + $0x4] sm:$0xf]
    %v2004 = vld [vmem:[#allocation7 + $0x8] sm:$0xf]
    %v2005 = vld [vmem:[#allocation7 + $0xc] sm:$0xf]
    %v2006 = vld [vmem:[#allocation7 + $0x10] sm:$0xf]
    %v2007 = vld [vmem:[#allocation7 + $0x14] sm:$0xf]
    %v2008 = vld [vmem:[#allocation7 + $0x18] sm:$0xf]
    %v2009 = vld [vmem:[#allocation7 + $0x1c] sm:$0xf]
    %v2010 = vld [vmem:[#allocation7 + $0x20] sm:$0xf]
    %v2011 = vld [vmem:[#allocation7 + $0x24] sm:$0xf]
    %v2012 = vld [vmem:[#allocation7 + $0x28] sm:$0xf]
    %v2013 = vld [vmem:[#allocation7 + $0x2c] sm:$0xf]
    %v2014 = vld [vmem:[#allocation7 + $0x30] sm:$0xf]
    %v2015 = vld [vmem:[#allocation7 + $0x34] sm:$0xf]
    %v2016 = vld [vmem:[#allocation7 + $0x38] sm:$0xf]
    %v2017 = vld [vmem:[#allocation7 + $0x3c] sm:$0xf]
    %v2034 = vunpack.c.l.b16 %v2002
    %v2035 = vunpack.c.l.b16 %v2003
    %v2036 = vunpack.c.l.b16 %v2004
    %v2037 = vunpack.c.l.b16 %v2005
    %v2038 = vunpack.c.l.b16 %v2006
    %v2039 = vunpack.c.l.b16 %v2007
    %v2040 = vunpack.c.l.b16 %v2008
    %v2041 = vunpack.c.l.b16 %v2009
    %v2042 = vunpack.c.l.b16 %v2010
    %v2043 = vunpack.c.l.b16 %v2011
    %v2044 = vunpack.c.l.b16 %v2012
    %v2045 = vunpack.c.l.b16 %v2013
    %v2046 = vunpack.c.l.b16 %v2014
    %v2047 = vunpack.c.l.b16 %v2015
    %v2048 = vunpack.c.l.b16 %v2016
    %v2049 = vunpack.c.l.b16 %v2017
    %v2050 = vpack.c.b16 %v2035, %v2034
    %v2051 = vpack.c.b16 %v2037, %v2036
    %v2052 = vpack.c.b16 %v2039, %v2038
    %v2053 = vpack.c.b16 %v2041, %v2040
    %v2054 = vpack.c.b16 %v2043, %v2042
    %v2055 = vpack.c.b16 %v2045, %v2044
    %v2056 = vpack.c.b16 %v2047, %v2046
    %v2057 = vpack.c.b16 %v2049, %v2048
    %2066 = vmatprep.subr.bf16.mxu0 0
    %2067 = vmatpush1.bf16.msra.mxu0 %v2050
    %2068 = vmatprep.subr.bf16.mxu0 0
    %2069 = vmatpush1.bf16.msra.mxu0 %v2051
    %2070 = vmatprep.subr.bf16.mxu0 0
    %2071 = vmatpush1.bf16.msra.mxu0 %v2052
    %2072 = vmatprep.subr.bf16.mxu0 0
    %2073 = vmatpush1.bf16.msra.mxu0 %v2053
    %2074 = vmatprep.subr.bf16.mxu0 0
    %2075 = vmatpush1.bf16.msra.mxu0 %v2054
    %2076 = vmatprep.subr.bf16.mxu0 0
    %2077 = vmatpush1.bf16.msra.mxu0 %v2055
    %2078 = vmatprep.subr.bf16.mxu0 0
    %2079 = vmatpush1.bf16.msra.mxu0 %v2056
    %2080 = vmatprep.subr.bf16.mxu0 0
    %2081 = vmatpush1.bf16.msra.mxu0 %v2057
    %2082 = vmatprep.subr.bf16.mxu0 0
    %2083 = vmatpush1.bf16.msra.mxu0 0
    %2084 = vmatprep.subr.bf16.mxu0 0
    %2085 = vmatpush1.bf16.msra.mxu0 0
    %2086 = vmatprep.subr.bf16.mxu0 0
    %2087 = vmatpush1.bf16.msra.mxu0 0
    %2088 = vmatprep.subr.bf16.mxu0 0
    %2089 = vmatpush1.bf16.msra.mxu0 0
    %2090 = vmatprep.subr.bf16.mxu0 0
    %2091 = vmatpush1.bf16.msra.mxu0 0
    %2092 = vmatprep.subr.bf16.mxu0 0
    %2093 = vmatpush1.bf16.msra.mxu0 0
    %2094 = vmatprep.subr.bf16.mxu0 0
    %2095 = vmatpush1.bf16.msra.mxu0 0
    %2096 = vmatprep.subr.bf16.mxu0 0
    %2097 = vmatpush1.bf16.msra.mxu0 0
    %2098 = vmatprep.mubr.bf16.mxu0 0
    %2099 = vmatmul.mubr.bf16.gmra.mrb[0].mxu0 %v2001
    %v2100 = vpop.f32.mrb[0].mxu0
    %v2101 = vadd.f32 0.0, %v2100
    %v2102 = vpop.f32.mrb[0].mxu0
    %v2103 = vpop.f32.mrb[0].mxu0
    %v2104 = vadd.f32 0.0, %v2103
    %v2105 = vpop.f32.mrb[0].mxu0
    %2106 = vdwg.mxu0
    %v2107 = vadd.f32 %v312, %v2101
    %v2108 = vadd.f32 %v315, %v2104
    %v2109 = vld [vmem:[%s7] sm:$0x1]
    %v2110 = vmul.f32 %v2107, %v2107
    %v2111 = vmul.f32 %v2108, %v2108
    %2112 = vadd.xlane.f32.xlu0 %v2110
    %v2113 = vpop.xlane.xlu0 %2112
    %2114 = vadd.xlane.f32.xlu0 %v2111
    %v2115 = vpop.xlane.xlu0 %2114
    %v2116 = vmul.f32 %v2113, %v332
    %v2117 = vmul.f32 %v2115, %v332
    %v2118 = vadd.f32 %v2116, 1e-06
    %v2119 = vadd.f32 %v2117, 1e-06
    %v2120 = vrsqrt.pop %v2118
    %v2121 = vrsqrt.pop %v2119
    %v2122 = vmul.f32 %v2107, %v2120
    %v2123 = vmul.f32 %v2108, %v2121
    %v2125 = vlaneseq
    %v2126 = vshrl.u32 %v2125, 7
    %v2127 = vsub.s32 0, %v2126
    %v2128 = vrot.slane %v2109, %v2127
    %v2130 = vmul.f32 %v2122, %v2128
    %v2131 = vmul.f32 %v2123, %v2128
    %v2132 = vpack.c.bf16 %v2131, %v2130
    %v2133 = vld [vmem:[%s8] sm:$0xff]
    %v2134 = vld [vmem:[%s8 + $0x8] sm:$0xff]
    %v2135 = vld [vmem:[%s8 + $0x10] sm:$0xff]
    %v2136 = vld [vmem:[%s8 + $0x18] sm:$0xff]
    %v2137 = vld [vmem:[%s8 + $0x20] sm:$0xff]
    %v2138 = vld [vmem:[%s8 + $0x28] sm:$0xff]
    %v2139 = vld [vmem:[%s8 + $0x30] sm:$0xff]
    %v2140 = vld [vmem:[%s8 + $0x38] sm:$0xff]
    %v2141 = vld [vmem:[%s8 + $0x40] sm:$0xff]
    %v2142 = vld [vmem:[%s8 + $0x48] sm:$0xff]
    %v2143 = vld [vmem:[%s8 + $0x50] sm:$0xff]
    %v2144 = vld [vmem:[%s8 + $0x58] sm:$0xff]
    %v2145 = vld [vmem:[%s8 + $0x60] sm:$0xff]
    %v2146 = vld [vmem:[%s8 + $0x68] sm:$0xff]
    %v2147 = vld [vmem:[%s8 + $0x70] sm:$0xff]
    %v2148 = vld [vmem:[%s8 + $0x78] sm:$0xff]
    %v2165 = vunpack.c.l.b16 %v2133
    %v2166 = vunpack.c.h.b16 %v2133
    %v2167 = vunpack.c.l.b16 %v2134
    %v2168 = vunpack.c.h.b16 %v2134
    %v2169 = vunpack.c.l.b16 %v2135
    %v2170 = vunpack.c.h.b16 %v2135
    %v2171 = vunpack.c.l.b16 %v2136
    %v2172 = vunpack.c.h.b16 %v2136
    %v2173 = vunpack.c.l.b16 %v2137
    %v2174 = vunpack.c.h.b16 %v2137
    %v2175 = vunpack.c.l.b16 %v2138
    %v2176 = vunpack.c.h.b16 %v2138
    %v2177 = vunpack.c.l.b16 %v2139
    %v2178 = vunpack.c.h.b16 %v2139
    %v2179 = vunpack.c.l.b16 %v2140
    %v2180 = vunpack.c.h.b16 %v2140
    %v2181 = vunpack.c.l.b16 %v2141
    %v2182 = vunpack.c.h.b16 %v2141
    %v2183 = vunpack.c.l.b16 %v2142
    %v2184 = vunpack.c.h.b16 %v2142
    %v2185 = vunpack.c.l.b16 %v2143
    %v2186 = vunpack.c.h.b16 %v2143
    %v2187 = vunpack.c.l.b16 %v2144
    %v2188 = vunpack.c.h.b16 %v2144
    %v2189 = vunpack.c.l.b16 %v2145
    %v2190 = vunpack.c.h.b16 %v2145
    %v2191 = vunpack.c.l.b16 %v2146
    %v2192 = vunpack.c.h.b16 %v2146
    %v2193 = vunpack.c.l.b16 %v2147
    %v2194 = vunpack.c.h.b16 %v2147
    %v2195 = vunpack.c.l.b16 %v2148
    %v2196 = vunpack.c.h.b16 %v2148
    %v2197 = vpack.c.b16 %v2167, %v2165
    %v2198 = vpack.c.b16 %v2168, %v2166
    %v2199 = vpack.c.b16 %v2171, %v2169
    %v2200 = vpack.c.b16 %v2172, %v2170
    %v2201 = vpack.c.b16 %v2175, %v2173
    %v2202 = vpack.c.b16 %v2176, %v2174
    %v2203 = vpack.c.b16 %v2179, %v2177
    %v2204 = vpack.c.b16 %v2180, %v2178
    %v2205 = vpack.c.b16 %v2183, %v2181
    %v2206 = vpack.c.b16 %v2184, %v2182
    %v2207 = vpack.c.b16 %v2187, %v2185
    %v2208 = vpack.c.b16 %v2188, %v2186
    %v2209 = vpack.c.b16 %v2191, %v2189
    %v2210 = vpack.c.b16 %v2192, %v2190
    %v2211 = vpack.c.b16 %v2195, %v2193
    %v2212 = vpack.c.b16 %v2196, %v2194
    %2229 = vmatprep.subr.bf16.mxu0 %v2198
    %2230 = vmatpush1.bf16.msra.mxu0 %v2197
    %2231 = vmatprep.subr.bf16.mxu0 %v2200
    %2232 = vmatpush1.bf16.msra.mxu0 %v2199
    %2233 = vmatprep.subr.bf16.mxu0 %v2202
    %2234 = vmatpush1.bf16.msra.mxu0 %v2201
    %2235 = vmatprep.subr.bf16.mxu0 %v2204
    %2236 = vmatpush1.bf16.msra.mxu0 %v2203
    %2237 = vmatprep.subr.bf16.mxu0 %v2206
    %2238 = vmatpush1.bf16.msra.mxu0 %v2205
    %2239 = vmatprep.subr.bf16.mxu0 %v2208
    %2240 = vmatpush1.bf16.msra.mxu0 %v2207
    %2241 = vmatprep.subr.bf16.mxu0 %v2210
    %2242 = vmatpush1.bf16.msra.mxu0 %v2209
    %2243 = vmatprep.subr.bf16.mxu0 %v2212
    %2244 = vmatpush1.bf16.msra.mxu0 %v2211
    %2245 = vmatprep.subr.bf16.mxu0 0
    %2246 = vmatpush1.bf16.msra.mxu0 0
    %2247 = vmatprep.subr.bf16.mxu0 0
    %2248 = vmatpush1.bf16.msra.mxu0 0
    %2249 = vmatprep.subr.bf16.mxu0 0
    %2250 = vmatpush1.bf16.msra.mxu0 0
    %2251 = vmatprep.subr.bf16.mxu0 0
    %2252 = vmatpush1.bf16.msra.mxu0 0
    %2253 = vmatprep.subr.bf16.mxu0 0
    %2254 = vmatpush1.bf16.msra.mxu0 0
    %2255 = vmatprep.subr.bf16.mxu0 0
    %2256 = vmatpush1.bf16.msra.mxu0 0
    %2257 = vmatprep.subr.bf16.mxu0 0
    %2258 = vmatpush1.bf16.msra.mxu0 0
    %2259 = vmatprep.subr.bf16.mxu0 0
    %2260 = vmatpush1.bf16.msra.mxu0 0
    %2261 = vmatprep.mubr.bf16.mxu0 0
    %2262 = vmatmul.mubr.bf16.gmra.mrb[0].mxu0 %v2132
    %v2263 = vpop.f32.mrb[0].mxu0
    %v2264 = vadd.f32 0.0, %v2263
    %v2265 = vpop.f32.mrb[0].mxu0
    %v2266 = vadd.f32 0.0, %v2265
    %v2267 = vpop.f32.mrb[0].mxu0
    %v2268 = vadd.f32 0.0, %v2267
    %v2269 = vpop.f32.mrb[0].mxu0
    %v2270 = vadd.f32 0.0, %v2269
    %2271 = vdwg.mxu0
    %v2272 = vld [vmem:[#allocation8] sm:$0xff]
    %v2273 = vld [vmem:[#allocation8 + $0x8] sm:$0xff]
    %v2274 = vld [vmem:[#allocation8 + $0x10] sm:$0xff]
    %v2275 = vld [vmem:[#allocation8 + $0x18] sm:$0xff]
    %v2276 = vld [vmem:[#allocation8 + $0x20] sm:$0xff]
    %v2277 = vld [vmem:[#allocation8 + $0x28] sm:$0xff]
    %v2278 = vld [vmem:[#allocation8 + $0x30] sm:$0xff]
    %v2279 = vld [vmem:[#allocation8 + $0x38] sm:$0xff]
    %v2280 = vld [vmem:[#allocation8 + $0x40] sm:$0xff]
    %v2281 = vld [vmem:[#allocation8 + $0x48] sm:$0xff]
    %v2282 = vld [vmem:[#allocation8 + $0x50] sm:$0xff]
    %v2283 = vld [vmem:[#allocation8 + $0x58] sm:$0xff]
    %v2284 = vld [vmem:[#allocation8 + $0x60] sm:$0xff]
    %v2285 = vld [vmem:[#allocation8 + $0x68] sm:$0xff]
    %v2286 = vld [vmem:[#allocation8 + $0x70] sm:$0xff]
    %v2287 = vld [vmem:[#allocation8 + $0x78] sm:$0xff]
    %v2304 = vunpack.c.l.b16 %v2272
    %v2305 = vunpack.c.h.b16 %v2272
    %v2306 = vunpack.c.l.b16 %v2273
    %v2307 = vunpack.c.h.b16 %v2273
    %v2308 = vunpack.c.l.b16 %v2274
    %v2309 = vunpack.c.h.b16 %v2274
    %v2310 = vunpack.c.l.b16 %v2275
    %v2311 = vunpack.c.h.b16 %v2275
    %v2312 = vunpack.c.l.b16 %v2276
    %v2313 = vunpack.c.h.b16 %v2276
    %v2314 = vunpack.c.l.b16 %v2277
    %v2315 = vunpack.c.h.b16 %v2277
    %v2316 = vunpack.c.l.b16 %v2278
    %v2317 = vunpack.c.h.b16 %v2278
    %v2318 = vunpack.c.l.b16 %v2279
    %v2319 = vunpack.c.h.b16 %v2279
    %v2320 = vunpack.c.l.b16 %v2280
    %v2321 = vunpack.c.h.b16 %v2280
    %v2322 = vunpack.c.l.b16 %v2281
    %v2323 = vunpack.c.h.b16 %v2281
    %v2324 = vunpack.c.l.b16 %v2282
    %v2325 = vunpack.c.h.b16 %v2282
    %v2326 = vunpack.c.l.b16 %v2283
    %v2327 = vunpack.c.h.b16 %v2283
    %v2328 = vunpack.c.l.b16 %v2284
    %v2329 = vunpack.c.h.b16 %v2284
    %v2330 = vunpack.c.l.b16 %v2285
    %v2331 = vunpack.c.h.b16 %v2285
    %v2332 = vunpack.c.l.b16 %v2286
    %v2333 = vunpack.c.h.b16 %v2286
    %v2334 = vunpack.c.l.b16 %v2287
    %v2335 = vunpack.c.h.b16 %v2287
    %v2336 = vpack.c.b16 %v2306, %v2304
    %v2337 = vpack.c.b16 %v2307, %v2305
    %v2338 = vpack.c.b16 %v2310, %v2308
    %v2339 = vpack.c.b16 %v2311, %v2309
    %v2340 = vpack.c.b16 %v2314, %v2312
    %v2341 = vpack.c.b16 %v2315, %v2313
    %v2342 = vpack.c.b16 %v2318, %v2316
    %v2343 = vpack.c.b16 %v2319, %v2317
    %v2344 = vpack.c.b16 %v2322, %v2320
    %v2345 = vpack.c.b16 %v2323, %v2321
    %v2346 = vpack.c.b16 %v2326, %v2324
    %v2347 = vpack.c.b16 %v2327, %v2325
    %v2348 = vpack.c.b16 %v2330, %v2328
    %v2349 = vpack.c.b16 %v2331, %v2329
    %v2350 = vpack.c.b16 %v2334, %v2332
    %v2351 = vpack.c.b16 %v2335, %v2333
    %2368 = vmatprep.subr.bf16.mxu0 %v2337
    %2369 = vmatpush1.bf16.msra.mxu0 %v2336
    %2370 = vmatprep.subr.bf16.mxu0 %v2339
    %2371 = vmatpush1.bf16.msra.mxu0 %v2338
    %2372 = vmatprep.subr.bf16.mxu0 %v2341
    %2373 = vmatpush1.bf16.msra.mxu0 %v2340
    %2374 = vmatprep.subr.bf16.mxu0 %v2343
    %2375 = vmatpush1.bf16.msra.mxu0 %v2342
    %2376 = vmatprep.subr.bf16.mxu0 %v2345
    %2377 = vmatpush1.bf16.msra.mxu0 %v2344
    %2378 = vmatprep.subr.bf16.mxu0 %v2347
    %2379 = vmatpush1.bf16.msra.mxu0 %v2346
    %2380 = vmatprep.subr.bf16.mxu0 %v2349
    %2381 = vmatpush1.bf16.msra.mxu0 %v2348
    %2382 = vmatprep.subr.bf16.mxu0 %v2351
    %2383 = vmatpush1.bf16.msra.mxu0 %v2350
    %2384 = vmatprep.subr.bf16.mxu0 0
    %2385 = vmatpush1.bf16.msra.mxu0 0
    %2386 = vmatprep.subr.bf16.mxu0 0
    %2387 = vmatpush1.bf16.msra.mxu0 0
    %2388 = vmatprep.subr.bf16.mxu0 0
    %2389 = vmatpush1.bf16.msra.mxu0 0
    %2390 = vmatprep.subr.bf16.mxu0 0
    %2391 = vmatpush1.bf16.msra.mxu0 0
    %2392 = vmatprep.subr.bf16.mxu0 0
    %2393 = vmatpush1.bf16.msra.mxu0 0
    %2394 = vmatprep.subr.bf16.mxu0 0
    %2395 = vmatpush1.bf16.msra.mxu0 0
    %2396 = vmatprep.subr.bf16.mxu0 0
    %2397 = vmatpush1.bf16.msra.mxu0 0
    %2398 = vmatprep.subr.bf16.mxu0 0
    %2399 = vmatpush1.bf16.msra.mxu0 0
    %2400 = vmatprep.mubr.bf16.mxu0 0
    %2401 = vmatmul.mubr.bf16.gmra.mrb[0].mxu0 %v2132
    %v2402 = vpop.f32.mrb[0].mxu0
    %v2403 = vadd.f32 0.0, %v2402
    %v2404 = vpop.f32.mrb[0].mxu0
    %v2405 = vadd.f32 0.0, %v2404
    %v2406 = vpop.f32.mrb[0].mxu0
    %v2407 = vadd.f32 0.0, %v2406
    %v2408 = vpop.f32.mrb[0].mxu0
    %v2409 = vadd.f32 0.0, %v2408
    %2410 = vdwg.mxu0
    %v2411 = vxor.u32 %v2264, 2147483648
    %v2412 = vxor.u32 %v2266, 2147483648
    %v2413 = vxor.u32 %v2268, 2147483648
    %v2414 = vxor.u32 %v2270, 2147483648
    %v2415 = vmul.f32 %v2411, 1.442695
    %v2416 = vpow.pop %v2415
    %v2417 = vmul.f32 %v2412, 1.442695
    %v2418 = vpow.pop %v2417
    %v2419 = vmul.f32 %v2413, 1.442695
    %v2420 = vpow.pop %v2419
    %v2421 = vmul.f32 %v2414, 1.442695
    %v2422 = vpow.pop %v2421
    %v2423 = vadd.f32 %v2416, 1.0
    %v2424 = vadd.f32 %v2418, 1.0
    %v2425 = vadd.f32 %v2420, 1.0
    %v2426 = vadd.f32 %v2422, 1.0
    %v2427 = vrcp.pop %v2423
    %v2428 = vmul.f32 1.0, %v2427
    %v2429 = vrcp.pop %v2424
    %v2430 = vmul.f32 1.0, %v2429
    %v2431 = vrcp.pop %v2425
    %v2432 = vmul.f32 1.0, %v2431
    %v2433 = vrcp.pop %v2426
    %v2434 = vmul.f32 1.0, %v2433
    %v2435 = vmul.f32 %v2264, %v2428
    %v2436 = vmul.f32 %v2266, %v2430
    %v2437 = vmul.f32 %v2268, %v2432
    %v2438 = vmul.f32 %v2270, %v2434
    %v2439 = vmul.f32 %v2435, %v2403
    %v2440 = vmul.f32 %v2436, %v2405
    %v2441 = vmul.f32 %v2437, %v2407
    %v2442 = vmul.f32 %v2438, %v2409
    %v2443 = vpack.c.bf16 %v2441, %v2439
    %v2444 = vpack.c.bf16 %v2442, %v2440
    %v2445 = vld [vmem:[#allocation10] sm:$0xf]
    %v2446 = vld [vmem:[#allocation10 + $0x4] sm:$0xf]
    %v2447 = vld [vmem:[#allocation10 + $0x8] sm:$0xf]
    %v2448 = vld [vmem:[#allocation10 + $0xc] sm:$0xf]
    %v2449 = vld [vmem:[#allocation10 + $0x10] sm:$0xf]
    %v2450 = vld [vmem:[#allocation10 + $0x14] sm:$0xf]
    %v2451 = vld [vmem:[#allocation10 + $0x18] sm:$0xf]
    %v2452 = vld [vmem:[#allocation10 + $0x1c] sm:$0xf]
    %v2453 = vld [vmem:[#allocation10 + $0x20] sm:$0xf]
    %v2454 = vld [vmem:[#allocation10 + $0x24] sm:$0xf]
    %v2455 = vld [vmem:[#allocation10 + $0x28] sm:$0xf]
    %v2456 = vld [vmem:[#allocation10 + $0x2c] sm:$0xf]
    %v2457 = vld [vmem:[#allocation10 + $0x30] sm:$0xf]
    %v2458 = vld [vmem:[#allocation10 + $0x34] sm:$0xf]
    %v2459 = vld [vmem:[#allocation10 + $0x38] sm:$0xf]
    %v2460 = vld [vmem:[#allocation10 + $0x3c] sm:$0xf]
    %v2461 = vld [vmem:[#allocation10 + $0x40] sm:$0xf]
    %v2462 = vld [vmem:[#allocation10 + $0x44] sm:$0xf]
    %v2463 = vld [vmem:[#allocation10 + $0x48] sm:$0xf]
    %v2464 = vld [vmem:[#allocation10 + $0x4c] sm:$0xf]
    %v2465 = vld [vmem:[#allocation10 + $0x50] sm:$0xf]
    %v2466 = vld [vmem:[#allocation10 + $0x54] sm:$0xf]
    %v2467 = vld [vmem:[#allocation10 + $0x58] sm:$0xf]
    %v2468 = vld [vmem:[#allocation10 + $0x5c] sm:$0xf]
    %v2469 = vld [vmem:[#allocation10 + $0x60] sm:$0xf]
    %v2470 = vld [vmem:[#allocation10 + $0x64] sm:$0xf]
    %v2471 = vld [vmem:[#allocation10 + $0x68] sm:$0xf]
    %v2472 = vld [vmem:[#allocation10 + $0x6c] sm:$0xf]
    %v2473 = vld [vmem:[#allocation10 + $0x70] sm:$0xf]
    %v2474 = vld [vmem:[#allocation10 + $0x74] sm:$0xf]
    %v2475 = vld [vmem:[#allocation10 + $0x78] sm:$0xf]
    %v2476 = vld [vmem:[#allocation10 + $0x7c] sm:$0xf]
    %v2509 = vunpack.c.l.b16 %v2445
    %v2510 = vunpack.c.l.b16 %v2446
    %v2511 = vunpack.c.l.b16 %v2447
    %v2512 = vunpack.c.l.b16 %v2448
    %v2513 = vunpack.c.l.b16 %v2449
    %v2514 = vunpack.c.l.b16 %v2450
    %v2515 = vunpack.c.l.b16 %v2451
    %v2516 = vunpack.c.l.b16 %v2452
    %v2517 = vunpack.c.l.b16 %v2453
    %v2518 = vunpack.c.l.b16 %v2454
    %v2519 = vunpack.c.l.b16 %v2455
    %v2520 = vunpack.c.l.b16 %v2456
    %v2521 = vunpack.c.l.b16 %v2457
    %v2522 = vunpack.c.l.b16 %v2458
    %v2523 = vunpack.c.l.b16 %v2459
    %v2524 = vunpack.c.l.b16 %v2460
    %v2525 = vunpack.c.l.b16 %v2461
    %v2526 = vunpack.c.l.b16 %v2462
    %v2527 = vunpack.c.l.b16 %v2463
    %v2528 = vunpack.c.l.b16 %v2464
    %v2529 = vunpack.c.l.b16 %v2465
    %v2530 = vunpack.c.l.b16 %v2466
    %v2531 = vunpack.c.l.b16 %v2467
    %v2532 = vunpack.c.l.b16 %v2468
    %v2533 = vunpack.c.l.b16 %v2469
    %v2534 = vunpack.c.l.b16 %v2470
    %v2535 = vunpack.c.l.b16 %v2471
    %v2536 = vunpack.c.l.b16 %v2472
    %v2537 = vunpack.c.l.b16 %v2473
    %v2538 = vunpack.c.l.b16 %v2474
    %v2539 = vunpack.c.l.b16 %v2475
    %v2540 = vunpack.c.l.b16 %v2476
    %v2541 = vpack.c.b16 %v2510, %v2509
    %v2542 = vpack.c.b16 %v2512, %v2511
    %v2543 = vpack.c.b16 %v2514, %v2513
    %v2544 = vpack.c.b16 %v2516, %v2515
    %v2545 = vpack.c.b16 %v2518, %v2517
    %v2546 = vpack.c.b16 %v2520, %v2519
    %v2547 = vpack.c.b16 %v2522, %v2521
    %v2548 = vpack.c.b16 %v2524, %v2523
    %v2549 = vpack.c.b16 %v2526, %v2525
    %v2550 = vpack.c.b16 %v2528, %v2527
    %v2551 = vpack.c.b16 %v2530, %v2529
    %v2552 = vpack.c.b16 %v2532, %v2531
    %v2553 = vpack.c.b16 %v2534, %v2533
    %v2554 = vpack.c.b16 %v2536, %v2535
    %v2555 = vpack.c.b16 %v2538, %v2537
    %v2556 = vpack.c.b16 %v2540, %v2539
    %2573 = vmatprep.subr.bf16.mxu0 0
    %2574 = vmatpush1.bf16.msra.mxu0 %v2541
    %2575 = vmatprep.subr.bf16.mxu0 0
    %2576 = vmatpush1.bf16.msra.mxu0 %v2542
    %2577 = vmatprep.subr.bf16.mxu0 0
    %2578 = vmatpush1.bf16.msra.mxu0 %v2543
    %2579 = vmatprep.subr.bf16.mxu0 0
    %2580 = vmatpush1.bf16.msra.mxu0 %v2544
    %2581 = vmatprep.subr.bf16.mxu0 0
    %2582 = vmatpush1.bf16.msra.mxu0 %v2545
    %2583 = vmatprep.subr.bf16.mxu0 0
    %2584 = vmatpush1.bf16.msra.mxu0 %v2546
    %2585 = vmatprep.subr.bf16.mxu0 0
    %2586 = vmatpush1.bf16.msra.mxu0 %v2547
    %2587 = vmatprep.subr.bf16.mxu0 0
    %2588 = vmatpush1.bf16.msra.mxu0 %v2548
    %2589 = vmatprep.subr.bf16.mxu0 0
    %2590 = vmatpush1.bf16.msra.mxu0 %v2549
    %2591 = vmatprep.subr.bf16.mxu0 0
    %2592 = vmatpush1.bf16.msra.mxu0 %v2550
    %2593 = vmatprep.subr.bf16.mxu0 0
    %2594 = vmatpush1.bf16.msra.mxu0 %v2551
    %2595 = vmatprep.subr.bf16.mxu0 0
    %2596 = vmatpush1.bf16.msra.mxu0 %v2552
    %2597 = vmatprep.subr.bf16.mxu0 0
    %2598 = vmatpush1.bf16.msra.mxu0 %v2553
    %2599 = vmatprep.subr.bf16.mxu0 0
    %2600 = vmatpush1.bf16.msra.mxu0 %v2554
    %2601 = vmatprep.subr.bf16.mxu0 0
    %2602 = vmatpush1.bf16.msra.mxu0 %v2555
    %2603 = vmatprep.subr.bf16.mxu0 0
    %2604 = vmatpush1.bf16.msra.mxu0 %v2556
    %2605 = vmatprep.mubr.bf16.mxu0 %v2444
    %2606 = vmatmul.mubr.bf16.gmra.mrb[0].mxu0 %v2443
    %v2607 = vpop.f32.mrb[0].mxu0
    %v2608 = vadd.f32 0.0, %v2607
    %v2609 = vpop.f32.mrb[0].mxu0
    %v2610 = vpop.f32.mrb[0].mxu0
    %v2611 = vadd.f32 0.0, %v2610
    %v2612 = vpop.f32.mrb[0].mxu0
    %2613 = vdwg.mxu0
    %v2614 = vadd.f32 %v2107, %v2608
    %v2615 = vadd.f32 %v2108, %v2611
    %s2616 = scalar_lea.vmem %s4, 1
    %v2617 = vld [vmem:[%s2616] sm:$0x1]
    %v2618 = vmul.f32 %v2614, %v2614
    %v2619 = vmul.f32 %v2615, %v2615
    %2620 = vadd.xlane.f32.xlu0 %v2618
    %v2621 = vpop.xlane.xlu0 %2620
    %2622 = vadd.xlane.f32.xlu0 %v2619
    %v2623 = vpop.xlane.xlu0 %2622
    %v2624 = vmul.f32 %v2621, %v332
    %v2625 = vmul.f32 %v2623, %v332
    %v2626 = vadd.f32 %v2624, 1e-06
    %v2627 = vadd.f32 %v2625, 1e-06
    %v2628 = vrsqrt.pop %v2626
    %v2629 = vrsqrt.pop %v2627
    %v2630 = vmul.f32 %v2614, %v2628
    %v2631 = vmul.f32 %v2615, %v2629
    %v2633 = vlaneseq
    %v2634 = vshrl.u32 %v2633, 7
    %v2635 = vsub.s32 0, %v2634
    %v2636 = vrot.slane %v2617, %v2635
    %v2638 = vmul.f32 %v2630, %v2636
    %v2639 = vmul.f32 %v2631, %v2636
    %v2640 = vpack.c.bf16 %v2639, %v2638
    %s2641 = scalar_lea.vmem [#allocation5], 192
    %v2642 = vld [vmem:[%s2641] sm:$0xff]
    %v2643 = vld [vmem:[%s2641 + $0x8] sm:$0xf]
    %v2644 = vld [vmem:[%s2641 + $0xc] sm:$0xff]
    %v2645 = vld [vmem:[%s2641 + $0x14] sm:$0xf]
    %v2646 = vld [vmem:[%s2641 + $0x18] sm:$0xff]
    %v2647 = vld [vmem:[%s2641 + $0x20] sm:$0xf]
    %v2648 = vld [vmem:[%s2641 + $0x24] sm:$0xff]
    %v2649 = vld [vmem:[%s2641 + $0x2c] sm:$0xf]
    %v2650 = vld [vmem:[%s2641 + $0x30] sm:$0xff]
    %v2651 = vld [vmem:[%s2641 + $0x38] sm:$0xf]
    %v2652 = vld [vmem:[%s2641 + $0x3c] sm:$0xff]
    %v2653 = vld [vmem:[%s2641 + $0x44] sm:$0xf]
    %v2654 = vld [vmem:[%s2641 + $0x48] sm:$0xff]
    %v2655 = vld [vmem:[%s2641 + $0x50] sm:$0xf]
    %v2656 = vld [vmem:[%s2641 + $0x54] sm:$0xff]
    %v2657 = vld [vmem:[%s2641 + $0x5c] sm:$0xf]
    %v2658 = vld [vmem:[%s2641 + $0x60] sm:$0xff]
    %v2659 = vld [vmem:[%s2641 + $0x68] sm:$0xf]
    %v2660 = vld [vmem:[%s2641 + $0x6c] sm:$0xff]
    %v2661 = vld [vmem:[%s2641 + $0x74] sm:$0xf]
    %v2662 = vld [vmem:[%s2641 + $0x78] sm:$0xff]
    %v2663 = vld [vmem:[%s2641 + $0x80] sm:$0xf]
    %v2664 = vld [vmem:[%s2641 + $0x84] sm:$0xff]
    %v2665 = vld [vmem:[%s2641 + $0x8c] sm:$0xf]
    %v2666 = vld [vmem:[%s2641 + $0x90] sm:$0xff]
    %v2667 = vld [vmem:[%s2641 + $0x98] sm:$0xf]
    %v2668 = vld [vmem:[%s2641 + $0x9c] sm:$0xff]
    %v2669 = vld [vmem:[%s2641 + $0xa4] sm:$0xf]
    %v2670 = vld [vmem:[%s2641 + $0xa8] sm:$0xff]
    %v2671 = vld [vmem:[%s2641 + $0xb0] sm:$0xf]
    %v2672 = vld [vmem:[%s2641 + $0xb4] sm:$0xff]
    %v2673 = vld [vmem:[%s2641 + $0xbc] sm:$0xf]
    %v2706 = vunpack.c.l.b16 %v2642
    %v2707 = vunpack.c.h.b16 %v2642
    %v2708 = vunpack.c.l.b16 %v2643
    %v2709 = vunpack.c.l.b16 %v2644
    %v2710 = vunpack.c.h.b16 %v2644
    %v2711 = vunpack.c.l.b16 %v2645
    %v2712 = vunpack.c.l.b16 %v2646
    %v2713 = vunpack.c.h.b16 %v2646
    %v2714 = vunpack.c.l.b16 %v2647
    %v2715 = vunpack.c.l.b16 %v2648
    %v2716 = vunpack.c.h.b16 %v2648
    %v2717 = vunpack.c.l.b16 %v2649
    %v2718 = vunpack.c.l.b16 %v2650
    %v2719 = vunpack.c.h.b16 %v2650
    %v2720 = vunpack.c.l.b16 %v2651
    %v2721 = vunpack.c.l.b16 %v2652
    %v2722 = vunpack.c.h.b16 %v2652
    %v2723 = vunpack.c.l.b16 %v2653
    %v2724 = vunpack.c.l.b16 %v2654
    %v2725 = vunpack.c.h.b16 %v2654
    %v2726 = vunpack.c.l.b16 %v2655
    %v2727 = vunpack.c.l.b16 %v2656
    %v2728 = vunpack.c.h.b16 %v2656
    %v2729 = vunpack.c.l.b16 %v2657
    %v2730 = vunpack.c.l.b16 %v2658
    %v2731 = vunpack.c.h.b16 %v2658
    %v2732 = vunpack.c.l.b16 %v2659
    %v2733 = vunpack.c.l.b16 %v2660
    %v2734 = vunpack.c.h.b16 %v2660
    %v2735 = vunpack.c.l.b16 %v2661
    %v2736 = vunpack.c.l.b16 %v2662
    %v2737 = vunpack.c.h.b16 %v2662
    %v2738 = vunpack.c.l.b16 %v2663
    %v2739 = vunpack.c.l.b16 %v2664
    %v2740 = vunpack.c.h.b16 %v2664
    %v2741 = vunpack.c.l.b16 %v2665
    %v2742 = vunpack.c.l.b16 %v2666
    %v2743 = vunpack.c.h.b16 %v2666
    %v2744 = vunpack.c.l.b16 %v2667
    %v2745 = vunpack.c.l.b16 %v2668
    %v2746 = vunpack.c.h.b16 %v2668
    %v2747 = vunpack.c.l.b16 %v2669
    %v2748 = vunpack.c.l.b16 %v2670
    %v2749 = vunpack.c.h.b16 %v2670
    %v2750 = vunpack.c.l.b16 %v2671
    %v2751 = vunpack.c.l.b16 %v2672
    %v2752 = vunpack.c.h.b16 %v2672
    %v2753 = vunpack.c.l.b16 %v2673
    %v2754 = vpack.c.b16 %v2709, %v2706
    %v2755 = vpack.c.b16 %v2710, %v2707
    %v2756 = vpack.c.b16 %v2711, %v2708
    %v2757 = vpack.c.b16 %v2715, %v2712
    %v2758 = vpack.c.b16 %v2716, %v2713
    %v2759 = vpack.c.b16 %v2717, %v2714
    %v2760 = vpack.c.b16 %v2721, %v2718
    %v2761 = vpack.c.b16 %v2722, %v2719
    %v2762 = vpack.c.b16 %v2723, %v2720
    %v2763 = vpack.c.b16 %v2727, %v2724
    %v2764 = vpack.c.b16 %v2728, %v2725
    %v2765 = vpack.c.b16 %v2729, %v2726
    %v2766 = vpack.c.b16 %v2733, %v2730
    %v2767 = vpack.c.b16 %v2734, %v2731
    %v2768 = vpack.c.b16 %v2735, %v2732
    %v2769 = vpack.c.b16 %v2739, %v2736
    %v2770 = vpack.c.b16 %v2740, %v2737
    %v2771 = vpack.c.b16 %v2741, %v2738
    %v2772 = vpack.c.b16 %v2745, %v2742
    %v2773 = vpack.c.b16 %v2746, %v2743
    %v2774 = vpack.c.b16 %v2747, %v2744
    %v2775 = vpack.c.b16 %v2751, %v2748
    %v2776 = vpack.c.b16 %v2752, %v2749
    %v2777 = vpack.c.b16 %v2753, %v2750
    %2802 = vmatprep.subr.bf16.mxu0 %v2755
    %2803 = vmatpush1.bf16.msra.mxu0 %v2754
    %2804 = vmatprep.subr.bf16.mxu0 %v2758
    %2805 = vmatpush1.bf16.msra.mxu0 %v2757
    %2806 = vmatprep.subr.bf16.mxu0 %v2761
    %2807 = vmatpush1.bf16.msra.mxu0 %v2760
    %2808 = vmatprep.subr.bf16.mxu0 %v2764
    %2809 = vmatpush1.bf16.msra.mxu0 %v2763
    %2810 = vmatprep.subr.bf16.mxu0 %v2767
    %2811 = vmatpush1.bf16.msra.mxu0 %v2766
    %2812 = vmatprep.subr.bf16.mxu0 %v2770
    %2813 = vmatpush1.bf16.msra.mxu0 %v2769
    %2814 = vmatprep.subr.bf16.mxu0 %v2773
    %2815 = vmatpush1.bf16.msra.mxu0 %v2772
    %2816 = vmatprep.subr.bf16.mxu0 %v2776
    %2817 = vmatpush1.bf16.msra.mxu0 %v2775
    %2818 = vmatprep.subr.bf16.mxu0 0
    %2819 = vmatpush1.bf16.msra.mxu0 0
    %2820 = vmatprep.subr.bf16.mxu0 0
    %2821 = vmatpush1.bf16.msra.mxu0 0
    %2822 = vmatprep.subr.bf16.mxu0 0
    %2823 = vmatpush1.bf16.msra.mxu0 0
    %2824 = vmatprep.subr.bf16.mxu0 0
    %2825 = vmatpush1.bf16.msra.mxu0 0
    %2826 = vmatprep.subr.bf16.mxu0 0
    %2827 = vmatpush1.bf16.msra.mxu0 0
    %2828 = vmatprep.subr.bf16.mxu0 0
    %2829 = vmatpush1.bf16.msra.mxu0 0
    %2830 = vmatprep.subr.bf16.mxu0 0
    %2831 = vmatpush1.bf16.msra.mxu0 0
    %2832 = vmatprep.subr.bf16.mxu0 0
    %2833 = vmatpush1.bf16.msra.mxu0 0
    %2834 = vmatprep.mubr.bf16.mxu0 0
    %2835 = vmatmul.mubr.bf16.gmra.mrb[0].mxu0 %v2640
    %v2836 = vpop.f32.mrb[0].mxu0
    %v2837 = vadd.f32 0.0, %v2836
    %v2838 = vpop.f32.mrb[0].mxu0
    %v2839 = vadd.f32 0.0, %v2838
    %v2840 = vpop.f32.mrb[0].mxu0
    %v2841 = vadd.f32 0.0, %v2840
    %v2842 = vpop.f32.mrb[0].mxu0
    %v2843 = vadd.f32 0.0, %v2842
    %2844 = vdwg.mxu0
    %2845 = vmatprep.subr.bf16.mxu0 0
    %2846 = vmatpush1.bf16.msra.mxu0 %v2756
    %2847 = vmatprep.subr.bf16.mxu0 0
    %2848 = vmatpush1.bf16.msra.mxu0 %v2759
    %2849 = vmatprep.subr.bf16.mxu0 0
    %2850 = vmatpush1.bf16.msra.mxu0 %v2762
    %2851 = vmatprep.subr.bf16.mxu0 0
    %2852 = vmatpush1.bf16.msra.mxu0 %v2765
    %2853 = vmatprep.subr.bf16.mxu0 0
    %2854 = vmatpush1.bf16.msra.mxu0 %v2768
    %2855 = vmatprep.subr.bf16.mxu0 0
    %2856 = vmatpush1.bf16.msra.mxu0 %v2771
    %2857 = vmatprep.subr.bf16.mxu0 0
    %2858 = vmatpush1.bf16.msra.mxu0 %v2774
    %2859 = vmatprep.subr.bf16.mxu0 0
    %2860 = vmatpush1.bf16.msra.mxu0 %v2777
    %2861 = vmatprep.subr.bf16.mxu0 0
    %2862 = vmatpush1.bf16.msra.mxu0 0
    %2863 = vmatprep.subr.bf16.mxu0 0
    %2864 = vmatpush1.bf16.msra.mxu0 0
    %2865 = vmatprep.subr.bf16.mxu0 0
    %2866 = vmatpush1.bf16.msra.mxu0 0
    %2867 = vmatprep.subr.bf16.mxu0 0
    %2868 = vmatpush1.bf16.msra.mxu0 0
    %2869 = vmatprep.subr.bf16.mxu0 0
    %2870 = vmatpush1.bf16.msra.mxu0 0
    %2871 = vmatprep.subr.bf16.mxu0 0
    %2872 = vmatpush1.bf16.msra.mxu0 0
    %2873 = vmatprep.subr.bf16.mxu0 0
    %2874 = vmatpush1.bf16.msra.mxu0 0
    %2875 = vmatprep.subr.bf16.mxu0 0
    %2876 = vmatpush1.bf16.msra.mxu0 0
    %2877 = vmatprep.mubr.bf16.mxu0 0
    %2878 = vmatmul.mubr.bf16.gmra.mrb[0].mxu0 %v2640
    %v2879 = vpop.f32.mrb[0].mxu0
    %v2880 = vadd.f32 0.0, %v2879
    %v2881 = vpop.f32.mrb[0].mxu0
    %v2882 = vpop.f32.mrb[0].mxu0
    %v2883 = vadd.f32 0.0, %v2882
    %v2884 = vpop.f32.mrb[0].mxu0
    %2885 = vdwg.mxu0
    %v2886 = vpack.c.bf16 %v2883, %v2880
    %v2887 = vmul.f32 %v2837, %v318
    %v2888 = vmul.f32 %v2841, %v319
    %v2889 = vmul.f32 %v2837, %v600
    %v2890 = vmul.f32 %v2841, %v602
    %2893 = vrot.lane.b32.xlu0 %v2889, 64
    %v2894 = vpop.permute.xlu0 %2893
    %2895 = vrot.lane.b32.xlu0 %v2890, 64
    %v2896 = vpop.permute.xlu0 %2895
    %v2899 = vsub.f32 %v2887, %v2894
    %v2900 = vsub.f32 %v2888, %v2896
    %v2901 = vpack.c.bf16 %v2900, %v2899
    %v2902 = vmul.f32 %v2837, %v621
    %v2903 = vmul.f32 %v2841, %v623
    %v2904 = vmul.f32 %v2837, %v320
    %v2905 = vmul.f32 %v2841, %v321
    %2908 = vrot.lane.b32.xlu0 %v2904, 64
    %v2909 = vpop.permute.xlu0 %2908
    %2910 = vrot.lane.b32.xlu0 %v2905, 64
    %v2911 = vpop.permute.xlu0 %2910
    %v2914 = vadd.f32 %v2902, %v2909
    %v2915 = vadd.f32 %v2903, %v2911
    %v2916 = vpack.c.bf16 %v2915, %v2914
    %v2917 = vmul.f32 %v2839, %v318
    %v2918 = vmul.f32 %v2843, %v319
    %v2919 = vmul.f32 %v2839, %v600
    %v2920 = vmul.f32 %v2843, %v602
    %2923 = vrot.lane.b32.xlu0 %v2919, 64
    %v2924 = vpop.permute.xlu0 %2923
    %2925 = vrot.lane.b32.xlu0 %v2920, 64
    %v2926 = vpop.permute.xlu0 %2925
    %v2929 = vsub.f32 %v2917, %v2924
    %v2930 = vsub.f32 %v2918, %v2926
    %v2931 = vpack.c.bf16 %v2930, %v2929
    %v2932 = vmul.f32 %v2839, %v621
    %v2933 = vmul.f32 %v2843, %v623
    %v2934 = vmul.f32 %v2839, %v320
    %v2935 = vmul.f32 %v2843, %v321
    %2938 = vrot.lane.b32.xlu0 %v2934, 64
    %v2939 = vpop.permute.xlu0 %2938
    %2940 = vrot.lane.b32.xlu0 %v2935, 64
    %v2941 = vpop.permute.xlu0 %2940
    %v2944 = vadd.f32 %v2932, %v2939
    %v2945 = vadd.f32 %v2933, %v2941
    %v2946 = vpack.c.bf16 %v2945, %v2944
    %2948 = vrot.lane.b32.xlu0 %v2916, 64
    %v2949 = vpop.permute.xlu0 %2948
    %2951 = vrot.lane.b32.xlu0 %v2946, 64
    %v2952 = vpop.permute.xlu0 %2951
    %v2954 = vsel %vm677, %v2949, 0
    %v2957 = vsel %vm677, %v2952, 0
    %2959 = vmatprep.subr.bf16.mxu0 0
    %2960 = vmatpush1.bf16.xpose.msra.mxu0 %v2957
    %2961 = vmatprep.subr.bf16.mxu0 0
    %2962 = vmatpush1.bf16.xpose.msra.mxu0 0
    %2963 = vmatprep.subr.bf16.mxu0 0
    %2964 = vmatpush1.bf16.xpose.msra.mxu0 0
    %2965 = vmatprep.subr.bf16.mxu0 0
    %2966 = vmatpush1.bf16.xpose.msra.mxu0 0
    %2967 = vmatprep.subr.bf16.mxu0 0
    %2968 = vmatpush1.bf16.xpose.msra.mxu0 0
    %2969 = vmatprep.subr.bf16.mxu0 0
    %2970 = vmatpush1.bf16.xpose.msra.mxu0 0
    %2971 = vmatprep.subr.bf16.mxu0 0
    %2972 = vmatpush1.bf16.xpose.msra.mxu0 0
    %2973 = vmatprep.subr.bf16.mxu0 0
    %2974 = vmatpush1.bf16.xpose.msra.mxu0 0
    %2975 = vmatprep.subr.bf16.mxu0 0
    %2976 = vmatpush1.bf16.xpose.msra.mxu0 0
    %2977 = vmatprep.subr.bf16.mxu0 0
    %2978 = vmatpush1.bf16.xpose.msra.mxu0 0
    %2979 = vmatprep.subr.bf16.mxu0 0
    %2980 = vmatpush1.bf16.xpose.msra.mxu0 0
    %2981 = vmatprep.subr.bf16.mxu0 0
    %2982 = vmatpush1.bf16.xpose.msra.mxu0 0
    %2983 = vmatprep.subr.bf16.mxu0 0
    %2984 = vmatpush1.bf16.xpose.msra.mxu0 0
    %2985 = vmatprep.subr.bf16.mxu0 0
    %2986 = vmatpush1.bf16.xpose.msra.mxu0 0
    %2987 = vmatprep.subr.bf16.mxu0 0
    %2988 = vmatpush1.bf16.xpose.msra.mxu0 0
    %2989 = vmatprep.subr.bf16.mxu0 0
    %2990 = vmatpush1.bf16.xpose.msra.mxu0 0
    %2991 = vmatprep.mubr.bf16.mxu0 0
    %2992 = vmatmul.mubr.bf16.gmra.mrb[0].mxu0 %v2954
    %v2993 = vpop.f32.mrb[0].mxu0
    %v2994 = vadd.f32 0.0, %v2993
    %v2995 = vpop.f32.mrb[0].mxu0
    %v2996 = vpop.f32.mrb[0].mxu0
    %v2997 = vpop.f32.mrb[0].mxu0
    %2998 = vdwg.mxu0
    %v3000 = vsel %vm677, %v2901, 0
    %v3003 = vsel %vm677, %v2931, 0
    %3005 = vmatprep.subr.bf16.mxu0 0
    %3006 = vmatpush1.bf16.xpose.msra.mxu0 %v3003
    %3007 = vmatprep.subr.bf16.mxu0 0
    %3008 = vmatpush1.bf16.xpose.msra.mxu0 0
    %3009 = vmatprep.subr.bf16.mxu0 0
    %3010 = vmatpush1.bf16.xpose.msra.mxu0 0
    %3011 = vmatprep.subr.bf16.mxu0 0
    %3012 = vmatpush1.bf16.xpose.msra.mxu0 0
    %3013 = vmatprep.subr.bf16.mxu0 0
    %3014 = vmatpush1.bf16.xpose.msra.mxu0 0
    %3015 = vmatprep.subr.bf16.mxu0 0
    %3016 = vmatpush1.bf16.xpose.msra.mxu0 0
    %3017 = vmatprep.subr.bf16.mxu0 0
    %3018 = vmatpush1.bf16.xpose.msra.mxu0 0
    %3019 = vmatprep.subr.bf16.mxu0 0
    %3020 = vmatpush1.bf16.xpose.msra.mxu0 0
    %3021 = vmatprep.subr.bf16.mxu0 0
    %3022 = vmatpush1.bf16.xpose.msra.mxu0 0
    %3023 = vmatprep.subr.bf16.mxu0 0
    %3024 = vmatpush1.bf16.xpose.msra.mxu0 0
    %3025 = vmatprep.subr.bf16.mxu0 0
    %3026 = vmatpush1.bf16.xpose.msra.mxu0 0
    %3027 = vmatprep.subr.bf16.mxu0 0
    %3028 = vmatpush1.bf16.xpose.msra.mxu0 0
    %3029 = vmatprep.subr.bf16.mxu0 0
    %3030 = vmatpush1.bf16.xpose.msra.mxu0 0
    %3031 = vmatprep.subr.bf16.mxu0 0
    %3032 = vmatpush1.bf16.xpose.msra.mxu0 0
    %3033 = vmatprep.subr.bf16.mxu0 0
    %3034 = vmatpush1.bf16.xpose.msra.mxu0 0
    %3035 = vmatprep.subr.bf16.mxu0 0
    %3036 = vmatpush1.bf16.xpose.msra.mxu0 0
    %3037 = vmatprep.mubr.bf16.mxu0 0
    %3038 = vmatmul.mubr.bf16.gmra.mrb[0].mxu0 %v3000
    %v3039 = vpop.f32.mrb[0].mxu0
    %v3040 = vadd.f32 %v2994, %v3039
    %v3041 = vpop.f32.mrb[0].mxu0
    %v3042 = vpop.f32.mrb[0].mxu0
    %v3043 = vpop.f32.mrb[0].mxu0
    %3044 = vdwg.mxu0
    %v3045 = vmul.f32 %v3040, 0.17677669
    %v3046 = vsel %vm324, %v3045, -1e+30
    %v3047 = vsel %vm772, %v3046, -inf
    %3048 = vmax.xlane.f32.xlu0 %v3047
    %v3049 = vpop.xlane.xlu0 %3048
    %v3050 = vsub.f32 %v3046, %v3049
    %v3051 = vmul.f32 %v3050, 1.442695
    %v3052 = vpow.pop %v3051
    %v3053 = vsel %vm772, %v3052, 0.0
    %3054 = vadd.xlane.f32.xlu0 %v3053
    %v3055 = vpop.xlane.xlu0 %3054
    %v3056 = vpack.c.bf16 %v3052, %v3052
    %v3058 = vsel %vm772, %v3056, 0
    %v3061 = vsel %vm786, %v2886, 0
    %3063 = vmatprep.subr.bf16.mxu0 0
    %3064 = vmatpush1.bf16.msra.mxu0 %v3061
    %3065 = vmatprep.subr.bf16.mxu0 0
    %3066 = vmatpush1.bf16.msra.mxu0 0
    %3067 = vmatprep.subr.bf16.mxu0 0
    %3068 = vmatpush1.bf16.msra.mxu0 0
    %3069 = vmatprep.subr.bf16.mxu0 0
    %3070 = vmatpush1.bf16.msra.mxu0 0
    %3071 = vmatprep.subr.bf16.mxu0 0
    %3072 = vmatpush1.bf16.msra.mxu0 0
    %3073 = vmatprep.subr.bf16.mxu0 0
    %3074 = vmatpush1.bf16.msra.mxu0 0
    %3075 = vmatprep.subr.bf16.mxu0 0
    %3076 = vmatpush1.bf16.msra.mxu0 0
    %3077 = vmatprep.subr.bf16.mxu0 0
    %3078 = vmatpush1.bf16.msra.mxu0 0
    %3079 = vmatprep.subr.bf16.mxu0 0
    %3080 = vmatpush1.bf16.msra.mxu0 0
    %3081 = vmatprep.subr.bf16.mxu0 0
    %3082 = vmatpush1.bf16.msra.mxu0 0
    %3083 = vmatprep.subr.bf16.mxu0 0
    %3084 = vmatpush1.bf16.msra.mxu0 0
    %3085 = vmatprep.subr.bf16.mxu0 0
    %3086 = vmatpush1.bf16.msra.mxu0 0
    %3087 = vmatprep.subr.bf16.mxu0 0
    %3088 = vmatpush1.bf16.msra.mxu0 0
    %3089 = vmatprep.subr.bf16.mxu0 0
    %3090 = vmatpush1.bf16.msra.mxu0 0
    %3091 = vmatprep.subr.bf16.mxu0 0
    %3092 = vmatpush1.bf16.msra.mxu0 0
    %3093 = vmatprep.subr.bf16.mxu0 0
    %3094 = vmatpush1.bf16.msra.mxu0 0
    %3095 = vmatprep.mubr.bf16.mxu0 0
    %3096 = vmatmul.mubr.bf16.gmra.mrb[0].mxu0 %v3058
    %v3097 = vpop.f32.mrb[0].mxu0
    %v3098 = vadd.f32 0.0, %v3097
    %v3099 = vpop.f32.mrb[0].mxu0
    %v3100 = vpop.f32.mrb[0].mxu0
    %v3101 = vpop.f32.mrb[0].mxu0
    %3102 = vdwg.mxu0
    %v3103 = vrcp.pop %v3055
    %v3104 = vmul.f32 %v3098, %v3103
    %3105 = vrot.lane.b32.xlu0 %v2916, 48
    %v3106 = vpop.permute.xlu0 %3105
    %3107 = vrot.lane.b32.xlu0 %v2946, 48
    %v3108 = vpop.permute.xlu0 %3107
    %v3110 = vsel %vm677, %v3106, 0
    %v3113 = vsel %vm677, %v3108, 0
    %3115 = vmatprep.subr.bf16.mxu0 0
    %3116 = vmatpush1.bf16.xpose.msra.mxu0 %v3113
    %3117 = vmatprep.subr.bf16.mxu0 0
    %3118 = vmatpush1.bf16.xpose.msra.mxu0 0
    %3119 = vmatprep.subr.bf16.mxu0 0
    %3120 = vmatpush1.bf16.xpose.msra.mxu0 0
    %3121 = vmatprep.subr.bf16.mxu0 0
    %3122 = vmatpush1.bf16.xpose.msra.mxu0 0
    %3123 = vmatprep.subr.bf16.mxu0 0
    %3124 = vmatpush1.bf16.xpose.msra.mxu0 0
    %3125 = vmatprep.subr.bf16.mxu0 0
    %3126 = vmatpush1.bf16.xpose.msra.mxu0 0
    %3127 = vmatprep.subr.bf16.mxu0 0
    %3128 = vmatpush1.bf16.xpose.msra.mxu0 0
    %3129 = vmatprep.subr.bf16.mxu0 0
    %3130 = vmatpush1.bf16.xpose.msra.mxu0 0
    %3131 = vmatprep.subr.bf16.mxu0 0
    %3132 = vmatpush1.bf16.xpose.msra.mxu0 0
    %3133 = vmatprep.subr.bf16.mxu0 0
    %3134 = vmatpush1.bf16.xpose.msra.mxu0 0
    %3135 = vmatprep.subr.bf16.mxu0 0
    %3136 = vmatpush1.bf16.xpose.msra.mxu0 0
    %3137 = vmatprep.subr.bf16.mxu0 0
    %3138 = vmatpush1.bf16.xpose.msra.mxu0 0
    %3139 = vmatprep.subr.bf16.mxu0 0
    %3140 = vmatpush1.bf16.xpose.msra.mxu0 0
    %3141 = vmatprep.subr.bf16.mxu0 0
    %3142 = vmatpush1.bf16.xpose.msra.mxu0 0
    %3143 = vmatprep.subr.bf16.mxu0 0
    %3144 = vmatpush1.bf16.xpose.msra.mxu0 0
    %3145 = vmatprep.subr.bf16.mxu0 0
    %3146 = vmatpush1.bf16.xpose.msra.mxu0 0
    %3147 = vmatprep.mubr.bf16.mxu0 0
    %3148 = vmatmul.mubr.bf16.gmra.mrb[0].mxu0 %v3110
    %v3149 = vpop.f32.mrb[0].mxu0
    %v3150 = vadd.f32 0.0, %v3149
    %v3151 = vpop.f32.mrb[0].mxu0
    %v3152 = vpop.f32.mrb[0].mxu0
    %v3153 = vpop.f32.mrb[0].mxu0
    %3154 = vdwg.mxu0
    %3156 = vrot.lane.b32.xlu0 %v2901, 112
    %v3157 = vpop.permute.xlu0 %3156
    %3159 = vrot.lane.b32.xlu0 %v2931, 112
    %v3160 = vpop.permute.xlu0 %3159
    %v3162 = vsel %vm677, %v3157, 0
    %v3165 = vsel %vm677, %v3160, 0
    %3167 = vmatprep.subr.bf16.mxu0 0
    %3168 = vmatpush1.bf16.xpose.msra.mxu0 %v3165
    %3169 = vmatprep.subr.bf16.mxu0 0
    %3170 = vmatpush1.bf16.xpose.msra.mxu0 0
    %3171 = vmatprep.subr.bf16.mxu0 0
    %3172 = vmatpush1.bf16.xpose.msra.mxu0 0
    %3173 = vmatprep.subr.bf16.mxu0 0
    %3174 = vmatpush1.bf16.xpose.msra.mxu0 0
    %3175 = vmatprep.subr.bf16.mxu0 0
    %3176 = vmatpush1.bf16.xpose.msra.mxu0 0
    %3177 = vmatprep.subr.bf16.mxu0 0
    %3178 = vmatpush1.bf16.xpose.msra.mxu0 0
    %3179 = vmatprep.subr.bf16.mxu0 0
    %3180 = vmatpush1.bf16.xpose.msra.mxu0 0
    %3181 = vmatprep.subr.bf16.mxu0 0
    %3182 = vmatpush1.bf16.xpose.msra.mxu0 0
    %3183 = vmatprep.subr.bf16.mxu0 0
    %3184 = vmatpush1.bf16.xpose.msra.mxu0 0
    %3185 = vmatprep.subr.bf16.mxu0 0
    %3186 = vmatpush1.bf16.xpose.msra.mxu0 0
    %3187 = vmatprep.subr.bf16.mxu0 0
    %3188 = vmatpush1.bf16.xpose.msra.mxu0 0
    %3189 = vmatprep.subr.bf16.mxu0 0
    %3190 = vmatpush1.bf16.xpose.msra.mxu0 0
    %3191 = vmatprep.subr.bf16.mxu0 0
    %3192 = vmatpush1.bf16.xpose.msra.mxu0 0
    %3193 = vmatprep.subr.bf16.mxu0 0
    %3194 = vmatpush1.bf16.xpose.msra.mxu0 0
    %3195 = vmatprep.subr.bf16.mxu0 0
    %3196 = vmatpush1.bf16.xpose.msra.mxu0 0
    %3197 = vmatprep.subr.bf16.mxu0 0
    %3198 = vmatpush1.bf16.xpose.msra.mxu0 0
    %3199 = vmatprep.mubr.bf16.mxu0 0
    %3200 = vmatmul.mubr.bf16.gmra.mrb[0].mxu0 %v3162
    %v3201 = vpop.f32.mrb[0].mxu0
    %v3202 = vadd.f32 %v3150, %v3201
    %v3203 = vpop.f32.mrb[0].mxu0
    %v3204 = vpop.f32.mrb[0].mxu0
    %v3205 = vpop.f32.mrb[0].mxu0
    %3206 = vdwg.mxu0
    %v3207 = vmul.f32 %v3202, 0.17677669
    %v3208 = vsel %vm324, %v3207, -1e+30
    %v3209 = vsel %vm772, %v3208, -inf
    %3210 = vmax.xlane.f32.xlu0 %v3209
    %v3211 = vpop.xlane.xlu0 %3210
    %v3212 = vsub.f32 %v3208, %v3211
    %v3213 = vmul.f32 %v3212, 1.442695
    %v3214 = vpow.pop %v3213
    %v3215 = vsel %vm772, %v3214, 0.0
    %3216 = vadd.xlane.f32.xlu0 %v3215
    %v3217 = vpop.xlane.xlu0 %3216
    %v3218 = vpack.c.bf16 %v3214, %v3214
    %3220 = vrot.lane.b32.xlu0 %v2886, 96
    %v3221 = vpop.permute.xlu0 %3220
    %v3223 = vsel %vm772, %v3218, 0
    %v3226 = vsel %vm786, %v3221, 0
    %3228 = vmatprep.subr.bf16.mxu0 0
    %3229 = vmatpush1.bf16.msra.mxu0 %v3226
    %3230 = vmatprep.subr.bf16.mxu0 0
    %3231 = vmatpush1.bf16.msra.mxu0 0
    %3232 = vmatprep.subr.bf16.mxu0 0
    %3233 = vmatpush1.bf16.msra.mxu0 0
    %3234 = vmatprep.subr.bf16.mxu0 0
    %3235 = vmatpush1.bf16.msra.mxu0 0
    %3236 = vmatprep.subr.bf16.mxu0 0
    %3237 = vmatpush1.bf16.msra.mxu0 0
    %3238 = vmatprep.subr.bf16.mxu0 0
    %3239 = vmatpush1.bf16.msra.mxu0 0
    %3240 = vmatprep.subr.bf16.mxu0 0
    %3241 = vmatpush1.bf16.msra.mxu0 0
    %3242 = vmatprep.subr.bf16.mxu0 0
    %3243 = vmatpush1.bf16.msra.mxu0 0
    %3244 = vmatprep.subr.bf16.mxu0 0
    %3245 = vmatpush1.bf16.msra.mxu0 0
    %3246 = vmatprep.subr.bf16.mxu0 0
    %3247 = vmatpush1.bf16.msra.mxu0 0
    %3248 = vmatprep.subr.bf16.mxu0 0
    %3249 = vmatpush1.bf16.msra.mxu0 0
    %3250 = vmatprep.subr.bf16.mxu0 0
    %3251 = vmatpush1.bf16.msra.mxu0 0
    %3252 = vmatprep.subr.bf16.mxu0 0
    %3253 = vmatpush1.bf16.msra.mxu0 0
    %3254 = vmatprep.subr.bf16.mxu0 0
    %3255 = vmatpush1.bf16.msra.mxu0 0
    %3256 = vmatprep.subr.bf16.mxu0 0
    %3257 = vmatpush1.bf16.msra.mxu0 0
    %3258 = vmatprep.subr.bf16.mxu0 0
    %3259 = vmatpush1.bf16.msra.mxu0 0
    %3260 = vmatprep.mubr.bf16.mxu0 0
    %3261 = vmatmul.mubr.bf16.gmra.mrb[0].mxu0 %v3223
    %v3262 = vpop.f32.mrb[0].mxu0
    %v3263 = vadd.f32 0.0, %v3262
    %v3264 = vpop.f32.mrb[0].mxu0
    %v3265 = vpop.f32.mrb[0].mxu0
    %v3266 = vpop.f32.mrb[0].mxu0
    %3267 = vdwg.mxu0
    %v3268 = vrcp.pop %v3217
    %v3269 = vmul.f32 %v3263, %v3268
    %3270 = vrot.lane.b32.xlu0 %v2916, 32
    %v3271 = vpop.permute.xlu0 %3270
    %3272 = vrot.lane.b32.xlu0 %v2946, 32
    %v3273 = vpop.permute.xlu0 %3272
    %v3275 = vsel %vm677, %v3271, 0
    %v3278 = vsel %vm677, %v3273, 0
    %3280 = vmatprep.subr.bf16.mxu0 0
    %3281 = vmatpush1.bf16.xpose.msra.mxu0 %v3278
    %3282 = vmatprep.subr.bf16.mxu0 0
    %3283 = vmatpush1.bf16.xpose.msra.mxu0 0
    %3284 = vmatprep.subr.bf16.mxu0 0
    %3285 = vmatpush1.bf16.xpose.msra.mxu0 0
    %3286 = vmatprep.subr.bf16.mxu0 0
    %3287 = vmatpush1.bf16.xpose.msra.mxu0 0
    %3288 = vmatprep.subr.bf16.mxu0 0
    %3289 = vmatpush1.bf16.xpose.msra.mxu0 0
    %3290 = vmatprep.subr.bf16.mxu0 0
    %3291 = vmatpush1.bf16.xpose.msra.mxu0 0
    %3292 = vmatprep.subr.bf16.mxu0 0
    %3293 = vmatpush1.bf16.xpose.msra.mxu0 0
    %3294 = vmatprep.subr.bf16.mxu0 0
    %3295 = vmatpush1.bf16.xpose.msra.mxu0 0
    %3296 = vmatprep.subr.bf16.mxu0 0
    %3297 = vmatpush1.bf16.xpose.msra.mxu0 0
    %3298 = vmatprep.subr.bf16.mxu0 0
    %3299 = vmatpush1.bf16.xpose.msra.mxu0 0
    %3300 = vmatprep.subr.bf16.mxu0 0
    %3301 = vmatpush1.bf16.xpose.msra.mxu0 0
    %3302 = vmatprep.subr.bf16.mxu0 0
    %3303 = vmatpush1.bf16.xpose.msra.mxu0 0
    %3304 = vmatprep.subr.bf16.mxu0 0
    %3305 = vmatpush1.bf16.xpose.msra.mxu0 0
    %3306 = vmatprep.subr.bf16.mxu0 0
    %3307 = vmatpush1.bf16.xpose.msra.mxu0 0
    %3308 = vmatprep.subr.bf16.mxu0 0
    %3309 = vmatpush1.bf16.xpose.msra.mxu0 0
    %3310 = vmatprep.subr.bf16.mxu0 0
    %3311 = vmatpush1.bf16.xpose.msra.mxu0 0
    %3312 = vmatprep.mubr.bf16.mxu0 0
    %3313 = vmatmul.mubr.bf16.gmra.mrb[0].mxu0 %v3275
    %v3314 = vpop.f32.mrb[0].mxu0
    %v3315 = vadd.f32 0.0, %v3314
    %v3316 = vpop.f32.mrb[0].mxu0
    %v3317 = vpop.f32.mrb[0].mxu0
    %v3318 = vpop.f32.mrb[0].mxu0
    %3319 = vdwg.mxu0
    %3320 = vrot.lane.b32.xlu0 %v2901, 96
    %v3321 = vpop.permute.xlu0 %3320
    %3322 = vrot.lane.b32.xlu0 %v2931, 96
    %v3323 = vpop.permute.xlu0 %3322
    %v3325 = vsel %vm677, %v3321, 0
    %v3328 = vsel %vm677, %v3323, 0
    %3330 = vmatprep.subr.bf16.mxu0 0
    %3331 = vmatpush1.bf16.xpose.msra.mxu0 %v3328
    %3332 = vmatprep.subr.bf16.mxu0 0
    %3333 = vmatpush1.bf16.xpose.msra.mxu0 0
    %3334 = vmatprep.subr.bf16.mxu0 0
    %3335 = vmatpush1.bf16.xpose.msra.mxu0 0
    %3336 = vmatprep.subr.bf16.mxu0 0
    %3337 = vmatpush1.bf16.xpose.msra.mxu0 0
    %3338 = vmatprep.subr.bf16.mxu0 0
    %3339 = vmatpush1.bf16.xpose.msra.mxu0 0
    %3340 = vmatprep.subr.bf16.mxu0 0
    %3341 = vmatpush1.bf16.xpose.msra.mxu0 0
    %3342 = vmatprep.subr.bf16.mxu0 0
    %3343 = vmatpush1.bf16.xpose.msra.mxu0 0
    %3344 = vmatprep.subr.bf16.mxu0 0
    %3345 = vmatpush1.bf16.xpose.msra.mxu0 0
    %3346 = vmatprep.subr.bf16.mxu0 0
    %3347 = vmatpush1.bf16.xpose.msra.mxu0 0
    %3348 = vmatprep.subr.bf16.mxu0 0
    %3349 = vmatpush1.bf16.xpose.msra.mxu0 0
    %3350 = vmatprep.subr.bf16.mxu0 0
    %3351 = vmatpush1.bf16.xpose.msra.mxu0 0
    %3352 = vmatprep.subr.bf16.mxu0 0
    %3353 = vmatpush1.bf16.xpose.msra.mxu0 0
    %3354 = vmatprep.subr.bf16.mxu0 0
    %3355 = vmatpush1.bf16.xpose.msra.mxu0 0
    %3356 = vmatprep.subr.bf16.mxu0 0
    %3357 = vmatpush1.bf16.xpose.msra.mxu0 0
    %3358 = vmatprep.subr.bf16.mxu0 0
    %3359 = vmatpush1.bf16.xpose.msra.mxu0 0
    %3360 = vmatprep.subr.bf16.mxu0 0
    %3361 = vmatpush1.bf16.xpose.msra.mxu0 0
    %3362 = vmatprep.mubr.bf16.mxu0 0
    %3363 = vmatmul.mubr.bf16.gmra.mrb[0].mxu0 %v3325
    %v3364 = vpop.f32.mrb[0].mxu0
    %v3365 = vadd.f32 %v3315, %v3364
    %v3366 = vpop.f32.mrb[0].mxu0
    %v3367 = vpop.f32.mrb[0].mxu0
    %v3368 = vpop.f32.mrb[0].mxu0
    %3369 = vdwg.mxu0
    %v3370 = vmul.f32 %v3365, 0.17677669
    %v3371 = vsel %vm324, %v3370, -1e+30
    %v3372 = vsel %vm772, %v3371, -inf
    %3373 = vmax.xlane.f32.xlu0 %v3372
    %v3374 = vpop.xlane.xlu0 %3373
    %v3375 = vsub.f32 %v3371, %v3374
    %v3376 = vmul.f32 %v3375, 1.442695
    %v3377 = vpow.pop %v3376
    %v3378 = vsel %vm772, %v3377, 0.0
    %3379 = vadd.xlane.f32.xlu0 %v3378
    %v3380 = vpop.xlane.xlu0 %3379
    %v3381 = vpack.c.bf16 %v3377, %v3377
    %3382 = vrot.lane.b32.xlu0 %v2886, 64
    %v3383 = vpop.permute.xlu0 %3382
    %v3385 = vsel %vm772, %v3381, 0
    %v3388 = vsel %vm786, %v3383, 0
    %3390 = vmatprep.subr.bf16.mxu0 0
    %3391 = vmatpush1.bf16.msra.mxu0 %v3388
    %3392 = vmatprep.subr.bf16.mxu0 0
    %3393 = vmatpush1.bf16.msra.mxu0 0
    %3394 = vmatprep.subr.bf16.mxu0 0
    %3395 = vmatpush1.bf16.msra.mxu0 0
    %3396 = vmatprep.subr.bf16.mxu0 0
    %3397 = vmatpush1.bf16.msra.mxu0 0
    %3398 = vmatprep.subr.bf16.mxu0 0
    %3399 = vmatpush1.bf16.msra.mxu0 0
    %3400 = vmatprep.subr.bf16.mxu0 0
    %3401 = vmatpush1.bf16.msra.mxu0 0
    %3402 = vmatprep.subr.bf16.mxu0 0
    %3403 = vmatpush1.bf16.msra.mxu0 0
    %3404 = vmatprep.subr.bf16.mxu0 0
    %3405 = vmatpush1.bf16.msra.mxu0 0
    %3406 = vmatprep.subr.bf16.mxu0 0
    %3407 = vmatpush1.bf16.msra.mxu0 0
    %3408 = vmatprep.subr.bf16.mxu0 0
    %3409 = vmatpush1.bf16.msra.mxu0 0
    %3410 = vmatprep.subr.bf16.mxu0 0
    %3411 = vmatpush1.bf16.msra.mxu0 0
    %3412 = vmatprep.subr.bf16.mxu0 0
    %3413 = vmatpush1.bf16.msra.mxu0 0
    %3414 = vmatprep.subr.bf16.mxu0 0
    %3415 = vmatpush1.bf16.msra.mxu0 0
    %3416 = vmatprep.subr.bf16.mxu0 0
    %3417 = vmatpush1.bf16.msra.mxu0 0
    %3418 = vmatprep.subr.bf16.mxu0 0
    %3419 = vmatpush1.bf16.msra.mxu0 0
    %3420 = vmatprep.subr.bf16.mxu0 0
    %3421 = vmatpush1.bf16.msra.mxu0 0
    %3422 = vmatprep.mubr.bf16.mxu0 0
    %3423 = vmatmul.mubr.bf16.gmra.mrb[0].mxu0 %v3385
    %v3424 = vpop.f32.mrb[0].mxu0
    %v3425 = vadd.f32 0.0, %v3424
    %v3426 = vpop.f32.mrb[0].mxu0
    %v3427 = vpop.f32.mrb[0].mxu0
    %v3428 = vpop.f32.mrb[0].mxu0
    %3429 = vdwg.mxu0
    %v3430 = vrcp.pop %v3380
    %v3431 = vmul.f32 %v3425, %v3430
    %3432 = vrot.lane.b32.xlu0 %v2916, 16
    %v3433 = vpop.permute.xlu0 %3432
    %3434 = vrot.lane.b32.xlu0 %v2946, 16
    %v3435 = vpop.permute.xlu0 %3434
    %v3437 = vsel %vm677, %v3433, 0
    %v3440 = vsel %vm677, %v3435, 0
    %3442 = vmatprep.subr.bf16.mxu0 0
    %3443 = vmatpush1.bf16.xpose.msra.mxu0 %v3440
    %3444 = vmatprep.subr.bf16.mxu0 0
    %3445 = vmatpush1.bf16.xpose.msra.mxu0 0
    %3446 = vmatprep.subr.bf16.mxu0 0
    %3447 = vmatpush1.bf16.xpose.msra.mxu0 0
    %3448 = vmatprep.subr.bf16.mxu0 0
    %3449 = vmatpush1.bf16.xpose.msra.mxu0 0
    %3450 = vmatprep.subr.bf16.mxu0 0
    %3451 = vmatpush1.bf16.xpose.msra.mxu0 0
    %3452 = vmatprep.subr.bf16.mxu0 0
    %3453 = vmatpush1.bf16.xpose.msra.mxu0 0
    %3454 = vmatprep.subr.bf16.mxu0 0
    %3455 = vmatpush1.bf16.xpose.msra.mxu0 0
    %3456 = vmatprep.subr.bf16.mxu0 0
    %3457 = vmatpush1.bf16.xpose.msra.mxu0 0
    %3458 = vmatprep.subr.bf16.mxu0 0
    %3459 = vmatpush1.bf16.xpose.msra.mxu0 0
    %3460 = vmatprep.subr.bf16.mxu0 0
    %3461 = vmatpush1.bf16.xpose.msra.mxu0 0
    %3462 = vmatprep.subr.bf16.mxu0 0
    %3463 = vmatpush1.bf16.xpose.msra.mxu0 0
    %3464 = vmatprep.subr.bf16.mxu0 0
    %3465 = vmatpush1.bf16.xpose.msra.mxu0 0
    %3466 = vmatprep.subr.bf16.mxu0 0
    %3467 = vmatpush1.bf16.xpose.msra.mxu0 0
    %3468 = vmatprep.subr.bf16.mxu0 0
    %3469 = vmatpush1.bf16.xpose.msra.mxu0 0
    %3470 = vmatprep.subr.bf16.mxu0 0
    %3471 = vmatpush1.bf16.xpose.msra.mxu0 0
    %3472 = vmatprep.subr.bf16.mxu0 0
    %3473 = vmatpush1.bf16.xpose.msra.mxu0 0
    %3474 = vmatprep.mubr.bf16.mxu0 0
    %3475 = vmatmul.mubr.bf16.gmra.mrb[0].mxu0 %v3437
    %v3476 = vpop.f32.mrb[0].mxu0
    %v3477 = vadd.f32 0.0, %v3476
    %v3478 = vpop.f32.mrb[0].mxu0
    %v3479 = vpop.f32.mrb[0].mxu0
    %v3480 = vpop.f32.mrb[0].mxu0
    %3481 = vdwg.mxu0
    %3482 = vrot.lane.b32.xlu0 %v2901, 80
    %v3483 = vpop.permute.xlu0 %3482
    %3484 = vrot.lane.b32.xlu0 %v2931, 80
    %v3485 = vpop.permute.xlu0 %3484
    %v3487 = vsel %vm677, %v3483, 0
    %v3490 = vsel %vm677, %v3485, 0
    %3492 = vmatprep.subr.bf16.mxu0 0
    %3493 = vmatpush1.bf16.xpose.msra.mxu0 %v3490
    %3494 = vmatprep.subr.bf16.mxu0 0
    %3495 = vmatpush1.bf16.xpose.msra.mxu0 0
    %3496 = vmatprep.subr.bf16.mxu0 0
    %3497 = vmatpush1.bf16.xpose.msra.mxu0 0
    %3498 = vmatprep.subr.bf16.mxu0 0
    %3499 = vmatpush1.bf16.xpose.msra.mxu0 0
    %3500 = vmatprep.subr.bf16.mxu0 0
    %3501 = vmatpush1.bf16.xpose.msra.mxu0 0
    %3502 = vmatprep.subr.bf16.mxu0 0
    %3503 = vmatpush1.bf16.xpose.msra.mxu0 0
    %3504 = vmatprep.subr.bf16.mxu0 0
    %3505 = vmatpush1.bf16.xpose.msra.mxu0 0
    %3506 = vmatprep.subr.bf16.mxu0 0
    %3507 = vmatpush1.bf16.xpose.msra.mxu0 0
    %3508 = vmatprep.subr.bf16.mxu0 0
    %3509 = vmatpush1.bf16.xpose.msra.mxu0 0
    %3510 = vmatprep.subr.bf16.mxu0 0
    %3511 = vmatpush1.bf16.xpose.msra.mxu0 0
    %3512 = vmatprep.subr.bf16.mxu0 0
    %3513 = vmatpush1.bf16.xpose.msra.mxu0 0
    %3514 = vmatprep.subr.bf16.mxu0 0
    %3515 = vmatpush1.bf16.xpose.msra.mxu0 0
    %3516 = vmatprep.subr.bf16.mxu0 0
    %3517 = vmatpush1.bf16.xpose.msra.mxu0 0
    %3518 = vmatprep.subr.bf16.mxu0 0
    %3519 = vmatpush1.bf16.xpose.msra.mxu0 0
    %3520 = vmatprep.subr.bf16.mxu0 0
    %3521 = vmatpush1.bf16.xpose.msra.mxu0 0
    %3522 = vmatprep.subr.bf16.mxu0 0
    %3523 = vmatpush1.bf16.xpose.msra.mxu0 0
    %3524 = vmatprep.mubr.bf16.mxu0 0
    %3525 = vmatmul.mubr.bf16.gmra.mrb[0].mxu0 %v3487
    %v3526 = vpop.f32.mrb[0].mxu0
    %v3527 = vadd.f32 %v3477, %v3526
    %v3528 = vpop.f32.mrb[0].mxu0
    %v3529 = vpop.f32.mrb[0].mxu0
    %v3530 = vpop.f32.mrb[0].mxu0
    %3531 = vdwg.mxu0
    %v3532 = vmul.f32 %v3527, 0.17677669
    %v3533 = vsel %vm324, %v3532, -1e+30
    %v3534 = vsel %vm772, %v3533, -inf
    %3535 = vmax.xlane.f32.xlu0 %v3534
    %v3536 = vpop.xlane.xlu0 %3535
    %v3537 = vsub.f32 %v3533, %v3536
    %v3538 = vmul.f32 %v3537, 1.442695
    %v3539 = vpow.pop %v3538
    %v3540 = vsel %vm772, %v3539, 0.0
    %3541 = vadd.xlane.f32.xlu0 %v3540
    %v3542 = vpop.xlane.xlu0 %3541
    %v3543 = vpack.c.bf16 %v3539, %v3539
    %3544 = vrot.lane.b32.xlu0 %v2886, 32
    %v3545 = vpop.permute.xlu0 %3544
    %v3547 = vsel %vm772, %v3543, 0
    %v3550 = vsel %vm786, %v3545, 0
    %3552 = vmatprep.subr.bf16.mxu0 0
    %3553 = vmatpush1.bf16.msra.mxu0 %v3550
    %3554 = vmatprep.subr.bf16.mxu0 0
    %3555 = vmatpush1.bf16.msra.mxu0 0
    %3556 = vmatprep.subr.bf16.mxu0 0
    %3557 = vmatpush1.bf16.msra.mxu0 0
    %3558 = vmatprep.subr.bf16.mxu0 0
    %3559 = vmatpush1.bf16.msra.mxu0 0
    %3560 = vmatprep.subr.bf16.mxu0 0
    %3561 = vmatpush1.bf16.msra.mxu0 0
    %3562 = vmatprep.subr.bf16.mxu0 0
    %3563 = vmatpush1.bf16.msra.mxu0 0
    %3564 = vmatprep.subr.bf16.mxu0 0
    %3565 = vmatpush1.bf16.msra.mxu0 0
    %3566 = vmatprep.subr.bf16.mxu0 0
    %3567 = vmatpush1.bf16.msra.mxu0 0
    %3568 = vmatprep.subr.bf16.mxu0 0
    %3569 = vmatpush1.bf16.msra.mxu0 0
    %3570 = vmatprep.subr.bf16.mxu0 0
    %3571 = vmatpush1.bf16.msra.mxu0 0
    %3572 = vmatprep.subr.bf16.mxu0 0
    %3573 = vmatpush1.bf16.msra.mxu0 0
    %3574 = vmatprep.subr.bf16.mxu0 0
    %3575 = vmatpush1.bf16.msra.mxu0 0
    %3576 = vmatprep.subr.bf16.mxu0 0
    %3577 = vmatpush1.bf16.msra.mxu0 0
    %3578 = vmatprep.subr.bf16.mxu0 0
    %3579 = vmatpush1.bf16.msra.mxu0 0
    %3580 = vmatprep.subr.bf16.mxu0 0
    %3581 = vmatpush1.bf16.msra.mxu0 0
    %3582 = vmatprep.subr.bf16.mxu0 0
    %3583 = vmatpush1.bf16.msra.mxu0 0
    %3584 = vmatprep.mubr.bf16.mxu0 0
    %3585 = vmatmul.mubr.bf16.gmra.mrb[0].mxu0 %v3547
    %v3586 = vpop.f32.mrb[0].mxu0
    %v3587 = vadd.f32 0.0, %v3586
    %v3588 = vpop.f32.mrb[0].mxu0
    %v3589 = vpop.f32.mrb[0].mxu0
    %v3590 = vpop.f32.mrb[0].mxu0
    %3591 = vdwg.mxu0
    %v3592 = vrcp.pop %v3542
    %v3593 = vmul.f32 %v3587, %v3592
    %3595 = vrot.lane.b32.xlu0 %v3269, 32
    %v3596 = vpop.permute.xlu0 %3595
    %3599 = vrot.lane.b32.xlu0 %v3431, 64
    %v3600 = vpop.permute.xlu0 %3599
    %3603 = vrot.lane.b32.xlu0 %v3593, 96
    %v3604 = vpop.permute.xlu0 %3603
    %v3606 = vsel %vm1333, %v3104, %v3596
    %v3607 = vsel %vm1335, %v3606, %v3600
    %v3608 = vsel %vm1337, %v3607, %v3604
    %v3609 = vrot.slane %v2916, 4
    %3610 = vrot.lane.b32.xlu0 %v3609, 64
    %v3611 = vpop.permute.xlu0 %3610
    %v3612 = vrot.slane %v2946, 4
    %3613 = vrot.lane.b32.xlu0 %v3612, 64
    %v3614 = vpop.permute.xlu0 %3613
    %v3616 = vsel %vm677, %v3611, 0
    %v3619 = vsel %vm677, %v3614, 0
    %3621 = vmatprep.subr.bf16.mxu0 0
    %3622 = vmatpush1.bf16.xpose.msra.mxu0 %v3619
    %3623 = vmatprep.subr.bf16.mxu0 0
    %3624 = vmatpush1.bf16.xpose.msra.mxu0 0
    %3625 = vmatprep.subr.bf16.mxu0 0
    %3626 = vmatpush1.bf16.xpose.msra.mxu0 0
    %3627 = vmatprep.subr.bf16.mxu0 0
    %3628 = vmatpush1.bf16.xpose.msra.mxu0 0
    %3629 = vmatprep.subr.bf16.mxu0 0
    %3630 = vmatpush1.bf16.xpose.msra.mxu0 0
    %3631 = vmatprep.subr.bf16.mxu0 0
    %3632 = vmatpush1.bf16.xpose.msra.mxu0 0
    %3633 = vmatprep.subr.bf16.mxu0 0
    %3634 = vmatpush1.bf16.xpose.msra.mxu0 0
    %3635 = vmatprep.subr.bf16.mxu0 0
    %3636 = vmatpush1.bf16.xpose.msra.mxu0 0
    %3637 = vmatprep.subr.bf16.mxu0 0
    %3638 = vmatpush1.bf16.xpose.msra.mxu0 0
    %3639 = vmatprep.subr.bf16.mxu0 0
    %3640 = vmatpush1.bf16.xpose.msra.mxu0 0
    %3641 = vmatprep.subr.bf16.mxu0 0
    %3642 = vmatpush1.bf16.xpose.msra.mxu0 0
    %3643 = vmatprep.subr.bf16.mxu0 0
    %3644 = vmatpush1.bf16.xpose.msra.mxu0 0
    %3645 = vmatprep.subr.bf16.mxu0 0
    %3646 = vmatpush1.bf16.xpose.msra.mxu0 0
    %3647 = vmatprep.subr.bf16.mxu0 0
    %3648 = vmatpush1.bf16.xpose.msra.mxu0 0
    %3649 = vmatprep.subr.bf16.mxu0 0
    %3650 = vmatpush1.bf16.xpose.msra.mxu0 0
    %3651 = vmatprep.subr.bf16.mxu0 0
    %3652 = vmatpush1.bf16.xpose.msra.mxu0 0
    %3653 = vmatprep.mubr.bf16.mxu0 0
    %3654 = vmatmul.mubr.bf16.gmra.mrb[0].mxu0 %v3616
    %v3655 = vpop.f32.mrb[0].mxu0
    %v3656 = vadd.f32 0.0, %v3655
    %v3657 = vpop.f32.mrb[0].mxu0
    %v3658 = vpop.f32.mrb[0].mxu0
    %v3659 = vpop.f32.mrb[0].mxu0
    %3660 = vdwg.mxu0
    %v3661 = vrot.slane %v2901, 4
    %v3662 = vrot.slane %v2931, 4
    %v3664 = vsel %vm677, %v3661, 0
    %v3667 = vsel %vm677, %v3662, 0
    %3669 = vmatprep.subr.bf16.mxu0 0
    %3670 = vmatpush1.bf16.xpose.msra.mxu0 %v3667
    %3671 = vmatprep.subr.bf16.mxu0 0
    %3672 = vmatpush1.bf16.xpose.msra.mxu0 0
    %3673 = vmatprep.subr.bf16.mxu0 0
    %3674 = vmatpush1.bf16.xpose.msra.mxu0 0
    %3675 = vmatprep.subr.bf16.mxu0 0
    %3676 = vmatpush1.bf16.xpose.msra.mxu0 0
    %3677 = vmatprep.subr.bf16.mxu0 0
    %3678 = vmatpush1.bf16.xpose.msra.mxu0 0
    %3679 = vmatprep.subr.bf16.mxu0 0
    %3680 = vmatpush1.bf16.xpose.msra.mxu0 0
    %3681 = vmatprep.subr.bf16.mxu0 0
    %3682 = vmatpush1.bf16.xpose.msra.mxu0 0
    %3683 = vmatprep.subr.bf16.mxu0 0
    %3684 = vmatpush1.bf16.xpose.msra.mxu0 0
    %3685 = vmatprep.subr.bf16.mxu0 0
    %3686 = vmatpush1.bf16.xpose.msra.mxu0 0
    %3687 = vmatprep.subr.bf16.mxu0 0
    %3688 = vmatpush1.bf16.xpose.msra.mxu0 0
    %3689 = vmatprep.subr.bf16.mxu0 0
    %3690 = vmatpush1.bf16.xpose.msra.mxu0 0
    %3691 = vmatprep.subr.bf16.mxu0 0
    %3692 = vmatpush1.bf16.xpose.msra.mxu0 0
    %3693 = vmatprep.subr.bf16.mxu0 0
    %3694 = vmatpush1.bf16.xpose.msra.mxu0 0
    %3695 = vmatprep.subr.bf16.mxu0 0
    %3696 = vmatpush1.bf16.xpose.msra.mxu0 0
    %3697 = vmatprep.subr.bf16.mxu0 0
    %3698 = vmatpush1.bf16.xpose.msra.mxu0 0
    %3699 = vmatprep.subr.bf16.mxu0 0
    %3700 = vmatpush1.bf16.xpose.msra.mxu0 0
    %3701 = vmatprep.mubr.bf16.mxu0 0
    %3702 = vmatmul.mubr.bf16.gmra.mrb[0].mxu0 %v3664
    %v3703 = vpop.f32.mrb[0].mxu0
    %v3704 = vadd.f32 %v3656, %v3703
    %v3705 = vpop.f32.mrb[0].mxu0
    %v3706 = vpop.f32.mrb[0].mxu0
    %v3707 = vpop.f32.mrb[0].mxu0
    %3708 = vdwg.mxu0
    %v3709 = vmul.f32 %v3704, 0.17677669
    %v3710 = vsel %vm324, %v3709, -1e+30
    %v3711 = vsel %vm772, %v3710, -inf
    %3712 = vmax.xlane.f32.xlu0 %v3711
    %v3713 = vpop.xlane.xlu0 %3712
    %v3714 = vsub.f32 %v3710, %v3713
    %v3715 = vmul.f32 %v3714, 1.442695
    %v3716 = vpow.pop %v3715
    %v3717 = vsel %vm772, %v3716, 0.0
    %3718 = vadd.xlane.f32.xlu0 %v3717
    %v3719 = vpop.xlane.xlu0 %3718
    %v3720 = vpack.c.bf16 %v3716, %v3716
    %v3721 = vrot.slane %v2886, 4
    %v3723 = vsel %vm772, %v3720, 0
    %v3726 = vsel %vm786, %v3721, 0
    %3728 = vmatprep.subr.bf16.mxu0 0
    %3729 = vmatpush1.bf16.msra.mxu0 %v3726
    %3730 = vmatprep.subr.bf16.mxu0 0
    %3731 = vmatpush1.bf16.msra.mxu0 0
    %3732 = vmatprep.subr.bf16.mxu0 0
    %3733 = vmatpush1.bf16.msra.mxu0 0
    %3734 = vmatprep.subr.bf16.mxu0 0
    %3735 = vmatpush1.bf16.msra.mxu0 0
    %3736 = vmatprep.subr.bf16.mxu0 0
    %3737 = vmatpush1.bf16.msra.mxu0 0
    %3738 = vmatprep.subr.bf16.mxu0 0
    %3739 = vmatpush1.bf16.msra.mxu0 0
    %3740 = vmatprep.subr.bf16.mxu0 0
    %3741 = vmatpush1.bf16.msra.mxu0 0
    %3742 = vmatprep.subr.bf16.mxu0 0
    %3743 = vmatpush1.bf16.msra.mxu0 0
    %3744 = vmatprep.subr.bf16.mxu0 0
    %3745 = vmatpush1.bf16.msra.mxu0 0
    %3746 = vmatprep.subr.bf16.mxu0 0
    %3747 = vmatpush1.bf16.msra.mxu0 0
    %3748 = vmatprep.subr.bf16.mxu0 0
    %3749 = vmatpush1.bf16.msra.mxu0 0
    %3750 = vmatprep.subr.bf16.mxu0 0
    %3751 = vmatpush1.bf16.msra.mxu0 0
    %3752 = vmatprep.subr.bf16.mxu0 0
    %3753 = vmatpush1.bf16.msra.mxu0 0
    %3754 = vmatprep.subr.bf16.mxu0 0
    %3755 = vmatpush1.bf16.msra.mxu0 0
    %3756 = vmatprep.subr.bf16.mxu0 0
    %3757 = vmatpush1.bf16.msra.mxu0 0
    %3758 = vmatprep.subr.bf16.mxu0 0
    %3759 = vmatpush1.bf16.msra.mxu0 0
    %3760 = vmatprep.mubr.bf16.mxu0 0
    %3761 = vmatmul.mubr.bf16.gmra.mrb[0].mxu0 %v3723
    %v3762 = vpop.f32.mrb[0].mxu0
    %v3763 = vadd.f32 0.0, %v3762
    %v3764 = vpop.f32.mrb[0].mxu0
    %v3765 = vpop.f32.mrb[0].mxu0
    %v3766 = vpop.f32.mrb[0].mxu0
    %3767 = vdwg.mxu0
    %v3768 = vrcp.pop %v3719
    %v3769 = vmul.f32 %v3763, %v3768
    %3770 = vrot.lane.b32.xlu0 %v3609, 48
    %v3771 = vpop.permute.xlu0 %3770
    %3772 = vrot.lane.b32.xlu0 %v3612, 48
    %v3773 = vpop.permute.xlu0 %3772
    %v3775 = vsel %vm677, %v3771, 0
    %v3778 = vsel %vm677, %v3773, 0
    %3780 = vmatprep.subr.bf16.mxu0 0
    %3781 = vmatpush1.bf16.xpose.msra.mxu0 %v3778
    %3782 = vmatprep.subr.bf16.mxu0 0
    %3783 = vmatpush1.bf16.xpose.msra.mxu0 0
    %3784 = vmatprep.subr.bf16.mxu0 0
    %3785 = vmatpush1.bf16.xpose.msra.mxu0 0
    %3786 = vmatprep.subr.bf16.mxu0 0
    %3787 = vmatpush1.bf16.xpose.msra.mxu0 0
    %3788 = vmatprep.subr.bf16.mxu0 0
    %3789 = vmatpush1.bf16.xpose.msra.mxu0 0
    %3790 = vmatprep.subr.bf16.mxu0 0
    %3791 = vmatpush1.bf16.xpose.msra.mxu0 0
    %3792 = vmatprep.subr.bf16.mxu0 0
    %3793 = vmatpush1.bf16.xpose.msra.mxu0 0
    %3794 = vmatprep.subr.bf16.mxu0 0
    %3795 = vmatpush1.bf16.xpose.msra.mxu0 0
    %3796 = vmatprep.subr.bf16.mxu0 0
    %3797 = vmatpush1.bf16.xpose.msra.mxu0 0
    %3798 = vmatprep.subr.bf16.mxu0 0
    %3799 = vmatpush1.bf16.xpose.msra.mxu0 0
    %3800 = vmatprep.subr.bf16.mxu0 0
    %3801 = vmatpush1.bf16.xpose.msra.mxu0 0
    %3802 = vmatprep.subr.bf16.mxu0 0
    %3803 = vmatpush1.bf16.xpose.msra.mxu0 0
    %3804 = vmatprep.subr.bf16.mxu0 0
    %3805 = vmatpush1.bf16.xpose.msra.mxu0 0
    %3806 = vmatprep.subr.bf16.mxu0 0
    %3807 = vmatpush1.bf16.xpose.msra.mxu0 0
    %3808 = vmatprep.subr.bf16.mxu0 0
    %3809 = vmatpush1.bf16.xpose.msra.mxu0 0
    %3810 = vmatprep.subr.bf16.mxu0 0
    %3811 = vmatpush1.bf16.xpose.msra.mxu0 0
    %3812 = vmatprep.mubr.bf16.mxu0 0
    %3813 = vmatmul.mubr.bf16.gmra.mrb[0].mxu0 %v3775
    %v3814 = vpop.f32.mrb[0].mxu0
    %v3815 = vadd.f32 0.0, %v3814
    %v3816 = vpop.f32.mrb[0].mxu0
    %v3817 = vpop.f32.mrb[0].mxu0
    %v3818 = vpop.f32.mrb[0].mxu0
    %3819 = vdwg.mxu0
    %3820 = vrot.lane.b32.xlu0 %v3661, 112
    %v3821 = vpop.permute.xlu0 %3820
    %3822 = vrot.lane.b32.xlu0 %v3662, 112
    %v3823 = vpop.permute.xlu0 %3822
    %v3825 = vsel %vm677, %v3821, 0
    %v3828 = vsel %vm677, %v3823, 0
    %3830 = vmatprep.subr.bf16.mxu0 0
    %3831 = vmatpush1.bf16.xpose.msra.mxu0 %v3828
    %3832 = vmatprep.subr.bf16.mxu0 0
    %3833 = vmatpush1.bf16.xpose.msra.mxu0 0
    %3834 = vmatprep.subr.bf16.mxu0 0
    %3835 = vmatpush1.bf16.xpose.msra.mxu0 0
    %3836 = vmatprep.subr.bf16.mxu0 0
    %3837 = vmatpush1.bf16.xpose.msra.mxu0 0
    %3838 = vmatprep.subr.bf16.mxu0 0
    %3839 = vmatpush1.bf16.xpose.msra.mxu0 0
    %3840 = vmatprep.subr.bf16.mxu0 0
    %3841 = vmatpush1.bf16.xpose.msra.mxu0 0
    %3842 = vmatprep.subr.bf16.mxu0 0
    %3843 = vmatpush1.bf16.xpose.msra.mxu0 0
    %3844 = vmatprep.subr.bf16.mxu0 0
    %3845 = vmatpush1.bf16.xpose.msra.mxu0 0
    %3846 = vmatprep.subr.bf16.mxu0 0
    %3847 = vmatpush1.bf16.xpose.msra.mxu0 0
    %3848 = vmatprep.subr.bf16.mxu0 0
    %3849 = vmatpush1.bf16.xpose.msra.mxu0 0
    %3850 = vmatprep.subr.bf16.mxu0 0
    %3851 = vmatpush1.bf16.xpose.msra.mxu0 0
    %3852 = vmatprep.subr.bf16.mxu0 0
    %3853 = vmatpush1.bf16.xpose.msra.mxu0 0
    %3854 = vmatprep.subr.bf16.mxu0 0
    %3855 = vmatpush1.bf16.xpose.msra.mxu0 0
    %3856 = vmatprep.subr.bf16.mxu0 0
    %3857 = vmatpush1.bf16.xpose.msra.mxu0 0
    %3858 = vmatprep.subr.bf16.mxu0 0
    %3859 = vmatpush1.bf16.xpose.msra.mxu0 0
    %3860 = vmatprep.subr.bf16.mxu0 0
    %3861 = vmatpush1.bf16.xpose.msra.mxu0 0
    %3862 = vmatprep.mubr.bf16.mxu0 0
    %3863 = vmatmul.mubr.bf16.gmra.mrb[0].mxu0 %v3825
    %v3864 = vpop.f32.mrb[0].mxu0
    %v3865 = vadd.f32 %v3815, %v3864
    %v3866 = vpop.f32.mrb[0].mxu0
    %v3867 = vpop.f32.mrb[0].mxu0
    %v3868 = vpop.f32.mrb[0].mxu0
    %3869 = vdwg.mxu0
    %v3870 = vmul.f32 %v3865, 0.17677669
    %v3871 = vsel %vm324, %v3870, -1e+30
    %v3872 = vsel %vm772, %v3871, -inf
    %3873 = vmax.xlane.f32.xlu0 %v3872
    %v3874 = vpop.xlane.xlu0 %3873
    %v3875 = vsub.f32 %v3871, %v3874
    %v3876 = vmul.f32 %v3875, 1.442695
    %v3877 = vpow.pop %v3876
    %v3878 = vsel %vm772, %v3877, 0.0
    %3879 = vadd.xlane.f32.xlu0 %v3878
    %v3880 = vpop.xlane.xlu0 %3879
    %v3881 = vpack.c.bf16 %v3877, %v3877
    %3882 = vrot.lane.b32.xlu0 %v3721, 96
    %v3883 = vpop.permute.xlu0 %3882
    %v3885 = vsel %vm772, %v3881, 0
    %v3888 = vsel %vm786, %v3883, 0
    %3890 = vmatprep.subr.bf16.mxu0 0
    %3891 = vmatpush1.bf16.msra.mxu0 %v3888
    %3892 = vmatprep.subr.bf16.mxu0 0
    %3893 = vmatpush1.bf16.msra.mxu0 0
    %3894 = vmatprep.subr.bf16.mxu0 0
    %3895 = vmatpush1.bf16.msra.mxu0 0
    %3896 = vmatprep.subr.bf16.mxu0 0
    %3897 = vmatpush1.bf16.msra.mxu0 0
    %3898 = vmatprep.subr.bf16.mxu0 0
    %3899 = vmatpush1.bf16.msra.mxu0 0
    %3900 = vmatprep.subr.bf16.mxu0 0
    %3901 = vmatpush1.bf16.msra.mxu0 0
    %3902 = vmatprep.subr.bf16.mxu0 0
    %3903 = vmatpush1.bf16.msra.mxu0 0
    %3904 = vmatprep.subr.bf16.mxu0 0
    %3905 = vmatpush1.bf16.msra.mxu0 0
    %3906 = vmatprep.subr.bf16.mxu0 0
    %3907 = vmatpush1.bf16.msra.mxu0 0
    %3908 = vmatprep.subr.bf16.mxu0 0
    %3909 = vmatpush1.bf16.msra.mxu0 0
    %3910 = vmatprep.subr.bf16.mxu0 0
    %3911 = vmatpush1.bf16.msra.mxu0 0
    %3912 = vmatprep.subr.bf16.mxu0 0
    %3913 = vmatpush1.bf16.msra.mxu0 0
    %3914 = vmatprep.subr.bf16.mxu0 0
    %3915 = vmatpush1.bf16.msra.mxu0 0
    %3916 = vmatprep.subr.bf16.mxu0 0
    %3917 = vmatpush1.bf16.msra.mxu0 0
    %3918 = vmatprep.subr.bf16.mxu0 0
    %3919 = vmatpush1.bf16.msra.mxu0 0
    %3920 = vmatprep.subr.bf16.mxu0 0
    %3921 = vmatpush1.bf16.msra.mxu0 0
    %3922 = vmatprep.mubr.bf16.mxu0 0
    %3923 = vmatmul.mubr.bf16.gmra.mrb[0].mxu0 %v3885
    %v3924 = vpop.f32.mrb[0].mxu0
    %v3925 = vadd.f32 0.0, %v3924
    %v3926 = vpop.f32.mrb[0].mxu0
    %v3927 = vpop.f32.mrb[0].mxu0
    %v3928 = vpop.f32.mrb[0].mxu0
    %3929 = vdwg.mxu0
    %v3930 = vrcp.pop %v3880
    %v3931 = vmul.f32 %v3925, %v3930
    %3932 = vrot.lane.b32.xlu0 %v3609, 32
    %v3933 = vpop.permute.xlu0 %3932
    %3934 = vrot.lane.b32.xlu0 %v3612, 32
    %v3935 = vpop.permute.xlu0 %3934
    %v3937 = vsel %vm677, %v3933, 0
    %v3940 = vsel %vm677, %v3935, 0
    %3942 = vmatprep.subr.bf16.mxu0 0
    %3943 = vmatpush1.bf16.xpose.msra.mxu0 %v3940
    %3944 = vmatprep.subr.bf16.mxu0 0
    %3945 = vmatpush1.bf16.xpose.msra.mxu0 0
    %3946 = vmatprep.subr.bf16.mxu0 0
    %3947 = vmatpush1.bf16.xpose.msra.mxu0 0
    %3948 = vmatprep.subr.bf16.mxu0 0
    %3949 = vmatpush1.bf16.xpose.msra.mxu0 0
    %3950 = vmatprep.subr.bf16.mxu0 0
    %3951 = vmatpush1.bf16.xpose.msra.mxu0 0
    %3952 = vmatprep.subr.bf16.mxu0 0
    %3953 = vmatpush1.bf16.xpose.msra.mxu0 0
    %3954 = vmatprep.subr.bf16.mxu0 0
    %3955 = vmatpush1.bf16.xpose.msra.mxu0 0
    %3956 = vmatprep.subr.bf16.mxu0 0
    %3957 = vmatpush1.bf16.xpose.msra.mxu0 0
    %3958 = vmatprep.subr.bf16.mxu0 0
    %3959 = vmatpush1.bf16.xpose.msra.mxu0 0
    %3960 = vmatprep.subr.bf16.mxu0 0
    %3961 = vmatpush1.bf16.xpose.msra.mxu0 0
    %3962 = vmatprep.subr.bf16.mxu0 0
    %3963 = vmatpush1.bf16.xpose.msra.mxu0 0
    %3964 = vmatprep.subr.bf16.mxu0 0
    %3965 = vmatpush1.bf16.xpose.msra.mxu0 0
    %3966 = vmatprep.subr.bf16.mxu0 0
    %3967 = vmatpush1.bf16.xpose.msra.mxu0 0
    %3968 = vmatprep.subr.bf16.mxu0 0
    %3969 = vmatpush1.bf16.xpose.msra.mxu0 0
    %3970 = vmatprep.subr.bf16.mxu0 0
    %3971 = vmatpush1.bf16.xpose.msra.mxu0 0
    %3972 = vmatprep.subr.bf16.mxu0 0
    %3973 = vmatpush1.bf16.xpose.msra.mxu0 0
    %3974 = vmatprep.mubr.bf16.mxu0 0
    %3975 = vmatmul.mubr.bf16.gmra.mrb[0].mxu0 %v3937
    %v3976 = vpop.f32.mrb[0].mxu0
    %v3977 = vadd.f32 0.0, %v3976
    %v3978 = vpop.f32.mrb[0].mxu0
    %v3979 = vpop.f32.mrb[0].mxu0
    %v3980 = vpop.f32.mrb[0].mxu0
    %3981 = vdwg.mxu0
    %3982 = vrot.lane.b32.xlu0 %v3661, 96
    %v3983 = vpop.permute.xlu0 %3982
    %3984 = vrot.lane.b32.xlu0 %v3662, 96
    %v3985 = vpop.permute.xlu0 %3984
    %v3987 = vsel %vm677, %v3983, 0
    %v3990 = vsel %vm677, %v3985, 0
    %3992 = vmatprep.subr.bf16.mxu0 0
    %3993 = vmatpush1.bf16.xpose.msra.mxu0 %v3990
    %3994 = vmatprep.subr.bf16.mxu0 0
    %3995 = vmatpush1.bf16.xpose.msra.mxu0 0
    %3996 = vmatprep.subr.bf16.mxu0 0
    %3997 = vmatpush1.bf16.xpose.msra.mxu0 0
    %3998 = vmatprep.subr.bf16.mxu0 0
    %3999 = vmatpush1.bf16.xpose.msra.mxu0 0
    %4000 = vmatprep.subr.bf16.mxu0 0
    %4001 = vmatpush1.bf16.xpose.msra.mxu0 0
    %4002 = vmatprep.subr.bf16.mxu0 0
    %4003 = vmatpush1.bf16.xpose.msra.mxu0 0
    %4004 = vmatprep.subr.bf16.mxu0 0
    %4005 = vmatpush1.bf16.xpose.msra.mxu0 0
    %4006 = vmatprep.subr.bf16.mxu0 0
    %4007 = vmatpush1.bf16.xpose.msra.mxu0 0
    %4008 = vmatprep.subr.bf16.mxu0 0
    %4009 = vmatpush1.bf16.xpose.msra.mxu0 0
    %4010 = vmatprep.subr.bf16.mxu0 0
    %4011 = vmatpush1.bf16.xpose.msra.mxu0 0
    %4012 = vmatprep.subr.bf16.mxu0 0
    %4013 = vmatpush1.bf16.xpose.msra.mxu0 0
    %4014 = vmatprep.subr.bf16.mxu0 0
    %4015 = vmatpush1.bf16.xpose.msra.mxu0 0
    %4016 = vmatprep.subr.bf16.mxu0 0
    %4017 = vmatpush1.bf16.xpose.msra.mxu0 0
    %4018 = vmatprep.subr.bf16.mxu0 0
    %4019 = vmatpush1.bf16.xpose.msra.mxu0 0
    %4020 = vmatprep.subr.bf16.mxu0 0
    %4021 = vmatpush1.bf16.xpose.msra.mxu0 0
    %4022 = vmatprep.subr.bf16.mxu0 0
    %4023 = vmatpush1.bf16.xpose.msra.mxu0 0
    %4024 = vmatprep.mubr.bf16.mxu0 0
    %4025 = vmatmul.mubr.bf16.gmra.mrb[0].mxu0 %v3987
    %v4026 = vpop.f32.mrb[0].mxu0
    %v4027 = vadd.f32 %v3977, %v4026
    %v4028 = vpop.f32.mrb[0].mxu0
    %v4029 = vpop.f32.mrb[0].mxu0
    %v4030 = vpop.f32.mrb[0].mxu0
    %4031 = vdwg.mxu0
    %v4032 = vmul.f32 %v4027, 0.17677669
    %v4033 = vsel %vm324, %v4032, -1e+30
    %v4034 = vsel %vm772, %v4033, -inf
    %4035 = vmax.xlane.f32.xlu0 %v4034
    %v4036 = vpop.xlane.xlu0 %4035
    %v4037 = vsub.f32 %v4033, %v4036
    %v4038 = vmul.f32 %v4037, 1.442695
    %v4039 = vpow.pop %v4038
    %v4040 = vsel %vm772, %v4039, 0.0
    %4041 = vadd.xlane.f32.xlu0 %v4040
    %v4042 = vpop.xlane.xlu0 %4041
    %v4043 = vpack.c.bf16 %v4039, %v4039
    %4044 = vrot.lane.b32.xlu0 %v3721, 64
    %v4045 = vpop.permute.xlu0 %4044
    %v4047 = vsel %vm772, %v4043, 0
    %v4050 = vsel %vm786, %v4045, 0
    %4052 = vmatprep.subr.bf16.mxu0 0
    %4053 = vmatpush1.bf16.msra.mxu0 %v4050
    %4054 = vmatprep.subr.bf16.mxu0 0
    %4055 = vmatpush1.bf16.msra.mxu0 0
    %4056 = vmatprep.subr.bf16.mxu0 0
    %4057 = vmatpush1.bf16.msra.mxu0 0
    %4058 = vmatprep.subr.bf16.mxu0 0
    %4059 = vmatpush1.bf16.msra.mxu0 0
    %4060 = vmatprep.subr.bf16.mxu0 0
    %4061 = vmatpush1.bf16.msra.mxu0 0
    %4062 = vmatprep.subr.bf16.mxu0 0
    %4063 = vmatpush1.bf16.msra.mxu0 0
    %4064 = vmatprep.subr.bf16.mxu0 0
    %4065 = vmatpush1.bf16.msra.mxu0 0
    %4066 = vmatprep.subr.bf16.mxu0 0
    %4067 = vmatpush1.bf16.msra.mxu0 0
    %4068 = vmatprep.subr.bf16.mxu0 0
    %4069 = vmatpush1.bf16.msra.mxu0 0
    %4070 = vmatprep.subr.bf16.mxu0 0
    %4071 = vmatpush1.bf16.msra.mxu0 0
    %4072 = vmatprep.subr.bf16.mxu0 0
    %4073 = vmatpush1.bf16.msra.mxu0 0
    %4074 = vmatprep.subr.bf16.mxu0 0
    %4075 = vmatpush1.bf16.msra.mxu0 0
    %4076 = vmatprep.subr.bf16.mxu0 0
    %4077 = vmatpush1.bf16.msra.mxu0 0
    %4078 = vmatprep.subr.bf16.mxu0 0
    %4079 = vmatpush1.bf16.msra.mxu0 0
    %4080 = vmatprep.subr.bf16.mxu0 0
    %4081 = vmatpush1.bf16.msra.mxu0 0
    %4082 = vmatprep.subr.bf16.mxu0 0
    %4083 = vmatpush1.bf16.msra.mxu0 0
    %4084 = vmatprep.mubr.bf16.mxu0 0
    %4085 = vmatmul.mubr.bf16.gmra.mrb[0].mxu0 %v4047
    %v4086 = vpop.f32.mrb[0].mxu0
    %v4087 = vadd.f32 0.0, %v4086
    %v4088 = vpop.f32.mrb[0].mxu0
    %v4089 = vpop.f32.mrb[0].mxu0
    %v4090 = vpop.f32.mrb[0].mxu0
    %4091 = vdwg.mxu0
    %v4092 = vrcp.pop %v4042
    %v4093 = vmul.f32 %v4087, %v4092
    %4094 = vrot.lane.b32.xlu0 %v3609, 16
    %v4095 = vpop.permute.xlu0 %4094
    %4096 = vrot.lane.b32.xlu0 %v3612, 16
    %v4097 = vpop.permute.xlu0 %4096
    %v4099 = vsel %vm677, %v4095, 0
    %v4102 = vsel %vm677, %v4097, 0
    %4104 = vmatprep.subr.bf16.mxu0 0
    %4105 = vmatpush1.bf16.xpose.msra.mxu0 %v4102
    %4106 = vmatprep.subr.bf16.mxu0 0
    %4107 = vmatpush1.bf16.xpose.msra.mxu0 0
    %4108 = vmatprep.subr.bf16.mxu0 0
    %4109 = vmatpush1.bf16.xpose.msra.mxu0 0
    %4110 = vmatprep.subr.bf16.mxu0 0
    %4111 = vmatpush1.bf16.xpose.msra.mxu0 0
    %4112 = vmatprep.subr.bf16.mxu0 0
    %4113 = vmatpush1.bf16.xpose.msra.mxu0 0
    %4114 = vmatprep.subr.bf16.mxu0 0
    %4115 = vmatpush1.bf16.xpose.msra.mxu0 0
    %4116 = vmatprep.subr.bf16.mxu0 0
    %4117 = vmatpush1.bf16.xpose.msra.mxu0 0
    %4118 = vmatprep.subr.bf16.mxu0 0
    %4119 = vmatpush1.bf16.xpose.msra.mxu0 0
    %4120 = vmatprep.subr.bf16.mxu0 0
    %4121 = vmatpush1.bf16.xpose.msra.mxu0 0
    %4122 = vmatprep.subr.bf16.mxu0 0
    %4123 = vmatpush1.bf16.xpose.msra.mxu0 0
    %4124 = vmatprep.subr.bf16.mxu0 0
    %4125 = vmatpush1.bf16.xpose.msra.mxu0 0
    %4126 = vmatprep.subr.bf16.mxu0 0
    %4127 = vmatpush1.bf16.xpose.msra.mxu0 0
    %4128 = vmatprep.subr.bf16.mxu0 0
    %4129 = vmatpush1.bf16.xpose.msra.mxu0 0
    %4130 = vmatprep.subr.bf16.mxu0 0
    %4131 = vmatpush1.bf16.xpose.msra.mxu0 0
    %4132 = vmatprep.subr.bf16.mxu0 0
    %4133 = vmatpush1.bf16.xpose.msra.mxu0 0
    %4134 = vmatprep.subr.bf16.mxu0 0
    %4135 = vmatpush1.bf16.xpose.msra.mxu0 0
    %4136 = vmatprep.mubr.bf16.mxu0 0
    %4137 = vmatmul.mubr.bf16.gmra.mrb[0].mxu0 %v4099
    %v4138 = vpop.f32.mrb[0].mxu0
    %v4139 = vadd.f32 0.0, %v4138
    %v4140 = vpop.f32.mrb[0].mxu0
    %v4141 = vpop.f32.mrb[0].mxu0
    %v4142 = vpop.f32.mrb[0].mxu0
    %4143 = vdwg.mxu0
    %4144 = vrot.lane.b32.xlu0 %v3661, 80
    %v4145 = vpop.permute.xlu0 %4144
    %4146 = vrot.lane.b32.xlu0 %v3662, 80
    %v4147 = vpop.permute.xlu0 %4146
    %v4149 = vsel %vm677, %v4145, 0
    %v4152 = vsel %vm677, %v4147, 0
    %4154 = vmatprep.subr.bf16.mxu0 0
    %4155 = vmatpush1.bf16.xpose.msra.mxu0 %v4152
    %4156 = vmatprep.subr.bf16.mxu0 0
    %4157 = vmatpush1.bf16.xpose.msra.mxu0 0
    %4158 = vmatprep.subr.bf16.mxu0 0
    %4159 = vmatpush1.bf16.xpose.msra.mxu0 0
    %4160 = vmatprep.subr.bf16.mxu0 0
    %4161 = vmatpush1.bf16.xpose.msra.mxu0 0
    %4162 = vmatprep.subr.bf16.mxu0 0
    %4163 = vmatpush1.bf16.xpose.msra.mxu0 0
    %4164 = vmatprep.subr.bf16.mxu0 0
    %4165 = vmatpush1.bf16.xpose.msra.mxu0 0
    %4166 = vmatprep.subr.bf16.mxu0 0
    %4167 = vmatpush1.bf16.xpose.msra.mxu0 0
    %4168 = vmatprep.subr.bf16.mxu0 0
    %4169 = vmatpush1.bf16.xpose.msra.mxu0 0
    %4170 = vmatprep.subr.bf16.mxu0 0
    %4171 = vmatpush1.bf16.xpose.msra.mxu0 0
    %4172 = vmatprep.subr.bf16.mxu0 0
    %4173 = vmatpush1.bf16.xpose.msra.mxu0 0
    %4174 = vmatprep.subr.bf16.mxu0 0
    %4175 = vmatpush1.bf16.xpose.msra.mxu0 0
    %4176 = vmatprep.subr.bf16.mxu0 0
    %4177 = vmatpush1.bf16.xpose.msra.mxu0 0
    %4178 = vmatprep.subr.bf16.mxu0 0
    %4179 = vmatpush1.bf16.xpose.msra.mxu0 0
    %4180 = vmatprep.subr.bf16.mxu0 0
    %4181 = vmatpush1.bf16.xpose.msra.mxu0 0
    %4182 = vmatprep.subr.bf16.mxu0 0
    %4183 = vmatpush1.bf16.xpose.msra.mxu0 0
    %4184 = vmatprep.subr.bf16.mxu0 0
    %4185 = vmatpush1.bf16.xpose.msra.mxu0 0
    %4186 = vmatprep.mubr.bf16.mxu0 0
    %4187 = vmatmul.mubr.bf16.gmra.mrb[0].mxu0 %v4149
    %v4188 = vpop.f32.mrb[0].mxu0
    %v4189 = vadd.f32 %v4139, %v4188
    %v4190 = vpop.f32.mrb[0].mxu0
    %v4191 = vpop.f32.mrb[0].mxu0
    %v4192 = vpop.f32.mrb[0].mxu0
    %4193 = vdwg.mxu0
    %v4194 = vmul.f32 %v4189, 0.17677669
    %v4195 = vsel %vm324, %v4194, -1e+30
    %v4196 = vsel %vm772, %v4195, -inf
    %4197 = vmax.xlane.f32.xlu0 %v4196
    %v4198 = vpop.xlane.xlu0 %4197
    %v4199 = vsub.f32 %v4195, %v4198
    %v4200 = vmul.f32 %v4199, 1.442695
    %v4201 = vpow.pop %v4200
    %v4202 = vsel %vm772, %v4201, 0.0
    %4203 = vadd.xlane.f32.xlu0 %v4202
    %v4204 = vpop.xlane.xlu0 %4203
    %v4205 = vpack.c.bf16 %v4201, %v4201
    %4206 = vrot.lane.b32.xlu0 %v3721, 32
    %v4207 = vpop.permute.xlu0 %4206
    %v4209 = vsel %vm772, %v4205, 0
    %v4212 = vsel %vm786, %v4207, 0
    %4214 = vmatprep.subr.bf16.mxu0 0
    %4215 = vmatpush1.bf16.msra.mxu0 %v4212
    %4216 = vmatprep.subr.bf16.mxu0 0
    %4217 = vmatpush1.bf16.msra.mxu0 0
    %4218 = vmatprep.subr.bf16.mxu0 0
    %4219 = vmatpush1.bf16.msra.mxu0 0
    %4220 = vmatprep.subr.bf16.mxu0 0
    %4221 = vmatpush1.bf16.msra.mxu0 0
    %4222 = vmatprep.subr.bf16.mxu0 0
    %4223 = vmatpush1.bf16.msra.mxu0 0
    %4224 = vmatprep.subr.bf16.mxu0 0
    %4225 = vmatpush1.bf16.msra.mxu0 0
    %4226 = vmatprep.subr.bf16.mxu0 0
    %4227 = vmatpush1.bf16.msra.mxu0 0
    %4228 = vmatprep.subr.bf16.mxu0 0
    %4229 = vmatpush1.bf16.msra.mxu0 0
    %4230 = vmatprep.subr.bf16.mxu0 0
    %4231 = vmatpush1.bf16.msra.mxu0 0
    %4232 = vmatprep.subr.bf16.mxu0 0
    %4233 = vmatpush1.bf16.msra.mxu0 0
    %4234 = vmatprep.subr.bf16.mxu0 0
    %4235 = vmatpush1.bf16.msra.mxu0 0
    %4236 = vmatprep.subr.bf16.mxu0 0
    %4237 = vmatpush1.bf16.msra.mxu0 0
    %4238 = vmatprep.subr.bf16.mxu0 0
    %4239 = vmatpush1.bf16.msra.mxu0 0
    %4240 = vmatprep.subr.bf16.mxu0 0
    %4241 = vmatpush1.bf16.msra.mxu0 0
    %4242 = vmatprep.subr.bf16.mxu0 0
    %4243 = vmatpush1.bf16.msra.mxu0 0
    %4244 = vmatprep.subr.bf16.mxu0 0
    %4245 = vmatpush1.bf16.msra.mxu0 0
    %4246 = vmatprep.mubr.bf16.mxu0 0
    %4247 = vmatmul.mubr.bf16.gmra.mrb[0].mxu0 %v4209
    %v4248 = vpop.f32.mrb[0].mxu0
    %v4249 = vadd.f32 0.0, %v4248
    %v4250 = vpop.f32.mrb[0].mxu0
    %v4251 = vpop.f32.mrb[0].mxu0
    %v4252 = vpop.f32.mrb[0].mxu0
    %4253 = vdwg.mxu0
    %v4254 = vrcp.pop %v4204
    %v4255 = vmul.f32 %v4249, %v4254
    %4257 = vrot.lane.b32.xlu0 %v3931, 32
    %v4258 = vpop.permute.xlu0 %4257
    %4261 = vrot.lane.b32.xlu0 %v4093, 64
    %v4262 = vpop.permute.xlu0 %4261
    %4265 = vrot.lane.b32.xlu0 %v4255, 96
    %v4266 = vpop.permute.xlu0 %4265
    %v4268 = vsel %vm1333, %v3769, %v4258
    %v4269 = vsel %vm1335, %v4268, %v4262
    %v4270 = vsel %vm1337, %v4269, %v4266
    %v4271 = vpack.c.bf16 %v4270, %v3608
    %s4272 = scalar_lea.vmem [#allocation7], 64
    %v4273 = vld [vmem:[%s4272] sm:$0xf]
    %v4274 = vld [vmem:[%s4272 + $0x4] sm:$0xf]
    %v4275 = vld [vmem:[%s4272 + $0x8] sm:$0xf]
    %v4276 = vld [vmem:[%s4272 + $0xc] sm:$0xf]
    %v4277 = vld [vmem:[%s4272 + $0x10] sm:$0xf]
    %v4278 = vld [vmem:[%s4272 + $0x14] sm:$0xf]
    %v4279 = vld [vmem:[%s4272 + $0x18] sm:$0xf]
    %v4280 = vld [vmem:[%s4272 + $0x1c] sm:$0xf]
    %v4281 = vld [vmem:[%s4272 + $0x20] sm:$0xf]
    %v4282 = vld [vmem:[%s4272 + $0x24] sm:$0xf]
    %v4283 = vld [vmem:[%s4272 + $0x28] sm:$0xf]
    %v4284 = vld [vmem:[%s4272 + $0x2c] sm:$0xf]
    %v4285 = vld [vmem:[%s4272 + $0x30] sm:$0xf]
    %v4286 = vld [vmem:[%s4272 + $0x34] sm:$0xf]
    %v4287 = vld [vmem:[%s4272 + $0x38] sm:$0xf]
    %v4288 = vld [vmem:[%s4272 + $0x3c] sm:$0xf]
    %v4305 = vunpack.c.l.b16 %v4273
    %v4306 = vunpack.c.l.b16 %v4274
    %v4307 = vunpack.c.l.b16 %v4275
    %v4308 = vunpack.c.l.b16 %v4276
    %v4309 = vunpack.c.l.b16 %v4277
    %v4310 = vunpack.c.l.b16 %v4278
    %v4311 = vunpack.c.l.b16 %v4279
    %v4312 = vunpack.c.l.b16 %v4280
    %v4313 = vunpack.c.l.b16 %v4281
    %v4314 = vunpack.c.l.b16 %v4282
    %v4315 = vunpack.c.l.b16 %v4283
    %v4316 = vunpack.c.l.b16 %v4284
    %v4317 = vunpack.c.l.b16 %v4285
    %v4318 = vunpack.c.l.b16 %v4286
    %v4319 = vunpack.c.l.b16 %v4287
    %v4320 = vunpack.c.l.b16 %v4288
    %v4321 = vpack.c.b16 %v4306, %v4305
    %v4322 = vpack.c.b16 %v4308, %v4307
    %v4323 = vpack.c.b16 %v4310, %v4309
    %v4324 = vpack.c.b16 %v4312, %v4311
    %v4325 = vpack.c.b16 %v4314, %v4313
    %v4326 = vpack.c.b16 %v4316, %v4315
    %v4327 = vpack.c.b16 %v4318, %v4317
    %v4328 = vpack.c.b16 %v4320, %v4319
    %4337 = vmatprep.subr.bf16.mxu0 0
    %4338 = vmatpush1.bf16.msra.mxu0 %v4321
    %4339 = vmatprep.subr.bf16.mxu0 0
    %4340 = vmatpush1.bf16.msra.mxu0 %v4322
    %4341 = vmatprep.subr.bf16.mxu0 0
    %4342 = vmatpush1.bf16.msra.mxu0 %v4323
    %4343 = vmatprep.subr.bf16.mxu0 0
    %4344 = vmatpush1.bf16.msra.mxu0 %v4324
    %4345 = vmatprep.subr.bf16.mxu0 0
    %4346 = vmatpush1.bf16.msra.mxu0 %v4325
    %4347 = vmatprep.subr.bf16.mxu0 0
    %4348 = vmatpush1.bf16.msra.mxu0 %v4326
    %4349 = vmatprep.subr.bf16.mxu0 0
    %4350 = vmatpush1.bf16.msra.mxu0 %v4327
    %4351 = vmatprep.subr.bf16.mxu0 0
    %4352 = vmatpush1.bf16.msra.mxu0 %v4328
    %4353 = vmatprep.subr.bf16.mxu0 0
    %4354 = vmatpush1.bf16.msra.mxu0 0
    %4355 = vmatprep.subr.bf16.mxu0 0
    %4356 = vmatpush1.bf16.msra.mxu0 0
    %4357 = vmatprep.subr.bf16.mxu0 0
    %4358 = vmatpush1.bf16.msra.mxu0 0
    %4359 = vmatprep.subr.bf16.mxu0 0
    %4360 = vmatpush1.bf16.msra.mxu0 0
    %4361 = vmatprep.subr.bf16.mxu0 0
    %4362 = vmatpush1.bf16.msra.mxu0 0
    %4363 = vmatprep.subr.bf16.mxu0 0
    %4364 = vmatpush1.bf16.msra.mxu0 0
    %4365 = vmatprep.subr.bf16.mxu0 0
    %4366 = vmatpush1.bf16.msra.mxu0 0
    %4367 = vmatprep.subr.bf16.mxu0 0
    %4368 = vmatpush1.bf16.msra.mxu0 0
    %4369 = vmatprep.mubr.bf16.mxu0 0
    %4370 = vmatmul.mubr.bf16.gmra.mrb[0].mxu0 %v4271
    %v4371 = vpop.f32.mrb[0].mxu0
    %v4372 = vadd.f32 0.0, %v4371
    %v4373 = vpop.f32.mrb[0].mxu0
    %v4374 = vpop.f32.mrb[0].mxu0
    %v4375 = vadd.f32 0.0, %v4374
    %v4376 = vpop.f32.mrb[0].mxu0
    %4377 = vdwg.mxu0
    %v4378 = vadd.f32 %v2614, %v4372
    %v4379 = vadd.f32 %v2615, %v4375
    %s4380 = scalar_lea.vmem %s7, 1
    %v4381 = vld [vmem:[%s4380] sm:$0x1]
    %v4382 = vmul.f32 %v4378, %v4378
    %v4383 = vmul.f32 %v4379, %v4379
    %4384 = vadd.xlane.f32.xlu0 %v4382
    %v4385 = vpop.xlane.xlu0 %4384
    %4386 = vadd.xlane.f32.xlu0 %v4383
    %v4387 = vpop.xlane.xlu0 %4386
    %v4388 = vmul.f32 %v4385, %v332
    %v4389 = vmul.f32 %v4387, %v332
    %v4390 = vadd.f32 %v4388, 1e-06
    %v4391 = vadd.f32 %v4389, 1e-06
    %v4392 = vrsqrt.pop %v4390
    %v4393 = vrsqrt.pop %v4391
    %v4394 = vmul.f32 %v4378, %v4392
    %v4395 = vmul.f32 %v4379, %v4393
    %v4397 = vlaneseq
    %v4398 = vshrl.u32 %v4397, 7
    %v4399 = vsub.s32 0, %v4398
    %v4400 = vrot.slane %v4381, %v4399
    %v4402 = vmul.f32 %v4394, %v4400
    %v4403 = vmul.f32 %v4395, %v4400
    %v4404 = vpack.c.bf16 %v4403, %v4402
    %s4405 = scalar_lea.vmem %s8, 128
    %v4406 = vld [vmem:[%s4405] sm:$0xff]
    %v4407 = vld [vmem:[%s4405 + $0x8] sm:$0xff]
    %v4408 = vld [vmem:[%s4405 + $0x10] sm:$0xff]
    %v4409 = vld [vmem:[%s4405 + $0x18] sm:$0xff]
    %v4410 = vld [vmem:[%s4405 + $0x20] sm:$0xff]
    %v4411 = vld [vmem:[%s4405 + $0x28] sm:$0xff]
    %v4412 = vld [vmem:[%s4405 + $0x30] sm:$0xff]
    %v4413 = vld [vmem:[%s4405 + $0x38] sm:$0xff]
    %v4414 = vld [vmem:[%s4405 + $0x40] sm:$0xff]
    %v4415 = vld [vmem:[%s4405 + $0x48] sm:$0xff]
    %v4416 = vld [vmem:[%s4405 + $0x50] sm:$0xff]
    %v4417 = vld [vmem:[%s4405 + $0x58] sm:$0xff]
    %v4418 = vld [vmem:[%s4405 + $0x60] sm:$0xff]
    %v4419 = vld [vmem:[%s4405 + $0x68] sm:$0xff]
    %v4420 = vld [vmem:[%s4405 + $0x70] sm:$0xff]
    %v4421 = vld [vmem:[%s4405 + $0x78] sm:$0xff]
    %v4438 = vunpack.c.l.b16 %v4406
    %v4439 = vunpack.c.h.b16 %v4406
    %v4440 = vunpack.c.l.b16 %v4407
    %v4441 = vunpack.c.h.b16 %v4407
    %v4442 = vunpack.c.l.b16 %v4408
    %v4443 = vunpack.c.h.b16 %v4408
    %v4444 = vunpack.c.l.b16 %v4409
    %v4445 = vunpack.c.h.b16 %v4409
    %v4446 = vunpack.c.l.b16 %v4410
    %v4447 = vunpack.c.h.b16 %v4410
    %v4448 = vunpack.c.l.b16 %v4411
    %v4449 = vunpack.c.h.b16 %v4411
    %v4450 = vunpack.c.l.b16 %v4412
    %v4451 = vunpack.c.h.b16 %v4412
    %v4452 = vunpack.c.l.b16 %v4413
    %v4453 = vunpack.c.h.b16 %v4413
    %v4454 = vunpack.c.l.b16 %v4414
    %v4455 = vunpack.c.h.b16 %v4414
    %v4456 = vunpack.c.l.b16 %v4415
    %v4457 = vunpack.c.h.b16 %v4415
    %v4458 = vunpack.c.l.b16 %v4416
    %v4459 = vunpack.c.h.b16 %v4416
    %v4460 = vunpack.c.l.b16 %v4417
    %v4461 = vunpack.c.h.b16 %v4417
    %v4462 = vunpack.c.l.b16 %v4418
    %v4463 = vunpack.c.h.b16 %v4418
    %v4464 = vunpack.c.l.b16 %v4419
    %v4465 = vunpack.c.h.b16 %v4419
    %v4466 = vunpack.c.l.b16 %v4420
    %v4467 = vunpack.c.h.b16 %v4420
    %v4468 = vunpack.c.l.b16 %v4421
    %v4469 = vunpack.c.h.b16 %v4421
    %v4470 = vpack.c.b16 %v4440, %v4438
    %v4471 = vpack.c.b16 %v4441, %v4439
    %v4472 = vpack.c.b16 %v4444, %v4442
    %v4473 = vpack.c.b16 %v4445, %v4443
    %v4474 = vpack.c.b16 %v4448, %v4446
    %v4475 = vpack.c.b16 %v4449, %v4447
    %v4476 = vpack.c.b16 %v4452, %v4450
    %v4477 = vpack.c.b16 %v4453, %v4451
    %v4478 = vpack.c.b16 %v4456, %v4454
    %v4479 = vpack.c.b16 %v4457, %v4455
    %v4480 = vpack.c.b16 %v4460, %v4458
    %v4481 = vpack.c.b16 %v4461, %v4459
    %v4482 = vpack.c.b16 %v4464, %v4462
    %v4483 = vpack.c.b16 %v4465, %v4463
    %v4484 = vpack.c.b16 %v4468, %v4466
    %v4485 = vpack.c.b16 %v4469, %v4467
    %4502 = vmatprep.subr.bf16.mxu0 %v4471
    %4503 = vmatpush1.bf16.msra.mxu0 %v4470
    %4504 = vmatprep.subr.bf16.mxu0 %v4473
    %4505 = vmatpush1.bf16.msra.mxu0 %v4472
    %4506 = vmatprep.subr.bf16.mxu0 %v4475
    %4507 = vmatpush1.bf16.msra.mxu0 %v4474
    %4508 = vmatprep.subr.bf16.mxu0 %v4477
    %4509 = vmatpush1.bf16.msra.mxu0 %v4476
    %4510 = vmatprep.subr.bf16.mxu0 %v4479
    %4511 = vmatpush1.bf16.msra.mxu0 %v4478
    %4512 = vmatprep.subr.bf16.mxu0 %v4481
    %4513 = vmatpush1.bf16.msra.mxu0 %v4480
    %4514 = vmatprep.subr.bf16.mxu0 %v4483
    %4515 = vmatpush1.bf16.msra.mxu0 %v4482
    %4516 = vmatprep.subr.bf16.mxu0 %v4485
    %4517 = vmatpush1.bf16.msra.mxu0 %v4484
    %4518 = vmatprep.subr.bf16.mxu0 0
    %4519 = vmatpush1.bf16.msra.mxu0 0
    %4520 = vmatprep.subr.bf16.mxu0 0
    %4521 = vmatpush1.bf16.msra.mxu0 0
    %4522 = vmatprep.subr.bf16.mxu0 0
    %4523 = vmatpush1.bf16.msra.mxu0 0
    %4524 = vmatprep.subr.bf16.mxu0 0
    %4525 = vmatpush1.bf16.msra.mxu0 0
    %4526 = vmatprep.subr.bf16.mxu0 0
    %4527 = vmatpush1.bf16.msra.mxu0 0
    %4528 = vmatprep.subr.bf16.mxu0 0
    %4529 = vmatpush1.bf16.msra.mxu0 0
    %4530 = vmatprep.subr.bf16.mxu0 0
    %4531 = vmatpush1.bf16.msra.mxu0 0
    %4532 = vmatprep.subr.bf16.mxu0 0
    %4533 = vmatpush1.bf16.msra.mxu0 0
    %4534 = vmatprep.mubr.bf16.mxu0 0
    %4535 = vmatmul.mubr.bf16.gmra.mrb[0].mxu0 %v4404
    %v4536 = vpop.f32.mrb[0].mxu0
    %v4537 = vadd.f32 0.0, %v4536
    %v4538 = vpop.f32.mrb[0].mxu0
    %v4539 = vadd.f32 0.0, %v4538
    %v4540 = vpop.f32.mrb[0].mxu0
    %v4541 = vadd.f32 0.0, %v4540
    %v4542 = vpop.f32.mrb[0].mxu0
    %v4543 = vadd.f32 0.0, %v4542
    %4544 = vdwg.mxu0
    %s4545 = scalar_lea.vmem [#allocation8], 128
    %v4546 = vld [vmem:[%s4545] sm:$0xff]
    %v4547 = vld [vmem:[%s4545 + $0x8] sm:$0xff]
    %v4548 = vld [vmem:[%s4545 + $0x10] sm:$0xff]
    %v4549 = vld [vmem:[%s4545 + $0x18] sm:$0xff]
    %v4550 = vld [vmem:[%s4545 + $0x20] sm:$0xff]
    %v4551 = vld [vmem:[%s4545 + $0x28] sm:$0xff]
    %v4552 = vld [vmem:[%s4545 + $0x30] sm:$0xff]
    %v4553 = vld [vmem:[%s4545 + $0x38] sm:$0xff]
    %v4554 = vld [vmem:[%s4545 + $0x40] sm:$0xff]
    %v4555 = vld [vmem:[%s4545 + $0x48] sm:$0xff]
    %v4556 = vld [vmem:[%s4545 + $0x50] sm:$0xff]
    %v4557 = vld [vmem:[%s4545 + $0x58] sm:$0xff]
    %v4558 = vld [vmem:[%s4545 + $0x60] sm:$0xff]
    %v4559 = vld [vmem:[%s4545 + $0x68] sm:$0xff]
    %v4560 = vld [vmem:[%s4545 + $0x70] sm:$0xff]
    %v4561 = vld [vmem:[%s4545 + $0x78] sm:$0xff]
    %v4578 = vunpack.c.l.b16 %v4546
    %v4579 = vunpack.c.h.b16 %v4546
    %v4580 = vunpack.c.l.b16 %v4547
    %v4581 = vunpack.c.h.b16 %v4547
    %v4582 = vunpack.c.l.b16 %v4548
    %v4583 = vunpack.c.h.b16 %v4548
    %v4584 = vunpack.c.l.b16 %v4549
    %v4585 = vunpack.c.h.b16 %v4549
    %v4586 = vunpack.c.l.b16 %v4550
    %v4587 = vunpack.c.h.b16 %v4550
    %v4588 = vunpack.c.l.b16 %v4551
    %v4589 = vunpack.c.h.b16 %v4551
    %v4590 = vunpack.c.l.b16 %v4552
    %v4591 = vunpack.c.h.b16 %v4552
    %v4592 = vunpack.c.l.b16 %v4553
    %v4593 = vunpack.c.h.b16 %v4553
    %v4594 = vunpack.c.l.b16 %v4554
    %v4595 = vunpack.c.h.b16 %v4554
    %v4596 = vunpack.c.l.b16 %v4555
    %v4597 = vunpack.c.h.b16 %v4555
    %v4598 = vunpack.c.l.b16 %v4556
    %v4599 = vunpack.c.h.b16 %v4556
    %v4600 = vunpack.c.l.b16 %v4557
    %v4601 = vunpack.c.h.b16 %v4557
    %v4602 = vunpack.c.l.b16 %v4558
    %v4603 = vunpack.c.h.b16 %v4558
    %v4604 = vunpack.c.l.b16 %v4559
    %v4605 = vunpack.c.h.b16 %v4559
    %v4606 = vunpack.c.l.b16 %v4560
    %v4607 = vunpack.c.h.b16 %v4560
    %v4608 = vunpack.c.l.b16 %v4561
    %v4609 = vunpack.c.h.b16 %v4561
    %v4610 = vpack.c.b16 %v4580, %v4578
    %v4611 = vpack.c.b16 %v4581, %v4579
    %v4612 = vpack.c.b16 %v4584, %v4582
    %v4613 = vpack.c.b16 %v4585, %v4583
    %v4614 = vpack.c.b16 %v4588, %v4586
    %v4615 = vpack.c.b16 %v4589, %v4587
    %v4616 = vpack.c.b16 %v4592, %v4590
    %v4617 = vpack.c.b16 %v4593, %v4591
    %v4618 = vpack.c.b16 %v4596, %v4594
    %v4619 = vpack.c.b16 %v4597, %v4595
    %v4620 = vpack.c.b16 %v4600, %v4598
    %v4621 = vpack.c.b16 %v4601, %v4599
    %v4622 = vpack.c.b16 %v4604, %v4602
    %v4623 = vpack.c.b16 %v4605, %v4603
    %v4624 = vpack.c.b16 %v4608, %v4606
    %v4625 = vpack.c.b16 %v4609, %v4607
    %4642 = vmatprep.subr.bf16.mxu0 %v4611
    %4643 = vmatpush1.bf16.msra.mxu0 %v4610
    %4644 = vmatprep.subr.bf16.mxu0 %v4613
    %4645 = vmatpush1.bf16.msra.mxu0 %v4612
    %4646 = vmatprep.subr.bf16.mxu0 %v4615
    %4647 = vmatpush1.bf16.msra.mxu0 %v4614
    %4648 = vmatprep.subr.bf16.mxu0 %v4617
    %4649 = vmatpush1.bf16.msra.mxu0 %v4616
    %4650 = vmatprep.subr.bf16.mxu0 %v4619
    %4651 = vmatpush1.bf16.msra.mxu0 %v4618
    %4652 = vmatprep.subr.bf16.mxu0 %v4621
    %4653 = vmatpush1.bf16.msra.mxu0 %v4620
    %4654 = vmatprep.subr.bf16.mxu0 %v4623
    %4655 = vmatpush1.bf16.msra.mxu0 %v4622
    %4656 = vmatprep.subr.bf16.mxu0 %v4625
    %4657 = vmatpush1.bf16.msra.mxu0 %v4624
    %4658 = vmatprep.subr.bf16.mxu0 0
    %4659 = vmatpush1.bf16.msra.mxu0 0
    %4660 = vmatprep.subr.bf16.mxu0 0
    %4661 = vmatpush1.bf16.msra.mxu0 0
    %4662 = vmatprep.subr.bf16.mxu0 0
    %4663 = vmatpush1.bf16.msra.mxu0 0
    %4664 = vmatprep.subr.bf16.mxu0 0
    %4665 = vmatpush1.bf16.msra.mxu0 0
    %4666 = vmatprep.subr.bf16.mxu0 0
    %4667 = vmatpush1.bf16.msra.mxu0 0
    %4668 = vmatprep.subr.bf16.mxu0 0
    %4669 = vmatpush1.bf16.msra.mxu0 0
    %4670 = vmatprep.subr.bf16.mxu0 0
    %4671 = vmatpush1.bf16.msra.mxu0 0
    %4672 = vmatprep.subr.bf16.mxu0 0
    %4673 = vmatpush1.bf16.msra.mxu0 0
    %4674 = vmatprep.mubr.bf16.mxu0 0
    %4675 = vmatmul.mubr.bf16.gmra.mrb[0].mxu0 %v4404
    %v4676 = vpop.f32.mrb[0].mxu0
    %v4677 = vadd.f32 0.0, %v4676
    %v4678 = vpop.f32.mrb[0].mxu0
    %v4679 = vadd.f32 0.0, %v4678
    %v4680 = vpop.f32.mrb[0].mxu0
    %v4681 = vadd.f32 0.0, %v4680
    %v4682 = vpop.f32.mrb[0].mxu0
    %v4683 = vadd.f32 0.0, %v4682
    %4684 = vdwg.mxu0
    %v4685 = vxor.u32 %v4537, 2147483648
    %v4686 = vxor.u32 %v4539, 2147483648
    %v4687 = vxor.u32 %v4541, 2147483648
    %v4688 = vxor.u32 %v4543, 2147483648
    %v4689 = vmul.f32 %v4685, 1.442695
    %v4690 = vpow.pop %v4689
    %v4691 = vmul.f32 %v4686, 1.442695
    %v4692 = vpow.pop %v4691
    %v4693 = vmul.f32 %v4687, 1.442695
    %v4694 = vpow.pop %v4693
    %v4695 = vmul.f32 %v4688, 1.442695
    %v4696 = vpow.pop %v4695
    %v4697 = vadd.f32 %v4690, 1.0
    %v4698 = vadd.f32 %v4692, 1.0
    %v4699 = vadd.f32 %v4694, 1.0
    %v4700 = vadd.f32 %v4696, 1.0
    %v4701 = vrcp.pop %v4697
    %v4702 = vmul.f32 1.0, %v4701
    %v4703 = vrcp.pop %v4698
    %v4704 = vmul.f32 1.0, %v4703
    %v4705 = vrcp.pop %v4699
    %v4706 = vmul.f32 1.0, %v4705
    %v4707 = vrcp.pop %v4700
    %v4708 = vmul.f32 1.0, %v4707
    %v4709 = vmul.f32 %v4537, %v4702
    %v4710 = vmul.f32 %v4539, %v4704
    %v4711 = vmul.f32 %v4541, %v4706
    %v4712 = vmul.f32 %v4543, %v4708
    %v4713 = vmul.f32 %v4709, %v4677
    %v4714 = vmul.f32 %v4710, %v4679
    %v4715 = vmul.f32 %v4711, %v4681
    %v4716 = vmul.f32 %v4712, %v4683
    %v4717 = vpack.c.bf16 %v4715, %v4713
    %v4718 = vpack.c.bf16 %v4716, %v4714
    %s4719 = scalar_lea.vmem [#allocation10], 128
    %v4720 = vld [vmem:[%s4719] sm:$0xf]
    %v4721 = vld [vmem:[%s4719 + $0x4] sm:$0xf]
    %v4722 = vld [vmem:[%s4719 + $0x8] sm:$0xf]
    %v4723 = vld [vmem:[%s4719 + $0xc] sm:$0xf]
    %v4724 = vld [vmem:[%s4719 + $0x10] sm:$0xf]
    %v4725 = vld [vmem:[%s4719 + $0x14] sm:$0xf]
    %v4726 = vld [vmem:[%s4719 + $0x18] sm:$0xf]
    %v4727 = vld [vmem:[%s4719 + $0x1c] sm:$0xf]
    %v4728 = vld [vmem:[%s4719 + $0x20] sm:$0xf]
    %v4729 = vld [vmem:[%s4719 + $0x24] sm:$0xf]
    %v4730 = vld [vmem:[%s4719 + $0x28] sm:$0xf]
    %v4731 = vld [vmem:[%s4719 + $0x2c] sm:$0xf]
    %v4732 = vld [vmem:[%s4719 + $0x30] sm:$0xf]
    %v4733 = vld [vmem:[%s4719 + $0x34] sm:$0xf]
    %v4734 = vld [vmem:[%s4719 + $0x38] sm:$0xf]
    %v4735 = vld [vmem:[%s4719 + $0x3c] sm:$0xf]
    %v4736 = vld [vmem:[%s4719 + $0x40] sm:$0xf]
    %v4737 = vld [vmem:[%s4719 + $0x44] sm:$0xf]
    %v4738 = vld [vmem:[%s4719 + $0x48] sm:$0xf]
    %v4739 = vld [vmem:[%s4719 + $0x4c] sm:$0xf]
    %v4740 = vld [vmem:[%s4719 + $0x50] sm:$0xf]
    %v4741 = vld [vmem:[%s4719 + $0x54] sm:$0xf]
    %v4742 = vld [vmem:[%s4719 + $0x58] sm:$0xf]
    %v4743 = vld [vmem:[%s4719 + $0x5c] sm:$0xf]
    %v4744 = vld [vmem:[%s4719 + $0x60] sm:$0xf]
    %v4745 = vld [vmem:[%s4719 + $0x64] sm:$0xf]
    %v4746 = vld [vmem:[%s4719 + $0x68] sm:$0xf]
    %v4747 = vld [vmem:[%s4719 + $0x6c] sm:$0xf]
    %v4748 = vld [vmem:[%s4719 + $0x70] sm:$0xf]
    %v4749 = vld [vmem:[%s4719 + $0x74] sm:$0xf]
    %v4750 = vld [vmem:[%s4719 + $0x78] sm:$0xf]
    %v4751 = vld [vmem:[%s4719 + $0x7c] sm:$0xf]
    %v4784 = vunpack.c.l.b16 %v4720
    %v4785 = vunpack.c.l.b16 %v4721
    %v4786 = vunpack.c.l.b16 %v4722
    %v4787 = vunpack.c.l.b16 %v4723
    %v4788 = vunpack.c.l.b16 %v4724
    %v4789 = vunpack.c.l.b16 %v4725
    %v4790 = vunpack.c.l.b16 %v4726
    %v4791 = vunpack.c.l.b16 %v4727
    %v4792 = vunpack.c.l.b16 %v4728
    %v4793 = vunpack.c.l.b16 %v4729
    %v4794 = vunpack.c.l.b16 %v4730
    %v4795 = vunpack.c.l.b16 %v4731
    %v4796 = vunpack.c.l.b16 %v4732
    %v4797 = vunpack.c.l.b16 %v4733
    %v4798 = vunpack.c.l.b16 %v4734
    %v4799 = vunpack.c.l.b16 %v4735
    %v4800 = vunpack.c.l.b16 %v4736
    %v4801 = vunpack.c.l.b16 %v4737
    %v4802 = vunpack.c.l.b16 %v4738
    %v4803 = vunpack.c.l.b16 %v4739
    %v4804 = vunpack.c.l.b16 %v4740
    %v4805 = vunpack.c.l.b16 %v4741
    %v4806 = vunpack.c.l.b16 %v4742
    %v4807 = vunpack.c.l.b16 %v4743
    %v4808 = vunpack.c.l.b16 %v4744
    %v4809 = vunpack.c.l.b16 %v4745
    %v4810 = vunpack.c.l.b16 %v4746
    %v4811 = vunpack.c.l.b16 %v4747
    %v4812 = vunpack.c.l.b16 %v4748
    %v4813 = vunpack.c.l.b16 %v4749
    %v4814 = vunpack.c.l.b16 %v4750
    %v4815 = vunpack.c.l.b16 %v4751
    %v4816 = vpack.c.b16 %v4785, %v4784
    %v4817 = vpack.c.b16 %v4787, %v4786
    %v4818 = vpack.c.b16 %v4789, %v4788
    %v4819 = vpack.c.b16 %v4791, %v4790
    %v4820 = vpack.c.b16 %v4793, %v4792
    %v4821 = vpack.c.b16 %v4795, %v4794
    %v4822 = vpack.c.b16 %v4797, %v4796
    %v4823 = vpack.c.b16 %v4799, %v4798
    %v4824 = vpack.c.b16 %v4801, %v4800
    %v4825 = vpack.c.b16 %v4803, %v4802
    %v4826 = vpack.c.b16 %v4805, %v4804
    %v4827 = vpack.c.b16 %v4807, %v4806
    %v4828 = vpack.c.b16 %v4809, %v4808
    %v4829 = vpack.c.b16 %v4811, %v4810
    %v4830 = vpack.c.b16 %v4813, %v4812
    %v4831 = vpack.c.b16 %v4815, %v4814
    %4848 = vmatprep.subr.bf16.mxu0 0
    %4849 = vmatpush1.bf16.msra.mxu0 %v4816
    %4850 = vmatprep.subr.bf16.mxu0 0
    %4851 = vmatpush1.bf16.msra.mxu0 %v4817
    %4852 = vmatprep.subr.bf16.mxu0 0
    %4853 = vmatpush1.bf16.msra.mxu0 %v4818
    %4854 = vmatprep.subr.bf16.mxu0 0
    %4855 = vmatpush1.bf16.msra.mxu0 %v4819
    %4856 = vmatprep.subr.bf16.mxu0 0
    %4857 = vmatpush1.bf16.msra.mxu0 %v4820
    %4858 = vmatprep.subr.bf16.mxu0 0
    %4859 = vmatpush1.bf16.msra.mxu0 %v4821
    %4860 = vmatprep.subr.bf16.mxu0 0
    %4861 = vmatpush1.bf16.msra.mxu0 %v4822
    %4862 = vmatprep.subr.bf16.mxu0 0
    %4863 = vmatpush1.bf16.msra.mxu0 %v4823
    %4864 = vmatprep.subr.bf16.mxu0 0
    %4865 = vmatpush1.bf16.msra.mxu0 %v4824
    %4866 = vmatprep.subr.bf16.mxu0 0
    %4867 = vmatpush1.bf16.msra.mxu0 %v4825
    %4868 = vmatprep.subr.bf16.mxu0 0
    %4869 = vmatpush1.bf16.msra.mxu0 %v4826
    %4870 = vmatprep.subr.bf16.mxu0 0
    %4871 = vmatpush1.bf16.msra.mxu0 %v4827
    %4872 = vmatprep.subr.bf16.mxu0 0
    %4873 = vmatpush1.bf16.msra.mxu0 %v4828
    %4874 = vmatprep.subr.bf16.mxu0 0
    %4875 = vmatpush1.bf16.msra.mxu0 %v4829
    %4876 = vmatprep.subr.bf16.mxu0 0
    %4877 = vmatpush1.bf16.msra.mxu0 %v4830
    %4878 = vmatprep.subr.bf16.mxu0 0
    %4879 = vmatpush1.bf16.msra.mxu0 %v4831
    %4880 = vmatprep.mubr.bf16.mxu0 %v4718
    %4881 = vmatmul.mubr.bf16.gmra.mrb[0].mxu0 %v4717
    %v4882 = vpop.f32.mrb[0].mxu0
    %v4883 = vadd.f32 0.0, %v4882
    %v4884 = vpop.f32.mrb[0].mxu0
    %v4885 = vpop.f32.mrb[0].mxu0
    %v4886 = vadd.f32 0.0, %v4885
    %v4887 = vpop.f32.mrb[0].mxu0
    %4888 = vdwg.mxu0
    %v4889 = vadd.f32 %v4378, %v4883
    %v4890 = vadd.f32 %v4379, %v4886
    %v4891 = vld [vmem:[%s11] sm:$0x1]
    %v4892 = vmul.f32 %v4889, %v4889
    %v4893 = vmul.f32 %v4890, %v4890
    %4894 = vadd.xlane.f32.xlu0 %v4892
    %v4895 = vpop.xlane.xlu0 %4894
    %4896 = vadd.xlane.f32.xlu0 %v4893
    %v4897 = vpop.xlane.xlu0 %4896
    %v4898 = vmul.f32 %v4895, %v332
    %v4899 = vmul.f32 %v4897, %v332
    %v4900 = vadd.f32 %v4898, 1e-06
    %v4901 = vadd.f32 %v4899, 1e-06
    %v4902 = vrsqrt.pop %v4900
    %v4903 = vrsqrt.pop %v4901
    %v4904 = vmul.f32 %v4889, %v4902
    %v4905 = vmul.f32 %v4890, %v4903
    %v4907 = vlaneseq
    %v4908 = vshrl.u32 %v4907, 7
    %v4909 = vsub.s32 0, %v4908
    %v4910 = vrot.slane %v4891, %v4909
    %v4912 = vmul.f32 %v4904, %v4910
    %v4913 = vmul.f32 %v4905, %v4910
    %v4914 = vpack.c.bf16 %v4913, %v4912
    %v4915 = vld [vmem:[#allocation11] sm:$0xff]
    %v4916 = vld [vmem:[#allocation11 + $0x8] sm:$0xff]
    %v4917 = vld [vmem:[#allocation11 + $0x10] sm:$0xff]
    %v4918 = vld [vmem:[#allocation11 + $0x18] sm:$0xff]
    %v4919 = vld [vmem:[#allocation11 + $0x20] sm:$0xff]
    %v4920 = vld [vmem:[#allocation11 + $0x28] sm:$0xff]
    %v4921 = vld [vmem:[#allocation11 + $0x30] sm:$0xff]
    %v4922 = vld [vmem:[#allocation11 + $0x38] sm:$0xff]
    %v4923 = vld [vmem:[#allocation11 + $0x40] sm:$0xff]
    %v4924 = vld [vmem:[#allocation11 + $0x48] sm:$0xff]
    %v4925 = vld [vmem:[#allocation11 + $0x50] sm:$0xff]
    %v4926 = vld [vmem:[#allocation11 + $0x58] sm:$0xff]
    %v4927 = vld [vmem:[#allocation11 + $0x60] sm:$0xff]
    %v4928 = vld [vmem:[#allocation11 + $0x68] sm:$0xff]
    %v4929 = vld [vmem:[#allocation11 + $0x70] sm:$0xff]
    %v4930 = vld [vmem:[#allocation11 + $0x78] sm:$0xff]
    %v4947 = vunpack.c.l.b16 %v4915
    %v4948 = vunpack.c.h.b16 %v4915
    %v4949 = vunpack.c.l.b16 %v4916
    %v4950 = vunpack.c.h.b16 %v4916
    %v4951 = vunpack.c.l.b16 %v4917
    %v4952 = vunpack.c.h.b16 %v4917
    %v4953 = vunpack.c.l.b16 %v4918
    %v4954 = vunpack.c.h.b16 %v4918
    %v4955 = vunpack.c.l.b16 %v4919
    %v4956 = vunpack.c.h.b16 %v4919
    %v4957 = vunpack.c.l.b16 %v4920
    %v4958 = vunpack.c.h.b16 %v4920
    %v4959 = vunpack.c.l.b16 %v4921
    %v4960 = vunpack.c.h.b16 %v4921
    %v4961 = vunpack.c.l.b16 %v4922
    %v4962 = vunpack.c.h.b16 %v4922
    %v4963 = vunpack.c.l.b16 %v4923
    %v4964 = vunpack.c.h.b16 %v4923
    %v4965 = vunpack.c.l.b16 %v4924
    %v4966 = vunpack.c.h.b16 %v4924
    %v4967 = vunpack.c.l.b16 %v4925
    %v4968 = vunpack.c.h.b16 %v4925
    %v4969 = vunpack.c.l.b16 %v4926
    %v4970 = vunpack.c.h.b16 %v4926
    %v4971 = vunpack.c.l.b16 %v4927
    %v4972 = vunpack.c.h.b16 %v4927
    %v4973 = vunpack.c.l.b16 %v4928
    %v4974 = vunpack.c.h.b16 %v4928
    %v4975 = vunpack.c.l.b16 %v4929
    %v4976 = vunpack.c.h.b16 %v4929
    %v4977 = vunpack.c.l.b16 %v4930
    %v4978 = vunpack.c.h.b16 %v4930
    %v4979 = vpack.c.b16 %v4949, %v4947
    %v4980 = vpack.c.b16 %v4950, %v4948
    %v4981 = vpack.c.b16 %v4953, %v4951
    %v4982 = vpack.c.b16 %v4954, %v4952
    %v4983 = vpack.c.b16 %v4957, %v4955
    %v4984 = vpack.c.b16 %v4958, %v4956
    %v4985 = vpack.c.b16 %v4961, %v4959
    %v4986 = vpack.c.b16 %v4962, %v4960
    %v4987 = vpack.c.b16 %v4965, %v4963
    %v4988 = vpack.c.b16 %v4966, %v4964
    %v4989 = vpack.c.b16 %v4969, %v4967
    %v4990 = vpack.c.b16 %v4970, %v4968
    %v4991 = vpack.c.b16 %v4973, %v4971
    %v4992 = vpack.c.b16 %v4974, %v4972
    %v4993 = vpack.c.b16 %v4977, %v4975
    %v4994 = vpack.c.b16 %v4978, %v4976
    %5011 = vmatprep.subr.bf16.mxu0 %v4980
    %5012 = vmatpush1.bf16.msra.mxu0 %v4979
    %5013 = vmatprep.subr.bf16.mxu0 %v4982
    %5014 = vmatpush1.bf16.msra.mxu0 %v4981
    %5015 = vmatprep.subr.bf16.mxu0 %v4984
    %5016 = vmatpush1.bf16.msra.mxu0 %v4983
    %5017 = vmatprep.subr.bf16.mxu0 %v4986
    %5018 = vmatpush1.bf16.msra.mxu0 %v4985
    %5019 = vmatprep.subr.bf16.mxu0 %v4988
    %5020 = vmatpush1.bf16.msra.mxu0 %v4987
    %5021 = vmatprep.subr.bf16.mxu0 %v4990
    %5022 = vmatpush1.bf16.msra.mxu0 %v4989
    %5023 = vmatprep.subr.bf16.mxu0 %v4992
    %5024 = vmatpush1.bf16.msra.mxu0 %v4991
    %5025 = vmatprep.subr.bf16.mxu0 %v4994
    %5026 = vmatpush1.bf16.msra.mxu0 %v4993
    %5027 = vmatprep.subr.bf16.mxu0 0
    %5028 = vmatpush1.bf16.msra.mxu0 0
    %5029 = vmatprep.subr.bf16.mxu0 0
    %5030 = vmatpush1.bf16.msra.mxu0 0
    %5031 = vmatprep.subr.bf16.mxu0 0
    %5032 = vmatpush1.bf16.msra.mxu0 0
    %5033 = vmatprep.subr.bf16.mxu0 0
    %5034 = vmatpush1.bf16.msra.mxu0 0
    %5035 = vmatprep.subr.bf16.mxu0 0
    %5036 = vmatpush1.bf16.msra.mxu0 0
    %5037 = vmatprep.subr.bf16.mxu0 0
    %5038 = vmatpush1.bf16.msra.mxu0 0
    %5039 = vmatprep.subr.bf16.mxu0 0
    %5040 = vmatpush1.bf16.msra.mxu0 0
    %5041 = vmatprep.subr.bf16.mxu0 0
    %5042 = vmatpush1.bf16.msra.mxu0 0
    %5043 = vmatprep.mubr.bf16.mxu0 0
    %5044 = vmatmul.mubr.bf16.gmra.mrb[0].mxu0 %v4914
    %v5045 = vpop.f32.mrb[0].mxu0
    %v5046 = vadd.f32 0.0, %v5045
    %v5047 = vpop.f32.mrb[0].mxu0
    %v5048 = vadd.f32 0.0, %v5047
    %v5049 = vpop.f32.mrb[0].mxu0
    %v5050 = vadd.f32 0.0, %v5049
    %v5051 = vpop.f32.mrb[0].mxu0
    %v5052 = vadd.f32 0.0, %v5051
    %5053 = vdwg.mxu0
    %5054 = vst [vmem:[#allocation13] sm:$0xff] %v5046
    %5055 = vst [vmem:[#allocation13 + $0x8] sm:$0xff] %v5048
    %5056 = vst [vmem:[#allocation13 + $0x10] sm:$0xff] %v5050
    %5057 = vst [vmem:[#allocation13 + $0x18] sm:$0xff] %v5052
    // Predicated region
    $region78: #{forward.1} parent=1 // pred_check
      _
    $region79: #{forward.1} parent=1 // pred_check_branch
      %5059 = sbr.rel (0) target = $region81
    $region80: #{forward.1} parent=1 // pred_region
      %s5061 = ssub.s32 512, 512
      %5062 = vsyncadd [#allocation4], %s5061
      %s5063 = sshll.u32 [#allocation13], 4
      %s5064 = int_to_ptr.vmem [resolvable:$true] %s5063
      %5069 = dma.vmem_to_hbm [thread:$0]  %s5064, 512, %s13, [#allocation4], 256, 256, 16
    $region81: #{forward.1} parent=1 // pred_fallthru
      _
    // Predicated region
    $region82: #{forward.1} parent=1 // pred_check
      _
    $region83: #{forward.1} parent=1 // pred_check_branch
      %5071 = sbr.rel (0) target = $region85
    $region84: #{forward.1} parent=1 // pred_region
      %5072 = dma.done [#allocation4], 512
    $region85: #{forward.1} parent=1 // pred_fallthru
      _
    %5073 = vsyncpa [#allocation3], 1
    %5074 = vsyncpa [#allocation6], 1
    %5075 = vsyncpa [#allocation9], 1
    %5076 = vsyncpa [#allocation12], 1
    %5077 = vsyncpa [#allocation4], 1

</llo_original>
